<compile_context>
chip_gen: v7x
topology: tpu7x:2x2x1
jax: 0.10.0
libtpu: 0.0.40
codegen_flags: <defaults>
</compile_context>

<pallas_src>
import functools

import jax
import jax.numpy as jnp
from jax.experimental import pallas as pl
from jax.experimental.pallas import tpu as pltpu

# ----------------------------- configuration -------------------------------
VOC = (32, 32, 128)     # (diag vocab, proc vocab, med vocab)
EMB = 64                # embed_dim
HID = 2 * EMB           # GRU hidden size (128)
T_ADM = 4               # admissions (visits) per patient
BATCH = 16              # patients per call
B_BLK = 8               # patients per grid step (sublane-aligned)


# ------------------------------ pallas utils -------------------------------
def _full_spec(shape):
    nd = len(shape)
    return pl.BlockSpec(shape, lambda i, _nd=nd: (0,) * _nd)


def _dot(a, b):
    return jnp.dot(a, b, preferred_element_type=jnp.float32)


def _softmax_last(x):
    m = jnp.max(x, axis=-1, keepdims=True)
    e = jnp.exp(x - m)
    return e / jnp.sum(e, axis=-1, keepdims=True)


# -------------------------------- fused kernel ------------------------------
def gamenet_kernel(
        x1_ref, x2_ref,                          # (T*Bb, EMB) each, time-major
        hv_ref,                                  # (max(T-1,1), Bb, V) history multi-hot
        wih0_ref, whh0_ref, bih0_ref, bhh0_ref,  # GRU 0 (diag encoder)
        wih1_ref, whh1_ref, bih1_ref, bhh1_ref,  # GRU 1 (proc encoder)
        wqa_ref, wqb_ref, bq_ref,                # query Linear, split per GRU half
        dm_ref, dmt_ref,                         # precomputed drug memory (V,EMB) + (EMB,V)
        wo1a_ref, wo1b_ref, wo1c_ref, bo1_ref,   # output Linear1, split per chunk
        wo2_ref, bo2_ref,                        # output Linear2
        out_ref,                                 # (Bb, V)
        pr1_ref, pr2_ref,                        # scratch (T*Bb, HID) each
        *, seq_len, bb, has_history):
    f32 = jnp.float32
    H = HID
    V = VOC[2]

    # ---- dual GRU encoders: hoisted input projection, batched recurrence ----
    gi1 = _dot(x1_ref[...], wih0_ref[...]) + bih0_ref[...]      # (T*Bb, 3H)
    gi2 = _dot(x2_ref[...], wih1_ref[...]) + bih1_ref[...]

    whh0 = whh0_ref[...]
    whh1 = whh1_ref[...]
    bhh0 = bhh0_ref[...]
    bhh1 = bhh1_ref[...]

    def gru_step(gi, gh, h):
        r = jax.nn.sigmoid(gi[:, 0:H] + gh[:, 0:H])
        z = jax.nn.sigmoid(gi[:, H:2 * H] + gh[:, H:2 * H])
        n = jnp.tanh(gi[:, 2 * H:3 * H] + r * gh[:, 2 * H:3 * H])
        return (1.0 - z) * n + z * h

    h1 = jnp.zeros((bb, H), f32)
    h2 = jnp.zeros((bb, H), f32)
    for t in range(seq_len):                     # static, fully unrolled
        r0, r1 = t * bb, (t + 1) * bb
        gh1 = _dot(h1, whh0) + bhh0              # (Bb, 3H)
        gh2 = _dot(h2, whh1) + bhh1
        h1 = gru_step(gi1[r0:r1, :], gh1, h1)
        h2 = gru_step(gi2[r0:r1, :], gh2, h2)
        # All rows are stored (not just history) so the query and history-key
        # projections below fuse into a single M = T*Bb matmul pair.
        pr1_ref[r0:r1, :] = h1
        pr2_ref[r0:r1, :] = h2

    # ---- fused query / history-key projection (ReLU -> Linear) --------------
    qk = (_dot(jnp.maximum(pr1_ref[...], 0.0), wqa_ref[...])
          + _dot(jnp.maximum(pr2_ref[...], 0.0), wqb_ref[...])
          + bq_ref[...])                                         # (T*Bb, EMB)
    query = qk[(seq_len - 1) * bb:seq_len * bb, :]               # (Bb, EMB)

    # ---- memory read from the precomputed drug memory -----------------------
    dm = dm_ref[...]                                             # (V, EMB)
    key_w = _softmax_last(_dot(query, dmt_ref[...]))             # (Bb, V)
    fact1 = _dot(key_w, dm)                                      # (Bb, EMB)

    if has_history:
        # per-patient attention over that patient's own earlier visit keys
        scores = [jnp.sum(query * qk[t * bb:(t + 1) * bb, :],
                          axis=-1, keepdims=True)
                  for t in range(seq_len - 1)]                   # each (Bb, 1)
        m = scores[0]
        for s in scores[1:]:
            m = jnp.maximum(m, s)
        exps = [jnp.exp(s - m) for s in scores]
        denom = exps[0]
        for e in exps[1:]:
            denom = denom + e
        wv = jnp.zeros((bb, V), f32)
        for t in range(seq_len - 1):
            wv = wv + (exps[t] / denom) * hv_ref[t]              # (Bb, V)
        fact2 = _dot(wv, dm)                                     # (Bb, EMB)
    else:
        fact2 = fact1

    # ---- output MLP (concat-free) --------------------------------------------
    hh = (_dot(jnp.maximum(query, 0.0), wo1a_ref[...])
          + _dot(jnp.maximum(fact1, 0.0), wo1b_ref[...])
          + _dot(jnp.maximum(fact2, 0.0), wo1c_ref[...])
          + bo1_ref[...])
    hh = jnp.maximum(hh, 0.0)
    out_ref[...] = _dot(hh, wo2_ref[...]) + bo2_ref[...]


# ----------------------------- host-side glue --------------------------------
def normalize_adj(adj):
    """GCN.normalize(adj + I): row-normalization."""
    mx = adj + jnp.eye(adj.shape[0], dtype=jnp.float32)
    rowsum = jnp.sum(mx, axis=1)
    r_inv = jnp.where(rowsum > 0, 1.0 / rowsum, 0.0)
    return r_inv[:, None] * mx


def compute_drug_memory(params):
    """Patient-invariant drug memory: ehr_gcn() - ddi_gcn() * inter.
    Computed once per checkpoint (hoisted out of the per-call kernel)."""
    def gcn(adj_n, w1, b1, w2, b2):
        h = jnp.maximum(adj_n @ w1 + b1, 0.0)        # dropout(0.3) -> identity (eval)
        return adj_n @ (h @ w2) + b2
    return (gcn(params['ehr_adj_n'], params['ehr_w1'], params['ehr_b1'],
                params['ehr_w2'], params['ehr_b2'])
            - gcn(params['ddi_adj_n'], params['ddi_w1'], params['ddi_b1'],
                  params['ddi_w2'], params['ddi_b2']) * params['inter'][0, 0])


def prepare_fused(params):
    """One-time re-layout of PyTorch-convention params for the fused kernel."""
    dm = compute_drug_memory(params)                 # (V, EMB)
    wq_t = params['wq'].T                            # (2*HID, EMB)
    wo1 = params['wo1']                              # (2*EMB, 3*EMB)  [out, in]
    return dict(
        wih0_t=params['gru0_wih'].T, whh0_t=params['gru0_whh'].T,
        bih0=params['gru0_bih'], bhh0=params['gru0_bhh'],
        wih1_t=params['gru1_wih'].T, whh1_t=params['gru1_whh'].T,
        bih1=params['gru1_bih'], bhh1=params['gru1_bhh'],
        wq_a=wq_t[0:HID, :],                         # applied to o1 half
        wq_b=wq_t[HID:2 * HID, :],                   # applied to o2 half
        bq=params['bq'],
        dm=dm, dm_t=dm.T,
        wo1a_t=wo1[:, 0:EMB].T,                      # applied to query
        wo1b_t=wo1[:, EMB:2 * EMB].T,                # applied to fact1
        wo1c_t=wo1[:, 2 * EMB:3 * EMB].T,            # applied to fact2
        bo1=params['bo1'],
        wo2_t=params['wo2'].T, bo2=params['bo2'],
    )


def mean_pooled_inputs(params, admissions):
    i1 = jnp.stack([jnp.mean(params['emb0'][jnp.asarray(a[0])], axis=0)
                    for a in admissions])            # (T, EMB), dropout(0.5)->identity
    i2 = jnp.stack([jnp.mean(params['emb1'][jnp.asarray(a[1])], axis=0)
                    for a in admissions])
    return i1, i2


def build_history_values(admissions, voc2):
    t = len(admissions)
    hv = jnp.zeros((max(t - 1, 1), voc2), jnp.float32)
    for idx in range(t - 1):
        hv = hv.at[idx, jnp.asarray(admissions[idx][2])].set(1.0)
    return hv


def _block_time_major(x, bb):
    """(B, T, E) -> (B//bb, T*bb, E): within each batch block, row t*bb + b_local
    is patient (g*bb + b_local) at admission t."""
    b, t, e = x.shape
    g = b // bb
    return x.reshape(g, bb, t, e).transpose(0, 2, 1, 3).reshape(g, t * bb, e)


def gamenet_forward_batched(params, fused, patients, *, b_blk=B_BLK):
    """Batched inference over `patients` (list of admission lists, equal length)."""
    b = len(patients)
    t = len(patients[0])
    assert b % b_blk == 0
    for p in patients:
        # TODO(synk): variable-length admission histories would need padding + masking.
        assert len(p) == t
    has_history = t > 1
    th = max(t - 1, 1)

    pooled = [mean_pooled_inputs(params, p) for p in patients]
    i1 = jnp.stack([p1 for p1, _ in pooled])          # (B, T, EMB)
    i2 = jnp.stack([p2 for _, p2 in pooled])
    x1h = _block_time_major(i1, b_blk)                # (G, T*Bb, EMB)
    x2h = _block_time_major(i2, b_blk)
    hv = jnp.stack([build_history_values(p, VOC[2]) for p in patients],
                   axis=1)                            # (th, B, V)

    args = (x1h, x2h, hv,
            fused['wih0_t'], fused['whh0_t'], fused['bih0'], fused['bhh0'],
            fused['wih1_t'], fused['whh1_t'], fused['bih1'], fused['bhh1'],
            fused['wq_a'], fused['wq_b'], fused['bq'],
            fused['dm'], fused['dm_t'],
            fused['wo1a_t'], fused['wo1b_t'], fused['wo1c_t'], fused['bo1'],
            fused['wo2_t'], fused['bo2'])

    x_spec = pl.BlockSpec((None, t * b_blk, EMB), lambda i: (i, 0, 0))
    hv_spec = pl.BlockSpec((th, b_blk, VOC[2]), lambda i: (0, i, 0))
    in_specs = [x_spec, x_spec, hv_spec] + [_full_spec(a.shape) for a in args[3:]]

    kernel = functools.partial(gamenet_kernel, seq_len=t, bb=b_blk,
                               has_history=has_history)

    # TODO(synk): training branch (batch_neg DDI regularizer) not implemented; eval path only.
    return pl.pallas_call(
        kernel,
        out_shape=jax.ShapeDtypeStruct((b, VOC[2]), jnp.float32),
        grid=(b // b_blk,),
        in_specs=in_specs,
        out_specs=pl.BlockSpec((b_blk, VOC[2]), lambda i: (i, 0)),
        scratch_shapes=[pltpu.VMEM((t * b_blk, HID), jnp.float32),   # o1 per step
                        pltpu.VMEM((t * b_blk, HID), jnp.float32)],  # o2 per step
        compiler_params=pltpu.CompilerParams(
            dimension_semantics=("parallel",)),       # shards batch blocks across TCs (v7x)
    )(*args)


# ----------------------------- pure-JAX reference ---------------------------
def _gru_ref(x_seq, wih, whh, bih, bhh):
    hidden = whh.shape[1]
    h = jnp.zeros((1, hidden), jnp.float32)
    outs = []
    for t in range(x_seq.shape[0]):
        x_t = x_seq[t:t + 1]
        gi = x_t @ wih.T + bih
        gh = h @ whh.T + bhh
        i_r, i_z, i_n = gi[:, :hidden], gi[:, hidden:2 * hidden], gi[:, 2 * hidden:]
        h_r, h_z, h_n = gh[:, :hidden], gh[:, hidden:2 * hidden], gh[:, 2 * hidden:]
        r = jax.nn.sigmoid(i_r + h_r)
        z = jax.nn.sigmoid(i_z + h_z)
        n = jnp.tanh(i_n + r * h_n)
        h = (1.0 - z) * n + z * h
        outs.append(h)
    return jnp.concatenate(outs, axis=0)


def gamenet_ref(params, admissions):
    t = len(admissions)
    i1, i2 = mean_pooled_inputs(params, admissions)
    o1 = _gru_ref(i1, params['gru0_wih'], params['gru0_whh'],
                  params['gru0_bih'], params['gru0_bhh'])
    o2 = _gru_ref(i2, params['gru1_wih'], params['gru1_whh'],
                  params['gru1_bih'], params['gru1_bhh'])
    pr = jnp.concatenate([o1, o2], axis=-1)
    queries = jnp.maximum(pr, 0.0) @ params['wq'].T + params['bq']
    query = queries[-1:]

    dm = compute_drug_memory(params)

    key_w = jax.nn.softmax(query @ dm.T, axis=-1)
    fact1 = key_w @ dm
    if t > 1:
        history_keys = queries[:-1]
        hv = build_history_values(admissions, VOC[2])
        visit_w = jax.nn.softmax(query @ history_keys.T, axis=-1)
        fact2 = (visit_w @ hv) @ dm
    else:
        fact2 = fact1
    x = jnp.maximum(jnp.concatenate([query, fact1, fact2], axis=-1), 0.0)
    h = jnp.maximum(x @ params['wo1'].T + params['bo1'], 0.0)
    return h @ params['wo2'].T + params['bo2']


# ------------------------------- setup / main --------------------------------
def init_params(key):
    ks = jax.random.split(key, 32)
    u = lambda k, shape, a: jax.random.uniform(k, shape, jnp.float32, -a, a)
    s_gru = 1.0 / jnp.sqrt(HID)

    ehr_adj = (jax.random.uniform(ks[0], (VOC[2], VOC[2])) < 0.08).astype(jnp.float32)
    ddi_adj = (jax.random.uniform(ks[1], (VOC[2], VOC[2])) < 0.05).astype(jnp.float32)

    params = dict(
        emb0=u(ks[2], (VOC[0], EMB), 0.1),
        emb1=u(ks[3], (VOC[1], EMB), 0.1),
        inter=u(ks[4], (1, 1), 0.1),
        # GRU encoders (PyTorch weight layout: [3H, in], [3H, H], biases [3H])
        gru0_wih=u(ks[5], (3 * HID, EMB), s_gru),
        gru0_whh=u(ks[6], (3 * HID, HID), s_gru),
        gru0_bih=u(ks[7], (1, 3 * HID), s_gru),
        gru0_bhh=u(ks[8], (1, 3 * HID), s_gru),
        gru1_wih=u(ks[9], (3 * HID, EMB), s_gru),
        gru1_whh=u(ks[10], (3 * HID, HID), s_gru),
        gru1_bih=u(ks[11], (1, 3 * HID), s_gru),
        gru1_bhh=u(ks[12], (1, 3 * HID), s_gru),
        # query: Linear(4*emb -> emb)
        wq=u(ks[13], (EMB, 4 * EMB), 0.06),
        bq=u(ks[14], (1, EMB), 0.06),
        # GCNs (GraphConvolution weights [in, out], bias [out])
        ehr_adj_n=normalize_adj(ehr_adj),
        ddi_adj_n=normalize_adj(ddi_adj),
        ehr_w1=u(ks[15], (VOC[2], EMB), 0.08),
        ehr_b1=u(ks[16], (1, EMB), 0.08),
        ehr_w2=u(ks[17], (EMB, EMB), 0.08),
        ehr_b2=u(ks[18], (1, EMB), 0.08),
        ddi_w1=u(ks[19], (VOC[2], EMB), 0.08),
        ddi_b1=u(ks[20], (1, EMB), 0.08),
        ddi_w2=u(ks[21], (EMB, EMB), 0.08),
        ddi_b2=u(ks[22], (1, EMB), 0.08),
        # output MLP: Linear(3*emb -> 2*emb), Linear(2*emb -> voc2)
        wo1=u(ks[23], (2 * EMB, 3 * EMB), 0.07),
        bo1=u(ks[24], (1, 2 * EMB), 0.07),
        wo2=u(ks[25], (VOC[2], 2 * EMB), 0.07),
        bo2=u(ks[26], (1, VOC[2]), 0.07),
    )
    return params, ks[27]


def make_admissions(key, t):
    admissions = []
    for _ in range(t):
        kd, kp, km, key = jax.random.split(key, 4)
        d = jax.random.randint(kd, (5,), 0, VOC[0])
        p = jax.random.randint(kp, (4,), 0, VOC[1])
        m = jax.random.randint(km, (6,), 0, VOC[2])
        admissions.append([[int(v) for v in d],
                           [int(v) for v in p],
                           [int(v) for v in m]])
    return admissions


if __name__ == "__main__":
    key = jax.random.PRNGKey(0)
    params, key = init_params(key)

    patients = []
    for _ in range(BATCH):
        key, sub = jax.random.split(key)
        patients.append(make_admissions(sub, T_ADM))

    fused = prepare_fused(params)                 # one-time weight re-layout + drug memory

    out = gamenet_forward_batched(params, fused, patients)
    out = jax.block_until_ready(out)

    ref = jnp.concatenate([gamenet_ref(params, p) for p in patients], axis=0)
    ref = jax.block_until_ready(ref)

    assert out.shape == (BATCH, VOC[2]), out.shape
    assert bool(jnp.all(jnp.isfinite(out)))
    assert bool(jnp.allclose(out, ref, rtol=2e-3, atol=2e-3)), (
        float(jnp.max(jnp.abs(out - ref))))

    print("KERNEL_OK")
</pallas_src>

<mosaic_0001>
module attributes {stable_mosaic.version = 11 : i64} {
  func.func @gamenet_kernel(%arg0: i32, %arg1: memref<1x32x64xf32, #tpu.memory_space<vmem>>, %arg2: memref<1x32x64xf32, #tpu.memory_space<vmem>>, %arg3: memref<3x8x128xf32, #tpu.memory_space<vmem>>, %arg4: memref<64x384xf32, #tpu.memory_space<vmem>>, %arg5: memref<128x384xf32, #tpu.memory_space<vmem>>, %arg6: memref<1x384xf32, #tpu.memory_space<vmem>>, %arg7: memref<1x384xf32, #tpu.memory_space<vmem>>, %arg8: memref<64x384xf32, #tpu.memory_space<vmem>>, %arg9: memref<128x384xf32, #tpu.memory_space<vmem>>, %arg10: memref<1x384xf32, #tpu.memory_space<vmem>>, %arg11: memref<1x384xf32, #tpu.memory_space<vmem>>, %arg12: memref<128x64xf32, #tpu.memory_space<vmem>>, %arg13: memref<128x64xf32, #tpu.memory_space<vmem>>, %arg14: memref<1x64xf32, #tpu.memory_space<vmem>>, %arg15: memref<128x64xf32, #tpu.memory_space<vmem>>, %arg16: memref<64x128xf32, #tpu.memory_space<vmem>>, %arg17: memref<64x128xf32, #tpu.memory_space<vmem>>, %arg18: memref<64x128xf32, #tpu.memory_space<vmem>>, %arg19: memref<64x128xf32, #tpu.memory_space<vmem>>, %arg20: memref<1x128xf32, #tpu.memory_space<vmem>>, %arg21: memref<128x128xf32, #tpu.memory_space<vmem>>, %arg22: memref<1x128xf32, #tpu.memory_space<vmem>>, %arg23: memref<8x128xf32, #tpu.memory_space<vmem>>, %arg24: memref<32x128xf32, #tpu.memory_space<vmem>>, %arg25: memref<32x128xf32, #tpu.memory_space<vmem>>) attributes {dimension_semantics = [#tpu.dimension_semantics<parallel>], iteration_bounds = array<i64: 2>, scalar_prefetch = 0 : i64, scratch_operands = 2 : i64, tpu.core_type = #tpu.core_type<tc>, window_params = [{transform_indices = @transform_0, window_bounds = array<i64: 1, 32, 64>}, {transform_indices = @transform_1, window_bounds = array<i64: 1, 32, 64>}, {transform_indices = @transform_2, window_bounds = array<i64: 3, 8, 128>}, {pipeline_mode = #tpu.pipeline_mode<synchronous>, transform_indices = @transform_3, window_bounds = array<i64: 64, 384>}, {pipeline_mode = #tpu.pipeline_mode<synchronous>, transform_indices = @transform_4, window_bounds = array<i64: 128, 384>}, {pipeline_mode = #tpu.pipeline_mode<synchronous>, transform_indices = @transform_5, window_bounds = array<i64: 1, 384>}, {pipeline_mode = #tpu.pipeline_mode<synchronous>, transform_indices = @transform_6, window_bounds = array<i64: 1, 384>}, {pipeline_mode = #tpu.pipeline_mode<synchronous>, transform_indices = @transform_7, window_bounds = array<i64: 64, 384>}, {pipeline_mode = #tpu.pipeline_mode<synchronous>, transform_indices = @transform_8, window_bounds = array<i64: 128, 384>}, {pipeline_mode = #tpu.pipeline_mode<synchronous>, transform_indices = @transform_9, window_bounds = array<i64: 1, 384>}, {pipeline_mode = #tpu.pipeline_mode<synchronous>, transform_indices = @transform_10, window_bounds = array<i64: 1, 384>}, {pipeline_mode = #tpu.pipeline_mode<synchronous>, transform_indices = @transform_11, window_bounds = array<i64: 128, 64>}, {pipeline_mode = #tpu.pipeline_mode<synchronous>, transform_indices = @transform_12, window_bounds = array<i64: 128, 64>}, {pipeline_mode = #tpu.pipeline_mode<synchronous>, transform_indices = @transform_13, window_bounds = array<i64: 1, 64>}, {pipeline_mode = #tpu.pipeline_mode<synchronous>, transform_indices = @transform_14, window_bounds = array<i64: 128, 64>}, {pipeline_mode = #tpu.pipeline_mode<synchronous>, transform_indices = @transform_15, window_bounds = array<i64: 64, 128>}, {pipeline_mode = #tpu.pipeline_mode<synchronous>, transform_indices = @transform_16, window_bounds = array<i64: 64, 128>}, {pipeline_mode = #tpu.pipeline_mode<synchronous>, transform_indices = @transform_17, window_bounds = array<i64: 64, 128>}, {pipeline_mode = #tpu.pipeline_mode<synchronous>, transform_indices = @transform_18, window_bounds = array<i64: 64, 128>}, {pipeline_mode = #tpu.pipeline_mode<synchronous>, transform_indices = @transform_19, window_bounds = array<i64: 1, 128>}, {pipeline_mode = #tpu.pipeline_mode<synchronous>, transform_indices = @transform_20, window_bounds = array<i64: 128, 128>}, {pipeline_mode = #tpu.pipeline_mode<synchronous>, transform_indices = @transform_21, window_bounds = array<i64: 1, 128>}, {transform_indices = @transform_22, window_bounds = array<i64: 8, 128>}]} {
    %c0 = arith.constant 0 : index
    %c0_0 = arith.constant 0 : index
    %c0_1 = arith.constant 0 : index
    %0 = vector.load %arg1[%c0, %c0_0, %c0_1] : memref<1x32x64xf32, #tpu.memory_space<vmem>>, vector<1x32x64xf32>
    %1 = vector.shape_cast %0 : vector<1x32x64xf32> to vector<32x64xf32>
    %c0_2 = arith.constant 0 : index
    %c0_3 = arith.constant 0 : index
    %2 = vector.load %arg4[%c0_2, %c0_3] : memref<64x384xf32, #tpu.memory_space<vmem>>, vector<64x384xf32>
    %cst = arith.constant dense<0.000000e+00> : vector<32x384xf32>
    %3 = tpu.matmul %1, %2, %cst {dimension_numbers = #tpu.dot_dimension_numbers<[1], [0], [0], [1], [0, 0, 1, 1], [], []>} : vector<32x64xf32>, vector<64x384xf32>, vector<32x384xf32> -> vector<32x384xf32>
    %c0_4 = arith.constant 0 : index
    %c0_5 = arith.constant 0 : index
    %4 = vector.load %arg6[%c0_4, %c0_5] : memref<1x384xf32, #tpu.memory_space<vmem>>, vector<1x384xf32>
    %5 = vector.broadcast %4 : vector<1x384xf32> to vector<32x384xf32>
    %6 = arith.addf %3, %5 : vector<32x384xf32>
    %c0_6 = arith.constant 0 : index
    %c0_7 = arith.constant 0 : index
    %c0_8 = arith.constant 0 : index
    %7 = vector.load %arg2[%c0_6, %c0_7, %c0_8] : memref<1x32x64xf32, #tpu.memory_space<vmem>>, vector<1x32x64xf32>
    %8 = vector.shape_cast %7 : vector<1x32x64xf32> to vector<32x64xf32>
    %c0_9 = arith.constant 0 : index
    %c0_10 = arith.constant 0 : index
    %9 = vector.load %arg8[%c0_9, %c0_10] : memref<64x384xf32, #tpu.memory_space<vmem>>, vector<64x384xf32>
    %cst_11 = arith.constant dense<0.000000e+00> : vector<32x384xf32>
    %10 = tpu.matmul %8, %9, %cst_11 {dimension_numbers = #tpu.dot_dimension_numbers<[1], [0], [0], [1], [0, 0, 1, 1], [], []>} : vector<32x64xf32>, vector<64x384xf32>, vector<32x384xf32> -> vector<32x384xf32>
    %c0_12 = arith.constant 0 : index
    %c0_13 = arith.constant 0 : index
    %11 = vector.load %arg10[%c0_12, %c0_13] : memref<1x384xf32, #tpu.memory_space<vmem>>, vector<1x384xf32>
    %12 = vector.broadcast %11 : vector<1x384xf32> to vector<32x384xf32>
    %13 = arith.addf %10, %12 : vector<32x384xf32>
    %c0_14 = arith.constant 0 : index
    %c0_15 = arith.constant 0 : index
    %14 = vector.load %arg5[%c0_14, %c0_15] : memref<128x384xf32, #tpu.memory_space<vmem>>, vector<128x384xf32>
    %c0_16 = arith.constant 0 : index
    %c0_17 = arith.constant 0 : index
    %15 = vector.load %arg9[%c0_16, %c0_17] : memref<128x384xf32, #tpu.memory_space<vmem>>, vector<128x384xf32>
    %c0_18 = arith.constant 0 : index
    %c0_19 = arith.constant 0 : index
    %16 = vector.load %arg7[%c0_18, %c0_19] : memref<1x384xf32, #tpu.memory_space<vmem>>, vector<1x384xf32>
    %c0_20 = arith.constant 0 : index
    %c0_21 = arith.constant 0 : index
    %17 = vector.load %arg11[%c0_20, %c0_21] : memref<1x384xf32, #tpu.memory_space<vmem>>, vector<1x384xf32>
    %cst_22 = arith.constant 0.000000e+00 : f32
    %18 = vector.broadcast %cst_22 : f32 to vector<8x128xf32>
    %cst_23 = arith.constant 0.000000e+00 : f32
    %19 = vector.broadcast %cst_23 : f32 to vector<8x128xf32>
    %cst_24 = arith.constant dense<0.000000e+00> : vector<8x384xf32>
    %20 = tpu.matmul %18, %14, %cst_24 {dimension_numbers = #tpu.dot_dimension_numbers<[1], [0], [0], [1], [0, 0, 1, 1], [], []>} : vector<8x128xf32>, vector<128x384xf32>, vector<8x384xf32> -> vector<8x384xf32>
    %21 = vector.broadcast %16 : vector<1x384xf32> to vector<8x384xf32>
    %22 = arith.addf %20, %21 : vector<8x384xf32>
    %cst_25 = arith.constant dense<0.000000e+00> : vector<8x384xf32>
    %23 = tpu.matmul %19, %15, %cst_25 {dimension_numbers = #tpu.dot_dimension_numbers<[1], [0], [0], [1], [0, 0, 1, 1], [], []>} : vector<8x128xf32>, vector<128x384xf32>, vector<8x384xf32> -> vector<8x384xf32>
    %24 = vector.broadcast %17 : vector<1x384xf32> to vector<8x384xf32>
    %25 = arith.addf %23, %24 : vector<8x384xf32>
    %26 = vector.extract_strided_slice %6 {offsets = [0, 0], sizes = [8, 384], strides = [1, 1]} : vector<32x384xf32> to vector<8x384xf32>
    %27 = vector.extract_strided_slice %26 {offsets = [0, 0], sizes = [8, 128], strides = [1, 1]} : vector<8x384xf32> to vector<8x128xf32>
    %28 = vector.extract_strided_slice %22 {offsets = [0, 0], sizes = [8, 128], strides = [1, 1]} : vector<8x384xf32> to vector<8x128xf32>
    %29 = arith.addf %27, %28 : vector<8x128xf32>
    %30 = arith.negf %29 : vector<8x128xf32>
    %31 = math.exp %30 : vector<8x128xf32>
    %cst_26 = arith.constant 1.000000e+00 : f32
    %32 = vector.broadcast %cst_26 : f32 to vector<8x128xf32>
    %33 = arith.addf %32, %31 : vector<8x128xf32>
    %34 = arith.divf %32, %33 : vector<8x128xf32>
    %35 = vector.extract_strided_slice %26 {offsets = [0, 128], sizes = [8, 128], strides = [1, 1]} : vector<8x384xf32> to vector<8x128xf32>
    %36 = vector.extract_strided_slice %22 {offsets = [0, 128], sizes = [8, 128], strides = [1, 1]} : vector<8x384xf32> to vector<8x128xf32>
    %37 = arith.addf %35, %36 : vector<8x128xf32>
    %38 = arith.negf %37 : vector<8x128xf32>
    %39 = math.exp %38 : vector<8x128xf32>
    %cst_27 = arith.constant 1.000000e+00 : f32
    %40 = vector.broadcast %cst_27 : f32 to vector<8x128xf32>
    %41 = arith.addf %40, %39 : vector<8x128xf32>
    %42 = arith.divf %40, %41 : vector<8x128xf32>
    %43 = vector.extract_strided_slice %26 {offsets = [0, 256], sizes = [8, 128], strides = [1, 1]} : vector<8x384xf32> to vector<8x128xf32>
    %44 = vector.extract_strided_slice %22 {offsets = [0, 256], sizes = [8, 128], strides = [1, 1]} : vector<8x384xf32> to vector<8x128xf32>
    %45 = arith.mulf %34, %44 : vector<8x128xf32>
    %46 = arith.addf %43, %45 : vector<8x128xf32>
    %47 = math.tanh %46 : vector<8x128xf32>
    %cst_28 = arith.constant 1.000000e+00 : f32
    %48 = vector.broadcast %cst_28 : f32 to vector<8x128xf32>
    %49 = arith.subf %48, %42 : vector<8x128xf32>
    %50 = arith.mulf %49, %47 : vector<8x128xf32>
    %51 = arith.mulf %42, %18 : vector<8x128xf32>
    %52 = arith.addf %50, %51 : vector<8x128xf32>
    %53 = vector.extract_strided_slice %13 {offsets = [0, 0], sizes = [8, 384], strides = [1, 1]} : vector<32x384xf32> to vector<8x384xf32>
    %54 = vector.extract_strided_slice %53 {offsets = [0, 0], sizes = [8, 128], strides = [1, 1]} : vector<8x384xf32> to vector<8x128xf32>
    %55 = vector.extract_strided_slice %25 {offsets = [0, 0], sizes = [8, 128], strides = [1, 1]} : vector<8x384xf32> to vector<8x128xf32>
    %56 = arith.addf %54, %55 : vector<8x128xf32>
    %57 = arith.negf %56 : vector<8x128xf32>
    %58 = math.exp %57 : vector<8x128xf32>
    %cst_29 = arith.constant 1.000000e+00 : f32
    %59 = vector.broadcast %cst_29 : f32 to vector<8x128xf32>
    %60 = arith.addf %59, %58 : vector<8x128xf32>
    %61 = arith.divf %59, %60 : vector<8x128xf32>
    %62 = vector.extract_strided_slice %53 {offsets = [0, 128], sizes = [8, 128], strides = [1, 1]} : vector<8x384xf32> to vector<8x128xf32>
    %63 = vector.extract_strided_slice %25 {offsets = [0, 128], sizes = [8, 128], strides = [1, 1]} : vector<8x384xf32> to vector<8x128xf32>
    %64 = arith.addf %62, %63 : vector<8x128xf32>
    %65 = arith.negf %64 : vector<8x128xf32>
    %66 = math.exp %65 : vector<8x128xf32>
    %cst_30 = arith.constant 1.000000e+00 : f32
    %67 = vector.broadcast %cst_30 : f32 to vector<8x128xf32>
    %68 = arith.addf %67, %66 : vector<8x128xf32>
    %69 = arith.divf %67, %68 : vector<8x128xf32>
    %70 = vector.extract_strided_slice %53 {offsets = [0, 256], sizes = [8, 128], strides = [1, 1]} : vector<8x384xf32> to vector<8x128xf32>
    %71 = vector.extract_strided_slice %25 {offsets = [0, 256], sizes = [8, 128], strides = [1, 1]} : vector<8x384xf32> to vector<8x128xf32>
    %72 = arith.mulf %61, %71 : vector<8x128xf32>
    %73 = arith.addf %70, %72 : vector<8x128xf32>
    %74 = math.tanh %73 : vector<8x128xf32>
    %cst_31 = arith.constant 1.000000e+00 : f32
    %75 = vector.broadcast %cst_31 : f32 to vector<8x128xf32>
    %76 = arith.subf %75, %69 : vector<8x128xf32>
    %77 = arith.mulf %76, %74 : vector<8x128xf32>
    %78 = arith.mulf %69, %19 : vector<8x128xf32>
    %79 = arith.addf %77, %78 : vector<8x128xf32>
    %c0_32 = arith.constant 0 : index
    %c0_33 = arith.constant 0 : index
    %80 = vector.load %arg24[%c0_32, %c0_33] : memref<32x128xf32, #tpu.memory_space<vmem>>, vector<8x128xf32>
    tpu.vector_store %arg24[%c0_32, %c0_33], %52 {strides = array<i32>} : memref<32x128xf32, #tpu.memory_space<vmem>>, vector<8x128xf32>,
    %c0_34 = arith.constant 0 : index
    %c0_35 = arith.constant 0 : index
    %81 = vector.load %arg25[%c0_34, %c0_35] : memref<32x128xf32, #tpu.memory_space<vmem>>, vector<8x128xf32>
    tpu.vector_store %arg25[%c0_34, %c0_35], %79 {strides = array<i32>} : memref<32x128xf32, #tpu.memory_space<vmem>>, vector<8x128xf32>,
    %cst_36 = arith.constant dense<0.000000e+00> : vector<8x384xf32>
    %82 = tpu.matmul %52, %14, %cst_36 {dimension_numbers = #tpu.dot_dimension_numbers<[1], [0], [0], [1], [0, 0, 1, 1], [], []>} : vector<8x128xf32>, vector<128x384xf32>, vector<8x384xf32> -> vector<8x384xf32>
    %83 = vector.broadcast %16 : vector<1x384xf32> to vector<8x384xf32>
    %84 = arith.addf %82, %83 : vector<8x384xf32>
    %cst_37 = arith.constant dense<0.000000e+00> : vector<8x384xf32>
    %85 = tpu.matmul %79, %15, %cst_37 {dimension_numbers = #tpu.dot_dimension_numbers<[1], [0], [0], [1], [0, 0, 1, 1], [], []>} : vector<8x128xf32>, vector<128x384xf32>, vector<8x384xf32> -> vector<8x384xf32>
    %86 = vector.broadcast %17 : vector<1x384xf32> to vector<8x384xf32>
    %87 = arith.addf %85, %86 : vector<8x384xf32>
    %88 = vector.extract_strided_slice %6 {offsets = [8, 0], sizes = [8, 384], strides = [1, 1]} : vector<32x384xf32> to vector<8x384xf32>
    %89 = vector.extract_strided_slice %88 {offsets = [0, 0], sizes = [8, 128], strides = [1, 1]} : vector<8x384xf32> to vector<8x128xf32>
    %90 = vector.extract_strided_slice %84 {offsets = [0, 0], sizes = [8, 128], strides = [1, 1]} : vector<8x384xf32> to vector<8x128xf32>
    %91 = arith.addf %89, %90 : vector<8x128xf32>
    %92 = arith.negf %91 : vector<8x128xf32>
    %93 = math.exp %92 : vector<8x128xf32>
    %cst_38 = arith.constant 1.000000e+00 : f32
    %94 = vector.broadcast %cst_38 : f32 to vector<8x128xf32>
    %95 = arith.addf %94, %93 : vector<8x128xf32>
    %96 = arith.divf %94, %95 : vector<8x128xf32>
    %97 = vector.extract_strided_slice %88 {offsets = [0, 128], sizes = [8, 128], strides = [1, 1]} : vector<8x384xf32> to vector<8x128xf32>
    %98 = vector.extract_strided_slice %84 {offsets = [0, 128], sizes = [8, 128], strides = [1, 1]} : vector<8x384xf32> to vector<8x128xf32>
    %99 = arith.addf %97, %98 : vector<8x128xf32>
    %100 = arith.negf %99 : vector<8x128xf32>
    %101 = math.exp %100 : vector<8x128xf32>
    %cst_39 = arith.constant 1.000000e+00 : f32
    %102 = vector.broadcast %cst_39 : f32 to vector<8x128xf32>
    %103 = arith.addf %102, %101 : vector<8x128xf32>
    %104 = arith.divf %102, %103 : vector<8x128xf32>
    %105 = vector.extract_strided_slice %88 {offsets = [0, 256], sizes = [8, 128], strides = [1, 1]} : vector<8x384xf32> to vector<8x128xf32>
    %106 = vector.extract_strided_slice %84 {offsets = [0, 256], sizes = [8, 128], strides = [1, 1]} : vector<8x384xf32> to vector<8x128xf32>
    %107 = arith.mulf %96, %106 : vector<8x128xf32>
    %108 = arith.addf %105, %107 : vector<8x128xf32>
    %109 = math.tanh %108 : vector<8x128xf32>
    %cst_40 = arith.constant 1.000000e+00 : f32
    %110 = vector.broadcast %cst_40 : f32 to vector<8x128xf32>
    %111 = arith.subf %110, %104 : vector<8x128xf32>
    %112 = arith.mulf %111, %109 : vector<8x128xf32>
    %113 = arith.mulf %104, %52 : vector<8x128xf32>
    %114 = arith.addf %112, %113 : vector<8x128xf32>
    %115 = vector.extract_strided_slice %13 {offsets = [8, 0], sizes = [8, 384], strides = [1, 1]} : vector<32x384xf32> to vector<8x384xf32>
    %116 = vector.extract_strided_slice %115 {offsets = [0, 0], sizes = [8, 128], strides = [1, 1]} : vector<8x384xf32> to vector<8x128xf32>
    %117 = vector.extract_strided_slice %87 {offsets = [0, 0], sizes = [8, 128], strides = [1, 1]} : vector<8x384xf32> to vector<8x128xf32>
    %118 = arith.addf %116, %117 : vector<8x128xf32>
    %119 = arith.negf %118 : vector<8x128xf32>
    %120 = math.exp %119 : vector<8x128xf32>
    %cst_41 = arith.constant 1.000000e+00 : f32
    %121 = vector.broadcast %cst_41 : f32 to vector<8x128xf32>
    %122 = arith.addf %121, %120 : vector<8x128xf32>
    %123 = arith.divf %121, %122 : vector<8x128xf32>
    %124 = vector.extract_strided_slice %115 {offsets = [0, 128], sizes = [8, 128], strides = [1, 1]} : vector<8x384xf32> to vector<8x128xf32>
    %125 = vector.extract_strided_slice %87 {offsets = [0, 128], sizes = [8, 128], strides = [1, 1]} : vector<8x384xf32> to vector<8x128xf32>
    %126 = arith.addf %124, %125 : vector<8x128xf32>
    %127 = arith.negf %126 : vector<8x128xf32>
    %128 = math.exp %127 : vector<8x128xf32>
    %cst_42 = arith.constant 1.000000e+00 : f32
    %129 = vector.broadcast %cst_42 : f32 to vector<8x128xf32>
    %130 = arith.addf %129, %128 : vector<8x128xf32>
    %131 = arith.divf %129, %130 : vector<8x128xf32>
    %132 = vector.extract_strided_slice %115 {offsets = [0, 256], sizes = [8, 128], strides = [1, 1]} : vector<8x384xf32> to vector<8x128xf32>
    %133 = vector.extract_strided_slice %87 {offsets = [0, 256], sizes = [8, 128], strides = [1, 1]} : vector<8x384xf32> to vector<8x128xf32>
    %134 = arith.mulf %123, %133 : vector<8x128xf32>
    %135 = arith.addf %132, %134 : vector<8x128xf32>
    %136 = math.tanh %135 : vector<8x128xf32>
    %cst_43 = arith.constant 1.000000e+00 : f32
    %137 = vector.broadcast %cst_43 : f32 to vector<8x128xf32>
    %138 = arith.subf %137, %131 : vector<8x128xf32>
    %139 = arith.mulf %138, %136 : vector<8x128xf32>
    %140 = arith.mulf %131, %79 : vector<8x128xf32>
    %141 = arith.addf %139, %140 : vector<8x128xf32>
    %c8 = arith.constant 8 : index
    %c0_44 = arith.constant 0 : index
    %142 = vector.load %arg24[%c8, %c0_44] : memref<32x128xf32, #tpu.memory_space<vmem>>, vector<8x128xf32>
    tpu.vector_store %arg24[%c8, %c0_44], %114 {strides = array<i32>} : memref<32x128xf32, #tpu.memory_space<vmem>>, vector<8x128xf32>,
    %c8_45 = arith.constant 8 : index
    %c0_46 = arith.constant 0 : index
    %143 = vector.load %arg25[%c8_45, %c0_46] : memref<32x128xf32, #tpu.memory_space<vmem>>, vector<8x128xf32>
    tpu.vector_store %arg25[%c8_45, %c0_46], %141 {strides = array<i32>} : memref<32x128xf32, #tpu.memory_space<vmem>>, vector<8x128xf32>,
    %cst_47 = arith.constant dense<0.000000e+00> : vector<8x384xf32>
    %144 = tpu.matmul %114, %14, %cst_47 {dimension_numbers = #tpu.dot_dimension_numbers<[1], [0], [0], [1], [0, 0, 1, 1], [], []>} : vector<8x128xf32>, vector<128x384xf32>, vector<8x384xf32> -> vector<8x384xf32>
    %145 = vector.broadcast %16 : vector<1x384xf32> to vector<8x384xf32>
    %146 = arith.addf %144, %145 : vector<8x384xf32>
    %cst_48 = arith.constant dense<0.000000e+00> : vector<8x384xf32>
    %147 = tpu.matmul %141, %15, %cst_48 {dimension_numbers = #tpu.dot_dimension_numbers<[1], [0], [0], [1], [0, 0, 1, 1], [], []>} : vector<8x128xf32>, vector<128x384xf32>, vector<8x384xf32> -> vector<8x384xf32>
    %148 = vector.broadcast %17 : vector<1x384xf32> to vector<8x384xf32>
    %149 = arith.addf %147, %148 : vector<8x384xf32>
    %150 = vector.extract_strided_slice %6 {offsets = [16, 0], sizes = [8, 384], strides = [1, 1]} : vector<32x384xf32> to vector<8x384xf32>
    %151 = vector.extract_strided_slice %150 {offsets = [0, 0], sizes = [8, 128], strides = [1, 1]} : vector<8x384xf32> to vector<8x128xf32>
    %152 = vector.extract_strided_slice %146 {offsets = [0, 0], sizes = [8, 128], strides = [1, 1]} : vector<8x384xf32> to vector<8x128xf32>
    %153 = arith.addf %151, %152 : vector<8x128xf32>
    %154 = arith.negf %153 : vector<8x128xf32>
    %155 = math.exp %154 : vector<8x128xf32>
    %cst_49 = arith.constant 1.000000e+00 : f32
    %156 = vector.broadcast %cst_49 : f32 to vector<8x128xf32>
    %157 = arith.addf %156, %155 : vector<8x128xf32>
    %158 = arith.divf %156, %157 : vector<8x128xf32>
    %159 = vector.extract_strided_slice %150 {offsets = [0, 128], sizes = [8, 128], strides = [1, 1]} : vector<8x384xf32> to vector<8x128xf32>
    %160 = vector.extract_strided_slice %146 {offsets = [0, 128], sizes = [8, 128], strides = [1, 1]} : vector<8x384xf32> to vector<8x128xf32>
    %161 = arith.addf %159, %160 : vector<8x128xf32>
    %162 = arith.negf %161 : vector<8x128xf32>
    %163 = math.exp %162 : vector<8x128xf32>
    %cst_50 = arith.constant 1.000000e+00 : f32
    %164 = vector.broadcast %cst_50 : f32 to vector<8x128xf32>
    %165 = arith.addf %164, %163 : vector<8x128xf32>
    %166 = arith.divf %164, %165 : vector<8x128xf32>
    %167 = vector.extract_strided_slice %150 {offsets = [0, 256], sizes = [8, 128], strides = [1, 1]} : vector<8x384xf32> to vector<8x128xf32>
    %168 = vector.extract_strided_slice %146 {offsets = [0, 256], sizes = [8, 128], strides = [1, 1]} : vector<8x384xf32> to vector<8x128xf32>
    %169 = arith.mulf %158, %168 : vector<8x128xf32>
    %170 = arith.addf %167, %169 : vector<8x128xf32>
    %171 = math.tanh %170 : vector<8x128xf32>
    %cst_51 = arith.constant 1.000000e+00 : f32
    %172 = vector.broadcast %cst_51 : f32 to vector<8x128xf32>
    %173 = arith.subf %172, %166 : vector<8x128xf32>
    %174 = arith.mulf %173, %171 : vector<8x128xf32>
    %175 = arith.mulf %166, %114 : vector<8x128xf32>
    %176 = arith.addf %174, %175 : vector<8x128xf32>
    %177 = vector.extract_strided_slice %13 {offsets = [16, 0], sizes = [8, 384], strides = [1, 1]} : vector<32x384xf32> to vector<8x384xf32>
    %178 = vector.extract_strided_slice %177 {offsets = [0, 0], sizes = [8, 128], strides = [1, 1]} : vector<8x384xf32> to vector<8x128xf32>
    %179 = vector.extract_strided_slice %149 {offsets = [0, 0], sizes = [8, 128], strides = [1, 1]} : vector<8x384xf32> to vector<8x128xf32>
    %180 = arith.addf %178, %179 : vector<8x128xf32>
    %181 = arith.negf %180 : vector<8x128xf32>
    %182 = math.exp %181 : vector<8x128xf32>
    %cst_52 = arith.constant 1.000000e+00 : f32
    %183 = vector.broadcast %cst_52 : f32 to vector<8x128xf32>
    %184 = arith.addf %183, %182 : vector<8x128xf32>
    %185 = arith.divf %183, %184 : vector<8x128xf32>
    %186 = vector.extract_strided_slice %177 {offsets = [0, 128], sizes = [8, 128], strides = [1, 1]} : vector<8x384xf32> to vector<8x128xf32>
    %187 = vector.extract_strided_slice %149 {offsets = [0, 128], sizes = [8, 128], strides = [1, 1]} : vector<8x384xf32> to vector<8x128xf32>
    %188 = arith.addf %186, %187 : vector<8x128xf32>
    %189 = arith.negf %188 : vector<8x128xf32>
    %190 = math.exp %189 : vector<8x128xf32>
    %cst_53 = arith.constant 1.000000e+00 : f32
    %191 = vector.broadcast %cst_53 : f32 to vector<8x128xf32>
    %192 = arith.addf %191, %190 : vector<8x128xf32>
    %193 = arith.divf %191, %192 : vector<8x128xf32>
    %194 = vector.extract_strided_slice %177 {offsets = [0, 256], sizes = [8, 128], strides = [1, 1]} : vector<8x384xf32> to vector<8x128xf32>
    %195 = vector.extract_strided_slice %149 {offsets = [0, 256], sizes = [8, 128], strides = [1, 1]} : vector<8x384xf32> to vector<8x128xf32>
    %196 = arith.mulf %185, %195 : vector<8x128xf32>
    %197 = arith.addf %194, %196 : vector<8x128xf32>
    %198 = math.tanh %197 : vector<8x128xf32>
    %cst_54 = arith.constant 1.000000e+00 : f32
    %199 = vector.broadcast %cst_54 : f32 to vector<8x128xf32>
    %200 = arith.subf %199, %193 : vector<8x128xf32>
    %201 = arith.mulf %200, %198 : vector<8x128xf32>
    %202 = arith.mulf %193, %141 : vector<8x128xf32>
    %203 = arith.addf %201, %202 : vector<8x128xf32>
    %c16 = arith.constant 16 : index
    %c0_55 = arith.constant 0 : index
    %204 = vector.load %arg24[%c16, %c0_55] : memref<32x128xf32, #tpu.memory_space<vmem>>, vector<8x128xf32>
    tpu.vector_store %arg24[%c16, %c0_55], %176 {strides = array<i32>} : memref<32x128xf32, #tpu.memory_space<vmem>>, vector<8x128xf32>,
    %c16_56 = arith.constant 16 : index
    %c0_57 = arith.constant 0 : index
    %205 = vector.load %arg25[%c16_56, %c0_57] : memref<32x128xf32, #tpu.memory_space<vmem>>, vector<8x128xf32>
    tpu.vector_store %arg25[%c16_56, %c0_57], %203 {strides = array<i32>} : memref<32x128xf32, #tpu.memory_space<vmem>>, vector<8x128xf32>,
    %cst_58 = arith.constant dense<0.000000e+00> : vector<8x384xf32>
    %206 = tpu.matmul %176, %14, %cst_58 {dimension_numbers = #tpu.dot_dimension_numbers<[1], [0], [0], [1], [0, 0, 1, 1], [], []>} : vector<8x128xf32>, vector<128x384xf32>, vector<8x384xf32> -> vector<8x384xf32>
    %207 = vector.broadcast %16 : vector<1x384xf32> to vector<8x384xf32>
    %208 = arith.addf %206, %207 : vector<8x384xf32>
    %cst_59 = arith.constant dense<0.000000e+00> : vector<8x384xf32>
    %209 = tpu.matmul %203, %15, %cst_59 {dimension_numbers = #tpu.dot_dimension_numbers<[1], [0], [0], [1], [0, 0, 1, 1], [], []>} : vector<8x128xf32>, vector<128x384xf32>, vector<8x384xf32> -> vector<8x384xf32>
    %210 = vector.broadcast %17 : vector<1x384xf32> to vector<8x384xf32>
    %211 = arith.addf %209, %210 : vector<8x384xf32>
    %212 = vector.extract_strided_slice %6 {offsets = [24, 0], sizes = [8, 384], strides = [1, 1]} : vector<32x384xf32> to vector<8x384xf32>
    %213 = vector.extract_strided_slice %212 {offsets = [0, 0], sizes = [8, 128], strides = [1, 1]} : vector<8x384xf32> to vector<8x128xf32>
    %214 = vector.extract_strided_slice %208 {offsets = [0, 0], sizes = [8, 128], strides = [1, 1]} : vector<8x384xf32> to vector<8x128xf32>
    %215 = arith.addf %213, %214 : vector<8x128xf32>
    %216 = arith.negf %215 : vector<8x128xf32>
    %217 = math.exp %216 : vector<8x128xf32>
    %cst_60 = arith.constant 1.000000e+00 : f32
    %218 = vector.broadcast %cst_60 : f32 to vector<8x128xf32>
    %219 = arith.addf %218, %217 : vector<8x128xf32>
    %220 = arith.divf %218, %219 : vector<8x128xf32>
    %221 = vector.extract_strided_slice %212 {offsets = [0, 128], sizes = [8, 128], strides = [1, 1]} : vector<8x384xf32> to vector<8x128xf32>
    %222 = vector.extract_strided_slice %208 {offsets = [0, 128], sizes = [8, 128], strides = [1, 1]} : vector<8x384xf32> to vector<8x128xf32>
    %223 = arith.addf %221, %222 : vector<8x128xf32>
    %224 = arith.negf %223 : vector<8x128xf32>
    %225 = math.exp %224 : vector<8x128xf32>
    %cst_61 = arith.constant 1.000000e+00 : f32
    %226 = vector.broadcast %cst_61 : f32 to vector<8x128xf32>
    %227 = arith.addf %226, %225 : vector<8x128xf32>
    %228 = arith.divf %226, %227 : vector<8x128xf32>
    %229 = vector.extract_strided_slice %212 {offsets = [0, 256], sizes = [8, 128], strides = [1, 1]} : vector<8x384xf32> to vector<8x128xf32>
    %230 = vector.extract_strided_slice %208 {offsets = [0, 256], sizes = [8, 128], strides = [1, 1]} : vector<8x384xf32> to vector<8x128xf32>
    %231 = arith.mulf %220, %230 : vector<8x128xf32>
    %232 = arith.addf %229, %231 : vector<8x128xf32>
    %233 = math.tanh %232 : vector<8x128xf32>
    %cst_62 = arith.constant 1.000000e+00 : f32
    %234 = vector.broadcast %cst_62 : f32 to vector<8x128xf32>
    %235 = arith.subf %234, %228 : vector<8x128xf32>
    %236 = arith.mulf %235, %233 : vector<8x128xf32>
    %237 = arith.mulf %228, %176 : vector<8x128xf32>
    %238 = arith.addf %236, %237 : vector<8x128xf32>
    %239 = vector.extract_strided_slice %13 {offsets = [24, 0], sizes = [8, 384], strides = [1, 1]} : vector<32x384xf32> to vector<8x384xf32>
    %240 = vector.extract_strided_slice %239 {offsets = [0, 0], sizes = [8, 128], strides = [1, 1]} : vector<8x384xf32> to vector<8x128xf32>
    %241 = vector.extract_strided_slice %211 {offsets = [0, 0], sizes = [8, 128], strides = [1, 1]} : vector<8x384xf32> to vector<8x128xf32>
    %242 = arith.addf %240, %241 : vector<8x128xf32>
    %243 = arith.negf %242 : vector<8x128xf32>
    %244 = math.exp %243 : vector<8x128xf32>
    %cst_63 = arith.constant 1.000000e+00 : f32
    %245 = vector.broadcast %cst_63 : f32 to vector<8x128xf32>
    %246 = arith.addf %245, %244 : vector<8x128xf32>
    %247 = arith.divf %245, %246 : vector<8x128xf32>
    %248 = vector.extract_strided_slice %239 {offsets = [0, 128], sizes = [8, 128], strides = [1, 1]} : vector<8x384xf32> to vector<8x128xf32>
    %249 = vector.extract_strided_slice %211 {offsets = [0, 128], sizes = [8, 128], strides = [1, 1]} : vector<8x384xf32> to vector<8x128xf32>
    %250 = arith.addf %248, %249 : vector<8x128xf32>
    %251 = arith.negf %250 : vector<8x128xf32>
    %252 = math.exp %251 : vector<8x128xf32>
    %cst_64 = arith.constant 1.000000e+00 : f32
    %253 = vector.broadcast %cst_64 : f32 to vector<8x128xf32>
    %254 = arith.addf %253, %252 : vector<8x128xf32>
    %255 = arith.divf %253, %254 : vector<8x128xf32>
    %256 = vector.extract_strided_slice %239 {offsets = [0, 256], sizes = [8, 128], strides = [1, 1]} : vector<8x384xf32> to vector<8x128xf32>
    %257 = vector.extract_strided_slice %211 {offsets = [0, 256], sizes = [8, 128], strides = [1, 1]} : vector<8x384xf32> to vector<8x128xf32>
    %258 = arith.mulf %247, %257 : vector<8x128xf32>
    %259 = arith.addf %256, %258 : vector<8x128xf32>
    %260 = math.tanh %259 : vector<8x128xf32>
    %cst_65 = arith.constant 1.000000e+00 : f32
    %261 = vector.broadcast %cst_65 : f32 to vector<8x128xf32>
    %262 = arith.subf %261, %255 : vector<8x128xf32>
    %263 = arith.mulf %262, %260 : vector<8x128xf32>
    %264 = arith.mulf %255, %203 : vector<8x128xf32>
    %265 = arith.addf %263, %264 : vector<8x128xf32>
    %c24 = arith.constant 24 : index
    %c0_66 = arith.constant 0 : index
    %266 = vector.load %arg24[%c24, %c0_66] : memref<32x128xf32, #tpu.memory_space<vmem>>, vector<8x128xf32>
    tpu.vector_store %arg24[%c24, %c0_66], %238 {strides = array<i32>} : memref<32x128xf32, #tpu.memory_space<vmem>>, vector<8x128xf32>,
    %c24_67 = arith.constant 24 : index
    %c0_68 = arith.constant 0 : index
    %267 = vector.load %arg25[%c24_67, %c0_68] : memref<32x128xf32, #tpu.memory_space<vmem>>, vector<8x128xf32>
    tpu.vector_store %arg25[%c24_67, %c0_68], %265 {strides = array<i32>} : memref<32x128xf32, #tpu.memory_space<vmem>>, vector<8x128xf32>,
    %c0_69 = arith.constant 0 : index
    %c0_70 = arith.constant 0 : index
    %268 = vector.load %arg24[%c0_69, %c0_70] : memref<32x128xf32, #tpu.memory_space<vmem>>, vector<32x128xf32>
    %cst_71 = arith.constant 0.000000e+00 : f32
    %269 = vector.broadcast %cst_71 : f32 to vector<32x128xf32>
    %270 = arith.maximumf %268, %269 : vector<32x128xf32>
    %c0_72 = arith.constant 0 : index
    %c0_73 = arith.constant 0 : index
    %271 = vector.load %arg12[%c0_72, %c0_73] : memref<128x64xf32, #tpu.memory_space<vmem>>, vector<128x64xf32>
    %cst_74 = arith.constant dense<0.000000e+00> : vector<32x64xf32>
    %272 = tpu.matmul %270, %271, %cst_74 {dimension_numbers = #tpu.dot_dimension_numbers<[1], [0], [0], [1], [0, 0, 1, 1], [], []>} : vector<32x128xf32>, vector<128x64xf32>, vector<32x64xf32> -> vector<32x64xf32>
    %c0_75 = arith.constant 0 : index
    %c0_76 = arith.constant 0 : index
    %273 = vector.load %arg25[%c0_75, %c0_76] : memref<32x128xf32, #tpu.memory_space<vmem>>, vector<32x128xf32>
    %cst_77 = arith.constant 0.000000e+00 : f32
    %274 = vector.broadcast %cst_77 : f32 to vector<32x128xf32>
    %275 = arith.maximumf %273, %274 : vector<32x128xf32>
    %c0_78 = arith.constant 0 : index
    %c0_79 = arith.constant 0 : index
    %276 = vector.load %arg13[%c0_78, %c0_79] : memref<128x64xf32, #tpu.memory_space<vmem>>, vector<128x64xf32>
    %cst_80 = arith.constant dense<0.000000e+00> : vector<32x64xf32>
    %277 = tpu.matmul %275, %276, %cst_80 {dimension_numbers = #tpu.dot_dimension_numbers<[1], [0], [0], [1], [0, 0, 1, 1], [], []>} : vector<32x128xf32>, vector<128x64xf32>, vector<32x64xf32> -> vector<32x64xf32>
    %278 = arith.addf %272, %277 : vector<32x64xf32>
    %c0_81 = arith.constant 0 : index
    %c0_82 = arith.constant 0 : index
    %279 = vector.load %arg14[%c0_81, %c0_82] : memref<1x64xf32, #tpu.memory_space<vmem>>, vector<1x64xf32>
    %280 = vector.broadcast %279 : vector<1x64xf32> to vector<32x64xf32>
    %281 = arith.addf %278, %280 : vector<32x64xf32>
    %282 = vector.extract_strided_slice %281 {offsets = [24, 0], sizes = [8, 64], strides = [1, 1]} : vector<32x64xf32> to vector<8x64xf32>
    %c0_83 = arith.constant 0 : index
    %c0_84 = arith.constant 0 : index
    %283 = vector.load %arg15[%c0_83, %c0_84] : memref<128x64xf32, #tpu.memory_space<vmem>>, vector<128x64xf32>
    %c0_85 = arith.constant 0 : index
    %c0_86 = arith.constant 0 : index
    %284 = vector.load %arg16[%c0_85, %c0_86] : memref<64x128xf32, #tpu.memory_space<vmem>>, vector<64x128xf32>
    %cst_87 = arith.constant dense<0.000000e+00> : vector<8x128xf32>
    %285 = tpu.matmul %282, %284, %cst_87 {dimension_numbers = #tpu.dot_dimension_numbers<[1], [0], [0], [1], [0, 0, 1, 1], [], []>} : vector<8x64xf32>, vector<64x128xf32>, vector<8x128xf32> -> vector<8x128xf32>
    %cst_88 = arith.constant dense<0xFF800000> : vector<8xf32>
    %286 = vector.multi_reduction <maximumf>, %285, %cst_88 [1] : vector<8x128xf32> to vector<8xf32>
    %287 = vector.shape_cast %286 : vector<8xf32> to vector<8x1xf32>
    %288 = vector.broadcast %287 : vector<8x1xf32> to vector<8x128xf32>
    %289 = arith.subf %285, %288 : vector<8x128xf32>
    %290 = math.exp %289 : vector<8x128xf32>
    %cst_89 = arith.constant dense<0.000000e+00> : vector<8xf32>
    %291 = vector.multi_reduction <add>, %290, %cst_89 [1] : vector<8x128xf32> to vector<8xf32>
    %292 = vector.shape_cast %291 : vector<8xf32> to vector<8x1xf32>
    %293 = vector.broadcast %292 : vector<8x1xf32> to vector<8x128xf32>
    %294 = arith.divf %290, %293 : vector<8x128xf32>
    %cst_90 = arith.constant dense<0.000000e+00> : vector<8x64xf32>
    %295 = tpu.matmul %294, %283, %cst_90 {dimension_numbers = #tpu.dot_dimension_numbers<[1], [0], [0], [1], [0, 0, 1, 1], [], []>} : vector<8x128xf32>, vector<128x64xf32>, vector<8x64xf32> -> vector<8x64xf32>
    %296 = vector.extract_strided_slice %281 {offsets = [0, 0], sizes = [8, 64], strides = [1, 1]} : vector<32x64xf32> to vector<8x64xf32>
    %297 = arith.mulf %282, %296 : vector<8x64xf32>
    %cst_91 = arith.constant dense<0.000000e+00> : vector<8xf32>
    %298 = vector.multi_reduction <add>, %297, %cst_91 [1] : vector<8x64xf32> to vector<8xf32>
    %299 = vector.shape_cast %298 : vector<8xf32> to vector<8x1xf32>
    %300 = vector.extract_strided_slice %281 {offsets = [8, 0], sizes = [8, 64], strides = [1, 1]} : vector<32x64xf32> to vector<8x64xf32>
    %301 = arith.mulf %282, %300 : vector<8x64xf32>
    %cst_92 = arith.constant dense<0.000000e+00> : vector<8xf32>
    %302 = vector.multi_reduction <add>, %301, %cst_92 [1] : vector<8x64xf32> to vector<8xf32>
    %303 = vector.shape_cast %302 : vector<8xf32> to vector<8x1xf32>
    %304 = vector.extract_strided_slice %281 {offsets = [16, 0], sizes = [8, 64], strides = [1, 1]} : vector<32x64xf32> to vector<8x64xf32>
    %305 = arith.mulf %282, %304 : vector<8x64xf32>
    %cst_93 = arith.constant dense<0.000000e+00> : vector<8xf32>
    %306 = vector.multi_reduction <add>, %305, %cst_93 [1] : vector<8x64xf32> to vector<8xf32>
    %307 = vector.shape_cast %306 : vector<8xf32> to vector<8x1xf32>
    %308 = arith.maximumf %299, %303 : vector<8x1xf32>
    %309 = arith.maximumf %308, %307 : vector<8x1xf32>
    %310 = arith.subf %299, %309 : vector<8x1xf32>
    %311 = math.exp %310 : vector<8x1xf32>
    %312 = arith.subf %303, %309 : vector<8x1xf32>
    %313 = math.exp %312 : vector<8x1xf32>
    %314 = arith.subf %307, %309 : vector<8x1xf32>
    %315 = math.exp %314 : vector<8x1xf32>
    %316 = arith.addf %311, %313 : vector<8x1xf32>
    %317 = arith.addf %316, %315 : vector<8x1xf32>
    %cst_94 = arith.constant 0.000000e+00 : f32
    %318 = vector.broadcast %cst_94 : f32 to vector<8x128xf32>
    %319 = arith.divf %311, %317 : vector<8x1xf32>
    %c0_95 = arith.constant 0 : index
    %c0_96 = arith.constant 0 : index
    %c0_97 = arith.constant 0 : index
    %320 = vector.load %arg3[%c0_95, %c0_96, %c0_97] : memref<3x8x128xf32, #tpu.memory_space<vmem>>, vector<1x8x128xf32>
    %321 = vector.shape_cast %320 : vector<1x8x128xf32> to vector<8x128xf32>
    %322 = vector.broadcast %319 : vector<8x1xf32> to vector<8x128xf32>
    %323 = arith.mulf %322, %321 : vector<8x128xf32>
    %324 = arith.addf %318, %323 : vector<8x128xf32>
    %325 = arith.divf %313, %317 : vector<8x1xf32>
    %c1 = arith.constant 1 : index
    %c0_98 = arith.constant 0 : index
    %c0_99 = arith.constant 0 : index
    %326 = vector.load %arg3[%c1, %c0_98, %c0_99] : memref<3x8x128xf32, #tpu.memory_space<vmem>>, vector<1x8x128xf32>
    %327 = vector.shape_cast %326 : vector<1x8x128xf32> to vector<8x128xf32>
    %328 = vector.broadcast %325 : vector<8x1xf32> to vector<8x128xf32>
    %329 = arith.mulf %328, %327 : vector<8x128xf32>
    %330 = arith.addf %324, %329 : vector<8x128xf32>
    %331 = arith.divf %315, %317 : vector<8x1xf32>
    %c2 = arith.constant 2 : index
    %c0_100 = arith.constant 0 : index
    %c0_101 = arith.constant 0 : index
    %332 = vector.load %arg3[%c2, %c0_100, %c0_101] : memref<3x8x128xf32, #tpu.memory_space<vmem>>, vector<1x8x128xf32>
    %333 = vector.shape_cast %332 : vector<1x8x128xf32> to vector<8x128xf32>
    %334 = vector.broadcast %331 : vector<8x1xf32> to vector<8x128xf32>
    %335 = arith.mulf %334, %333 : vector<8x128xf32>
    %336 = arith.addf %330, %335 : vector<8x128xf32>
    %cst_102 = arith.constant dense<0.000000e+00> : vector<8x64xf32>
    %337 = tpu.matmul %336, %283, %cst_102 {dimension_numbers = #tpu.dot_dimension_numbers<[1], [0], [0], [1], [0, 0, 1, 1], [], []>} : vector<8x128xf32>, vector<128x64xf32>, vector<8x64xf32> -> vector<8x64xf32>
    %cst_103 = arith.constant 0.000000e+00 : f32
    %338 = vector.broadcast %cst_103 : f32 to vector<8x64xf32>
    %339 = arith.maximumf %282, %338 : vector<8x64xf32>
    %c0_104 = arith.constant 0 : index
    %c0_105 = arith.constant 0 : index
    %340 = vector.load %arg17[%c0_104, %c0_105] : memref<64x128xf32, #tpu.memory_space<vmem>>, vector<64x128xf32>
    %cst_106 = arith.constant dense<0.000000e+00> : vector<8x128xf32>
    %341 = tpu.matmul %339, %340, %cst_106 {dimension_numbers = #tpu.dot_dimension_numbers<[1], [0], [0], [1], [0, 0, 1, 1], [], []>} : vector<8x64xf32>, vector<64x128xf32>, vector<8x128xf32> -> vector<8x128xf32>
    %cst_107 = arith.constant 0.000000e+00 : f32
    %342 = vector.broadcast %cst_107 : f32 to vector<8x64xf32>
    %343 = arith.maximumf %295, %342 : vector<8x64xf32>
    %c0_108 = arith.constant 0 : index
    %c0_109 = arith.constant 0 : index
    %344 = vector.load %arg18[%c0_108, %c0_109] : memref<64x128xf32, #tpu.memory_space<vmem>>, vector<64x128xf32>
    %cst_110 = arith.constant dense<0.000000e+00> : vector<8x128xf32>
    %345 = tpu.matmul %343, %344, %cst_110 {dimension_numbers = #tpu.dot_dimension_numbers<[1], [0], [0], [1], [0, 0, 1, 1], [], []>} : vector<8x64xf32>, vector<64x128xf32>, vector<8x128xf32> -> vector<8x128xf32>
    %346 = arith.addf %341, %345 : vector<8x128xf32>
    %cst_111 = arith.constant 0.000000e+00 : f32
    %347 = vector.broadcast %cst_111 : f32 to vector<8x64xf32>
    %348 = arith.maximumf %337, %347 : vector<8x64xf32>
    %c0_112 = arith.constant 0 : index
    %c0_113 = arith.constant 0 : index
    %349 = vector.load %arg19[%c0_112, %c0_113] : memref<64x128xf32, #tpu.memory_space<vmem>>, vector<64x128xf32>
    %cst_114 = arith.constant dense<0.000000e+00> : vector<8x128xf32>
    %350 = tpu.matmul %348, %349, %cst_114 {dimension_numbers = #tpu.dot_dimension_numbers<[1], [0], [0], [1], [0, 0, 1, 1], [], []>} : vector<8x64xf32>, vector<64x128xf32>, vector<8x128xf32> -> vector<8x128xf32>
    %351 = arith.addf %346, %350 : vector<8x128xf32>
    %c0_115 = arith.constant 0 : index
    %c0_116 = arith.constant 0 : index
    %352 = vector.load %arg20[%c0_115, %c0_116] : memref<1x128xf32, #tpu.memory_space<vmem>>, vector<1x128xf32>
    %353 = vector.broadcast %352 : vector<1x128xf32> to vector<8x128xf32>
    %354 = arith.addf %351, %353 : vector<8x128xf32>
    %cst_117 = arith.constant 0.000000e+00 : f32
    %355 = vector.broadcast %cst_117 : f32 to vector<8x128xf32>
    %356 = arith.maximumf %354, %355 : vector<8x128xf32>
    %c0_118 = arith.constant 0 : index
    %c0_119 = arith.constant 0 : index
    %357 = vector.load %arg21[%c0_118, %c0_119] : memref<128x128xf32, #tpu.memory_space<vmem>>, vector<128x128xf32>
    %cst_120 = arith.constant dense<0.000000e+00> : vector<8x128xf32>
    %358 = tpu.matmul %356, %357, %cst_120 {dimension_numbers = #tpu.dot_dimension_numbers<[1], [0], [0], [1], [0, 0, 1, 1], [], []>} : vector<8x128xf32>, vector<128x128xf32>, vector<8x128xf32> -> vector<8x128xf32>
    %c0_121 = arith.constant 0 : index
    %c0_122 = arith.constant 0 : index
    %359 = vector.load %arg22[%c0_121, %c0_122] : memref<1x128xf32, #tpu.memory_space<vmem>>, vector<1x128xf32>
    %360 = vector.broadcast %359 : vector<1x128xf32> to vector<8x128xf32>
    %361 = arith.addf %358, %360 : vector<8x128xf32>
    %c0_123 = arith.constant 0 : index
    %c0_124 = arith.constant 0 : index
    %362 = vector.load %arg23[%c0_123, %c0_124] : memref<8x128xf32, #tpu.memory_space<vmem>>, vector<8x128xf32>
    tpu.vector_store %arg23[%c0_123, %c0_124], %361 {strides = array<i32>} : memref<8x128xf32, #tpu.memory_space<vmem>>, vector<8x128xf32>,
    return
  }
  func.func @transform_0(%arg0: i32) -> (i32, i32, i32) {
    %c0_i32 = arith.constant 0 : i32
    %c0_i32_0 = arith.constant 0 : i32
    %c0_i32_1 = arith.constant 0 : i32
    return %arg0, %c0_i32, %c0_i32_0 : i32, i32, i32
  }
  func.func @transform_1(%arg0: i32) -> (i32, i32, i32) {
    %c0_i32 = arith.constant 0 : i32
    %c0_i32_0 = arith.constant 0 : i32
    %c0_i32_1 = arith.constant 0 : i32
    return %arg0, %c0_i32, %c0_i32_0 : i32, i32, i32
  }
  func.func @transform_2(%arg0: i32) -> (i32, i32, i32) {
    %c0_i32 = arith.constant 0 : i32
    %c0_i32_0 = arith.constant 0 : i32
    %c0_i32_1 = arith.constant 0 : i32
    return %c0_i32, %arg0, %c0_i32_0 : i32, i32, i32
  }
  func.func @transform_3(%arg0: i32) -> (i32, i32) {
    %c0_i32 = arith.constant 0 : i32
    %c0_i32_0 = arith.constant 0 : i32
    %c0_i32_1 = arith.constant 0 : i32
    return %c0_i32, %c0_i32_0 : i32, i32
  }
  func.func @transform_4(%arg0: i32) -> (i32, i32) {
    %c0_i32 = arith.constant 0 : i32
    %c0_i32_0 = arith.constant 0 : i32
    %c0_i32_1 = arith.constant 0 : i32
    return %c0_i32, %c0_i32_0 : i32, i32
  }
  func.func @transform_5(%arg0: i32) -> (i32, i32) {
    %c0_i32 = arith.constant 0 : i32
    %c0_i32_0 = arith.constant 0 : i32
    %c0_i32_1 = arith.constant 0 : i32
    return %c0_i32, %c0_i32_0 : i32, i32
  }
  func.func @transform_6(%arg0: i32) -> (i32, i32) {
    %c0_i32 = arith.constant 0 : i32
    %c0_i32_0 = arith.constant 0 : i32
    %c0_i32_1 = arith.constant 0 : i32
    return %c0_i32, %c0_i32_0 : i32, i32
  }
  func.func @transform_7(%arg0: i32) -> (i32, i32) {
    %c0_i32 = arith.constant 0 : i32
    %c0_i32_0 = arith.constant 0 : i32
    %c0_i32_1 = arith.constant 0 : i32
    return %c0_i32, %c0_i32_0 : i32, i32
  }
  func.func @transform_8(%arg0: i32) -> (i32, i32) {
    %c0_i32 = arith.constant 0 : i32
    %c0_i32_0 = arith.constant 0 : i32
    %c0_i32_1 = arith.constant 0 : i32
    return %c0_i32, %c0_i32_0 : i32, i32
  }
  func.func @transform_9(%arg0: i32) -> (i32, i32) {
    %c0_i32 = arith.constant 0 : i32
    %c0_i32_0 = arith.constant 0 : i32
    %c0_i32_1 = arith.constant 0 : i32
    return %c0_i32, %c0_i32_0 : i32, i32
  }
  func.func @transform_10(%arg0: i32) -> (i32, i32) {
    %c0_i32 = arith.constant 0 : i32
    %c0_i32_0 = arith.constant 0 : i32
    %c0_i32_1 = arith.constant 0 : i32
    return %c0_i32, %c0_i32_0 : i32, i32
  }
  func.func @transform_11(%arg0: i32) -> (i32, i32) {
    %c0_i32 = arith.constant 0 : i32
    %c0_i32_0 = arith.constant 0 : i32
    %c0_i32_1 = arith.constant 0 : i32
    return %c0_i32, %c0_i32_0 : i32, i32
  }
  func.func @transform_12(%arg0: i32) -> (i32, i32) {
    %c0_i32 = arith.constant 0 : i32
    %c0_i32_0 = arith.constant 0 : i32
    %c0_i32_1 = arith.constant 0 : i32
    return %c0_i32, %c0_i32_0 : i32, i32
  }
  func.func @transform_13(%arg0: i32) -> (i32, i32) {
    %c0_i32 = arith.constant 0 : i32
    %c0_i32_0 = arith.constant 0 : i32
    %c0_i32_1 = arith.constant 0 : i32
    return %c0_i32, %c0_i32_0 : i32, i32
  }
  func.func @transform_14(%arg0: i32) -> (i32, i32) {
    %c0_i32 = arith.constant 0 : i32
    %c0_i32_0 = arith.constant 0 : i32
    %c0_i32_1 = arith.constant 0 : i32
    return %c0_i32, %c0_i32_0 : i32, i32
  }
  func.func @transform_15(%arg0: i32) -> (i32, i32) {
    %c0_i32 = arith.constant 0 : i32
    %c0_i32_0 = arith.constant 0 : i32
    %c0_i32_1 = arith.constant 0 : i32
    return %c0_i32, %c0_i32_0 : i32, i32
  }
  func.func @transform_16(%arg0: i32) -> (i32, i32) {
    %c0_i32 = arith.constant 0 : i32
    %c0_i32_0 = arith.constant 0 : i32
    %c0_i32_1 = arith.constant 0 : i32
    return %c0_i32, %c0_i32_0 : i32, i32
  }
  func.func @transform_17(%arg0: i32) -> (i32, i32) {
    %c0_i32 = arith.constant 0 : i32
    %c0_i32_0 = arith.constant 0 : i32
    %c0_i32_1 = arith.constant 0 : i32
    return %c0_i32, %c0_i32_0 : i32, i32
  }
  func.func @transform_18(%arg0: i32) -> (i32, i32) {
    %c0_i32 = arith.constant 0 : i32
    %c0_i32_0 = arith.constant 0 : i32
    %c0_i32_1 = arith.constant 0 : i32
    return %c0_i32, %c0_i32_0 : i32, i32
  }
  func.func @transform_19(%arg0: i32) -> (i32, i32) {
    %c0_i32 = arith.constant 0 : i32
    %c0_i32_0 = arith.constant 0 : i32
    %c0_i32_1 = arith.constant 0 : i32
    return %c0_i32, %c0_i32_0 : i32, i32
  }
  func.func @transform_20(%arg0: i32) -> (i32, i32) {
    %c0_i32 = arith.constant 0 : i32
    %c0_i32_0 = arith.constant 0 : i32
    %c0_i32_1 = arith.constant 0 : i32
    return %c0_i32, %c0_i32_0 : i32, i32
  }
  func.func @transform_21(%arg0: i32) -> (i32, i32) {
    %c0_i32 = arith.constant 0 : i32
    %c0_i32_0 = arith.constant 0 : i32
    %c0_i32_1 = arith.constant 0 : i32
    return %c0_i32, %c0_i32_0 : i32, i32
  }
  func.func @transform_22(%arg0: i32) -> (i32, i32) {
    %c0_i32 = arith.constant 0 : i32
    %c0_i32_0 = arith.constant 0 : i32
    return %arg0, %c0_i32 : i32, i32
  }
}

</mosaic_0001>

<llo_original>
// kernel: tpu_custom_call.1
$region0: #{tpu_custom_call.1}
  #allocation0 [shape = 'u32[]', space=smem, size = 0x4, offset = 0x4, fixed_abs, tag = 'smem constant byte address 0x4 - core index']
  #allocation1 [shape = 'u32[144,128]{1,0:T(1,128)}', space=vmem, size = 0x12000, scoped, tag = 'internal scratch']
  #allocation2 [shape = 'f32[32,128]{1,0:T(8,128)}', space=vmem, size = 0x4000, scoped, tag = 'scratch operand']
  #allocation3 [shape = 'f32[32,128]{1,0:T(8,128)}', space=vmem, size = 0x4000, scoped, tag = 'scratch operand']
  %s0 = inlined_call_operand.hbm [shape: f32[2,32,64], index: 0, kind: input, shape index: {}]
  %s1 = inlined_call_operand.hbm [shape: f32[2,32,64], index: 1, kind: input, shape index: {}]
  %s2 = inlined_call_operand.hbm [shape: f32[3,16,128], index: 2, kind: input, shape index: {}]
  %s3 = inlined_call_operand.vmem [shape: f32[64,384], index: 3, kind: input, shape index: {}]
  %s4 = inlined_call_operand.vmem [shape: f32[128,384], index: 4, kind: input, shape index: {}]
  %s5 = inlined_call_operand.vmem [shape: f32[1,384], index: 5, kind: input, shape index: {}]
  %s6 = inlined_call_operand.hbm [shape: f32[1,384], index: 6, kind: input, shape index: {}]
  %s7 = inlined_call_operand.hbm [shape: f32[64,384], index: 7, kind: input, shape index: {}]
  %s8 = inlined_call_operand.hbm [shape: f32[128,384], index: 8, kind: input, shape index: {}]
  %s9 = inlined_call_operand.hbm [shape: f32[1,384], index: 9, kind: input, shape index: {}]
  %s10 = inlined_call_operand.hbm [shape: f32[1,384], index: 10, kind: input, shape index: {}]
  %s11 = inlined_call_operand.vmem [shape: f32[128,64], index: 11, kind: input, shape index: {}]
  %s12 = inlined_call_operand.vmem [shape: f32[128,64], index: 12, kind: input, shape index: {}]
  %s13 = inlined_call_operand.vmem [shape: f32[1,64], index: 13, kind: input, shape index: {}]
  %s14 = inlined_call_operand.vmem [shape: f32[128,64], index: 14, kind: input, shape index: {}]
  %s15 = inlined_call_operand.hbm [shape: f32[64,128], index: 15, kind: input, shape index: {}]
  %s16 = inlined_call_operand.hbm [shape: f32[64,128], index: 16, kind: input, shape index: {}]
  %s17 = inlined_call_operand.hbm [shape: f32[64,128], index: 17, kind: input, shape index: {}]
  %s18 = inlined_call_operand.vmem [shape: f32[64,128], index: 18, kind: input, shape index: {}]
  %s19 = inlined_call_operand.hbm [shape: f32[1,128], index: 19, kind: input, shape index: {}]
  %s20 = inlined_call_operand.hbm [shape: f32[128,128], index: 20, kind: input, shape index: {}]
  %s21 = inlined_call_operand.vmem [shape: f32[1,128], index: 21, kind: input, shape index: {}]
  %s22 = inlined_call_operand.hbm [shape: f32[16,128], index: 22, kind: output, shape index: {}]
  %s23 = sld [smem:[#allocation0]]
  $region173: #{tpu_custom_call.1} parent=0
    _
  %s25 = ssub.s32 1, %s23
  %s26 = scalar_select 0, %s25, %s23
  $region1: #{tpu_custom_call.1} parent=0
    #allocation4 [shape = 'u8[32768]{0}', space=vmem, size = 0x8000, scoped, tag = 'input window, operand 0']
    #allocation5 [shape = 's32[2]{0}', space=sflag, size = 0x8, scoped, tag = 'scoped memory for tpu_custom_call.1']
    #allocation6 [shape = 's32[2]{0}', space=sflag, size = 0x8, scoped, tag = 'scoped memory for tpu_custom_call.1']
    #allocation7 [shape = 'u8[32768]{0}', space=vmem, size = 0x8000, scoped, tag = 'input window, operand 1']
    #allocation8 [shape = 's32[2]{0}', space=sflag, size = 0x8, scoped, tag = 'scoped memory for tpu_custom_call.1']
    #allocation9 [shape = 'u8[24576]{0}', space=vmem, size = 0x6000, scoped, tag = 'input window, operand 2']
    #allocation10 [shape = 'u8[1536]{0}', space=vmem, size = 0x800, scoped, tag = 'input window, operand 6, single buffered']
    #allocation11 [shape = 's32[1]{0}', space=sflag, size = 0x4, scoped, tag = 'scoped memory for tpu_custom_call.1']
    #allocation12 [shape = 'u8[98304]{0}', space=vmem, size = 0x18000, scoped, tag = 'input window, operand 7, single buffered']
    #allocation13 [shape = 'u8[196608]{0}', space=vmem, size = 0x30000, scoped, tag = 'input window, operand 8, single buffered']
    #allocation14 [shape = 's32[1]{0}', space=sflag, size = 0x4, scoped, tag = 'scoped memory for tpu_custom_call.1']
    #allocation15 [shape = 'u8[1536]{0}', space=vmem, size = 0x800, scoped, tag = 'input window, operand 9, single buffered']
    #allocation16 [shape = 'u8[1536]{0}', space=vmem, size = 0x800, scoped, tag = 'input window, operand 10, single buffered']
    #allocation17 [shape = 's32[1]{0}', space=sflag, size = 0x4, scoped, tag = 'scoped memory for tpu_custom_call.1']
    #allocation18 [shape = 'u8[32768]{0}', space=vmem, size = 0x8000, scoped, tag = 'input window, operand 15, single buffered']
    #allocation19 [shape = 'u8[32768]{0}', space=vmem, size = 0x8000, scoped, tag = 'input window, operand 16, single buffered']
    #allocation20 [shape = 's32[1]{0}', space=sflag, size = 0x4, scoped, tag = 'scoped memory for tpu_custom_call.1']
    #allocation21 [shape = 'u8[32768]{0}', space=vmem, size = 0x8000, scoped, tag = 'input window, operand 17, single buffered']
    #allocation22 [shape = 'u8[512]{0}', space=vmem, size = 0x400, scoped, tag = 'input window, operand 19, single buffered']
    #allocation23 [shape = 's32[1]{0}', space=sflag, size = 0x4, scoped, tag = 'scoped memory for tpu_custom_call.1']
    #allocation24 [shape = 'u8[65536]{0}', space=vmem, size = 0x10000, scoped, tag = 'input window, operand 20, single buffered']
    #allocation25 [shape = 'u8[8192]{0}', space=vmem, size = 0x2000, scoped, tag = 'output window, operand 0']
    %27 = vsyncpa [#allocation5], 0
    %s28 = scalar_lea.sflag [#allocation5], 1
    %29 = vsyncpa %s28, 0
    %30 = vsyncpa [#allocation8], 0
    %s31 = scalar_lea.sflag [#allocation8], 1
    %32 = vsyncpa %s31, 0
    %33 = vsyncpa [#allocation11], 0
    %34 = vsyncpa [#allocation14], 0
    %35 = vsyncpa [#allocation17], 0
    %36 = vsyncpa [#allocation20], 0
    %37 = vsyncpa [#allocation23], 0
    %38 = vsyncpa [#allocation6], 0
    %s39 = scalar_lea.sflag [#allocation6], 1
    %40 = vsyncpa %s39, 0
    loop: start=0, step=1, limit=4
    $region2: #{tpu_custom_call.1} parent=1 // loop_pre_header
      _
    $region3: #{tpu_custom_call.1} parent=1 // loop_header
      %s42 = sphi 0, %s46
      %p43 = scmp.ge.s32.totalorder %s42, 4
      %s52 = sphi 0, %s54
      %s55 = sphi 0, %s52
      %s56 = sphi 0, %s55
      %s72 = sphi 0, %s56
      %s78 = sphi 0, %s80
      %s81 = sphi 0, %s78
      %s82 = sphi 0, %s81
      %s98 = sphi 0, %s82
      %s104 = sphi 0, %s106
      %s107 = sphi 0, %s104
      %s108 = sphi 0, %s107
      %s124 = sphi 0, %s108
      %s128 = sphi 0, %s128
      %s130 = sphi 0, %s128
      %s131 = sphi 0, %s130
      %s145 = sphi 0, %s131
      %s149 = sphi 0, %s149
      %s151 = sphi 0, %s149
      %s152 = sphi 0, %s151
      %s166 = sphi 0, %s152
      %s170 = sphi 0, %s170
      %s172 = sphi 0, %s170
      %s173 = sphi 0, %s172
      %s187 = sphi 0, %s173
      %s191 = sphi 0, %s191
      %s193 = sphi 0, %s191
      %s194 = sphi 0, %s193
      %s208 = sphi 0, %s194
      %s212 = sphi 0, %s212
      %s214 = sphi 0, %s212
      %s215 = sphi 0, %s214
      %s229 = sphi 0, %s215
      %s233 = sphi 0, %s233
      %s235 = sphi 0, %s233
      %s236 = sphi 0, %s235
      %s250 = sphi 0, %s236
      %s254 = sphi 0, %s254
      %s256 = sphi 0, %s254
      %s257 = sphi 0, %s256
      %s271 = sphi 0, %s257
      %s275 = sphi 0, %s275
      %s277 = sphi 0, %s275
      %s278 = sphi 0, %s277
      %s292 = sphi 0, %s278
      %s296 = sphi 0, %s296
      %s298 = sphi 0, %s296
      %s299 = sphi 0, %s298
      %s313 = sphi 0, %s299
      %s317 = sphi 0, %s317
      %s319 = sphi 0, %s317
      %s320 = sphi 0, %s319
      %s334 = sphi 0, %s320
      %s338 = sphi 0, %s338
      %s340 = sphi 0, %s338
      %s341 = sphi 0, %s340
      %s355 = sphi 0, %s341
      %s359 = sphi 0, %s359
      %s361 = sphi 0, %s359
      %s362 = sphi 0, %s361
      %s376 = sphi 0, %s362
      %s380 = sphi 0, %s380
      %s382 = sphi 0, %s380
      %s383 = sphi 0, %s382
      %s397 = sphi 0, %s383
      %s401 = sphi 0, %s401
      %s403 = sphi 0, %s401
      %s404 = sphi 0, %s403
      %s418 = sphi 0, %s404
      %s422 = sphi 0, %s422
      %s424 = sphi 0, %s422
      %s425 = sphi 0, %s424
      %s439 = sphi 0, %s425
      %s443 = sphi 0, %s443
      %s445 = sphi 0, %s443
      %s446 = sphi 0, %s445
      %s460 = sphi 0, %s446
      %s464 = sphi 0, %s464
      %s466 = sphi 0, %s464
      %s467 = sphi 0, %s466
      %s481 = sphi 0, %s467
      %s485 = sphi 0, %s485
      %s487 = sphi 0, %s485
      %s488 = sphi 0, %s487
      %s502 = sphi 0, %s488
      %s506 = sphi 0, %s506
      %s508 = sphi 0, %s506
      %s509 = sphi 0, %s508
      %s523 = sphi 0, %s509
      %s529 = sphi 0, %s531
      %s532 = sphi 0, %s529
      %s533 = sphi 0, %s532
      %s549 = sphi 0, %s533
    $region4: #{tpu_custom_call.1} parent=1 // loop_header_branch
      %45 = sbr.rel (%p43) target = $region8
    $region5: #{tpu_custom_call.1} parent=1 // loop_body
      %s47 = ssub.s32 %s42, 1
      %s48 = ssub.s32 %s42, 2
      %s49 = sadd.s32 %s42, 1
      %s50 = ssub.s32 %s42, %s49
      %p51 = scmp.eq.s32.totalorder %s50, 0
      %s53 = sadd.s32 %s52, 1
      %s54 = scalar_select %p51, %s52, %s53
      %p57 = pneg %p51
      %p58 = scmp.eq.s32.totalorder %s42, 1
      %p59 = por %p57, %p58
      %p60 = scmp.ne.s32.totalorder %s52, %s55
      %p61 = scmp.eq.s32.totalorder %s42, 0
      %p62 = por %p60, %p61
      %p63 = scmp.ne.s32.totalorder %s52, %s55
      %p64 = scmp.eq.s32.totalorder %s47, 1
      %p65 = por %p63, %p64
      %p66 = scmp.ne.s32.totalorder %s55, %s56
      %p67 = scmp.eq.s32.totalorder %s47, 0
      %p68 = por %p66, %p67
      %p69 = scmp.ne.s32.totalorder %s55, %s56
      %p70 = scmp.eq.s32.totalorder %s48, 1
      %p71 = por %p69, %p70
      %p73 = scmp.ne.s32.totalorder %s56, %s72
      %p74 = scmp.eq.s32.totalorder %s48, 0
      %p75 = por %p73, %p74
      %s76 = ssub.s32 %s42, %s49
      %p77 = scmp.eq.s32.totalorder %s76, 0
      %s79 = sadd.s32 %s78, 1
      %s80 = scalar_select %p77, %s78, %s79
      %p83 = pneg %p77
      %p84 = scmp.eq.s32.totalorder %s42, 1
      %p85 = por %p83, %p84
      %p86 = scmp.ne.s32.totalorder %s78, %s81
      %p87 = scmp.eq.s32.totalorder %s42, 0
      %p88 = por %p86, %p87
      %p89 = scmp.ne.s32.totalorder %s78, %s81
      %p90 = scmp.eq.s32.totalorder %s47, 1
      %p91 = por %p89, %p90
      %p92 = scmp.ne.s32.totalorder %s81, %s82
      %p93 = scmp.eq.s32.totalorder %s47, 0
      %p94 = por %p92, %p93
      %p95 = scmp.ne.s32.totalorder %s81, %s82
      %p96 = scmp.eq.s32.totalorder %s48, 1
      %p97 = por %p95, %p96
      %p99 = scmp.ne.s32.totalorder %s82, %s98
      %p100 = scmp.eq.s32.totalorder %s48, 0
      %p101 = por %p99, %p100
      %s102 = ssub.s32 %s42, %s49
      %p103 = scmp.eq.s32.totalorder %s102, 0
      %s105 = sadd.s32 %s104, 1
      %s106 = scalar_select %p103, %s104, %s105
      %p109 = pneg %p103
      %p110 = scmp.eq.s32.totalorder %s42, 1
      %p111 = por %p109, %p110
      %p112 = scmp.ne.s32.totalorder %s104, %s107
      %p113 = scmp.eq.s32.totalorder %s42, 0
      %p114 = por %p112, %p113
      %p115 = scmp.ne.s32.totalorder %s104, %s107
      %p116 = scmp.eq.s32.totalorder %s47, 1
      %p117 = por %p115, %p116
      %p118 = scmp.ne.s32.totalorder %s107, %s108
      %p119 = scmp.eq.s32.totalorder %s47, 0
      %p120 = por %p118, %p119
      %p121 = scmp.ne.s32.totalorder %s107, %s108
      %p122 = scmp.eq.s32.totalorder %s48, 1
      %p123 = por %p121, %p122
      %p125 = scmp.ne.s32.totalorder %s108, %s124
      %p126 = scmp.eq.s32.totalorder %s48, 0
      %p127 = por %p125, %p126
      %s129 = sadd.s32 %s128, 1
      %p132 = scmp.eq.s32.totalorder %s42, 1
      %p133 = scmp.ne.s32.totalorder %s128, %s130
      %p134 = scmp.eq.s32.totalorder %s42, 0
      %p135 = por %p133, %p134
      %p136 = scmp.ne.s32.totalorder %s128, %s130
      %p137 = scmp.eq.s32.totalorder %s47, 1
      %p138 = por %p136, %p137
      %p139 = scmp.ne.s32.totalorder %s130, %s131
      %p140 = scmp.eq.s32.totalorder %s47, 0
      %p141 = por %p139, %p140
      %p142 = scmp.ne.s32.totalorder %s130, %s131
      %p143 = scmp.eq.s32.totalorder %s48, 1
      %p144 = por %p142, %p143
      %p146 = scmp.ne.s32.totalorder %s131, %s145
      %p147 = scmp.eq.s32.totalorder %s48, 0
      %p148 = por %p146, %p147
      %s150 = sadd.s32 %s149, 1
      %p153 = scmp.eq.s32.totalorder %s42, 1
      %p154 = scmp.ne.s32.totalorder %s149, %s151
      %p155 = scmp.eq.s32.totalorder %s42, 0
      %p156 = por %p154, %p155
      %p157 = scmp.ne.s32.totalorder %s149, %s151
      %p158 = scmp.eq.s32.totalorder %s47, 1
      %p159 = por %p157, %p158
      %p160 = scmp.ne.s32.totalorder %s151, %s152
      %p161 = scmp.eq.s32.totalorder %s47, 0
      %p162 = por %p160, %p161
      %p163 = scmp.ne.s32.totalorder %s151, %s152
      %p164 = scmp.eq.s32.totalorder %s48, 1
      %p165 = por %p163, %p164
      %p167 = scmp.ne.s32.totalorder %s152, %s166
      %p168 = scmp.eq.s32.totalorder %s48, 0
      %p169 = por %p167, %p168
      %s171 = sadd.s32 %s170, 1
      %p174 = scmp.eq.s32.totalorder %s42, 1
      %p175 = scmp.ne.s32.totalorder %s170, %s172
      %p176 = scmp.eq.s32.totalorder %s42, 0
      %p177 = por %p175, %p176
      %p178 = scmp.ne.s32.totalorder %s170, %s172
      %p179 = scmp.eq.s32.totalorder %s47, 1
      %p180 = por %p178, %p179
      %p181 = scmp.ne.s32.totalorder %s172, %s173
      %p182 = scmp.eq.s32.totalorder %s47, 0
      %p183 = por %p181, %p182
      %p184 = scmp.ne.s32.totalorder %s172, %s173
      %p185 = scmp.eq.s32.totalorder %s48, 1
      %p186 = por %p184, %p185
      %p188 = scmp.ne.s32.totalorder %s173, %s187
      %p189 = scmp.eq.s32.totalorder %s48, 0
      %p190 = por %p188, %p189
      %s192 = sadd.s32 %s191, 1
      %p195 = scmp.eq.s32.totalorder %s42, 1
      %p196 = scmp.ne.s32.totalorder %s191, %s193
      %p197 = scmp.eq.s32.totalorder %s42, 0
      %p198 = por %p196, %p197
      %p199 = scmp.ne.s32.totalorder %s191, %s193
      %p200 = scmp.eq.s32.totalorder %s47, 1
      %p201 = por %p199, %p200
      %p202 = scmp.ne.s32.totalorder %s193, %s194
      %p203 = scmp.eq.s32.totalorder %s47, 0
      %p204 = por %p202, %p203
      %p205 = scmp.ne.s32.totalorder %s193, %s194
      %p206 = scmp.eq.s32.totalorder %s48, 1
      %p207 = por %p205, %p206
      %p209 = scmp.ne.s32.totalorder %s194, %s208
      %p210 = scmp.eq.s32.totalorder %s48, 0
      %p211 = por %p209, %p210
      %s213 = sadd.s32 %s212, 1
      %p216 = scmp.eq.s32.totalorder %s42, 1
      %p217 = scmp.ne.s32.totalorder %s212, %s214
      %p218 = scmp.eq.s32.totalorder %s42, 0
      %p219 = por %p217, %p218
      %p220 = scmp.ne.s32.totalorder %s212, %s214
      %p221 = scmp.eq.s32.totalorder %s47, 1
      %p222 = por %p220, %p221
      %p223 = scmp.ne.s32.totalorder %s214, %s215
      %p224 = scmp.eq.s32.totalorder %s47, 0
      %p225 = por %p223, %p224
      %p226 = scmp.ne.s32.totalorder %s214, %s215
      %p227 = scmp.eq.s32.totalorder %s48, 1
      %p228 = por %p226, %p227
      %p230 = scmp.ne.s32.totalorder %s215, %s229
      %p231 = scmp.eq.s32.totalorder %s48, 0
      %p232 = por %p230, %p231
      %s234 = sadd.s32 %s233, 1
      %p237 = scmp.eq.s32.totalorder %s42, 1
      %p238 = scmp.ne.s32.totalorder %s233, %s235
      %p239 = scmp.eq.s32.totalorder %s42, 0
      %p240 = por %p238, %p239
      %p241 = scmp.ne.s32.totalorder %s233, %s235
      %p242 = scmp.eq.s32.totalorder %s47, 1
      %p243 = por %p241, %p242
      %p244 = scmp.ne.s32.totalorder %s235, %s236
      %p245 = scmp.eq.s32.totalorder %s47, 0
      %p246 = por %p244, %p245
      %p247 = scmp.ne.s32.totalorder %s235, %s236
      %p248 = scmp.eq.s32.totalorder %s48, 1
      %p249 = por %p247, %p248
      %p251 = scmp.ne.s32.totalorder %s236, %s250
      %p252 = scmp.eq.s32.totalorder %s48, 0
      %p253 = por %p251, %p252
      %s255 = sadd.s32 %s254, 1
      %p258 = scmp.eq.s32.totalorder %s42, 1
      %p259 = scmp.ne.s32.totalorder %s254, %s256
      %p260 = scmp.eq.s32.totalorder %s42, 0
      %p261 = por %p259, %p260
      %p262 = scmp.ne.s32.totalorder %s254, %s256
      %p263 = scmp.eq.s32.totalorder %s47, 1
      %p264 = por %p262, %p263
      %p265 = scmp.ne.s32.totalorder %s256, %s257
      %p266 = scmp.eq.s32.totalorder %s47, 0
      %p267 = por %p265, %p266
      %p268 = scmp.ne.s32.totalorder %s256, %s257
      %p269 = scmp.eq.s32.totalorder %s48, 1
      %p270 = por %p268, %p269
      %p272 = scmp.ne.s32.totalorder %s257, %s271
      %p273 = scmp.eq.s32.totalorder %s48, 0
      %p274 = por %p272, %p273
      %s276 = sadd.s32 %s275, 1
      %p279 = scmp.eq.s32.totalorder %s42, 1
      %p280 = scmp.ne.s32.totalorder %s275, %s277
      %p281 = scmp.eq.s32.totalorder %s42, 0
      %p282 = por %p280, %p281
      %p283 = scmp.ne.s32.totalorder %s275, %s277
      %p284 = scmp.eq.s32.totalorder %s47, 1
      %p285 = por %p283, %p284
      %p286 = scmp.ne.s32.totalorder %s277, %s278
      %p287 = scmp.eq.s32.totalorder %s47, 0
      %p288 = por %p286, %p287
      %p289 = scmp.ne.s32.totalorder %s277, %s278
      %p290 = scmp.eq.s32.totalorder %s48, 1
      %p291 = por %p289, %p290
      %p293 = scmp.ne.s32.totalorder %s278, %s292
      %p294 = scmp.eq.s32.totalorder %s48, 0
      %p295 = por %p293, %p294
      %s297 = sadd.s32 %s296, 1
      %p300 = scmp.eq.s32.totalorder %s42, 1
      %p301 = scmp.ne.s32.totalorder %s296, %s298
      %p302 = scmp.eq.s32.totalorder %s42, 0
      %p303 = por %p301, %p302
      %p304 = scmp.ne.s32.totalorder %s296, %s298
      %p305 = scmp.eq.s32.totalorder %s47, 1
      %p306 = por %p304, %p305
      %p307 = scmp.ne.s32.totalorder %s298, %s299
      %p308 = scmp.eq.s32.totalorder %s47, 0
      %p309 = por %p307, %p308
      %p310 = scmp.ne.s32.totalorder %s298, %s299
      %p311 = scmp.eq.s32.totalorder %s48, 1
      %p312 = por %p310, %p311
      %p314 = scmp.ne.s32.totalorder %s299, %s313
      %p315 = scmp.eq.s32.totalorder %s48, 0
      %p316 = por %p314, %p315
      %s318 = sadd.s32 %s317, 1
      %p321 = scmp.eq.s32.totalorder %s42, 1
      %p322 = scmp.ne.s32.totalorder %s317, %s319
      %p323 = scmp.eq.s32.totalorder %s42, 0
      %p324 = por %p322, %p323
      %p325 = scmp.ne.s32.totalorder %s317, %s319
      %p326 = scmp.eq.s32.totalorder %s47, 1
      %p327 = por %p325, %p326
      %p328 = scmp.ne.s32.totalorder %s319, %s320
      %p329 = scmp.eq.s32.totalorder %s47, 0
      %p330 = por %p328, %p329
      %p331 = scmp.ne.s32.totalorder %s319, %s320
      %p332 = scmp.eq.s32.totalorder %s48, 1
      %p333 = por %p331, %p332
      %p335 = scmp.ne.s32.totalorder %s320, %s334
      %p336 = scmp.eq.s32.totalorder %s48, 0
      %p337 = por %p335, %p336
      %s339 = sadd.s32 %s338, 1
      %p342 = scmp.eq.s32.totalorder %s42, 1
      %p343 = scmp.ne.s32.totalorder %s338, %s340
      %p344 = scmp.eq.s32.totalorder %s42, 0
      %p345 = por %p343, %p344
      %p346 = scmp.ne.s32.totalorder %s338, %s340
      %p347 = scmp.eq.s32.totalorder %s47, 1
      %p348 = por %p346, %p347
      %p349 = scmp.ne.s32.totalorder %s340, %s341
      %p350 = scmp.eq.s32.totalorder %s47, 0
      %p351 = por %p349, %p350
      %p352 = scmp.ne.s32.totalorder %s340, %s341
      %p353 = scmp.eq.s32.totalorder %s48, 1
      %p354 = por %p352, %p353
      %p356 = scmp.ne.s32.totalorder %s341, %s355
      %p357 = scmp.eq.s32.totalorder %s48, 0
      %p358 = por %p356, %p357
      %s360 = sadd.s32 %s359, 1
      %p363 = scmp.eq.s32.totalorder %s42, 1
      %p364 = scmp.ne.s32.totalorder %s359, %s361
      %p365 = scmp.eq.s32.totalorder %s42, 0
      %p366 = por %p364, %p365
      %p367 = scmp.ne.s32.totalorder %s359, %s361
      %p368 = scmp.eq.s32.totalorder %s47, 1
      %p369 = por %p367, %p368
      %p370 = scmp.ne.s32.totalorder %s361, %s362
      %p371 = scmp.eq.s32.totalorder %s47, 0
      %p372 = por %p370, %p371
      %p373 = scmp.ne.s32.totalorder %s361, %s362
      %p374 = scmp.eq.s32.totalorder %s48, 1
      %p375 = por %p373, %p374
      %p377 = scmp.ne.s32.totalorder %s362, %s376
      %p378 = scmp.eq.s32.totalorder %s48, 0
      %p379 = por %p377, %p378
      %s381 = sadd.s32 %s380, 1
      %p384 = scmp.eq.s32.totalorder %s42, 1
      %p385 = scmp.ne.s32.totalorder %s380, %s382
      %p386 = scmp.eq.s32.totalorder %s42, 0
      %p387 = por %p385, %p386
      %p388 = scmp.ne.s32.totalorder %s380, %s382
      %p389 = scmp.eq.s32.totalorder %s47, 1
      %p390 = por %p388, %p389
      %p391 = scmp.ne.s32.totalorder %s382, %s383
      %p392 = scmp.eq.s32.totalorder %s47, 0
      %p393 = por %p391, %p392
      %p394 = scmp.ne.s32.totalorder %s382, %s383
      %p395 = scmp.eq.s32.totalorder %s48, 1
      %p396 = por %p394, %p395
      %p398 = scmp.ne.s32.totalorder %s383, %s397
      %p399 = scmp.eq.s32.totalorder %s48, 0
      %p400 = por %p398, %p399
      %s402 = sadd.s32 %s401, 1
      %p405 = scmp.eq.s32.totalorder %s42, 1
      %p406 = scmp.ne.s32.totalorder %s401, %s403
      %p407 = scmp.eq.s32.totalorder %s42, 0
      %p408 = por %p406, %p407
      %p409 = scmp.ne.s32.totalorder %s401, %s403
      %p410 = scmp.eq.s32.totalorder %s47, 1
      %p411 = por %p409, %p410
      %p412 = scmp.ne.s32.totalorder %s403, %s404
      %p413 = scmp.eq.s32.totalorder %s47, 0
      %p414 = por %p412, %p413
      %p415 = scmp.ne.s32.totalorder %s403, %s404
      %p416 = scmp.eq.s32.totalorder %s48, 1
      %p417 = por %p415, %p416
      %p419 = scmp.ne.s32.totalorder %s404, %s418
      %p420 = scmp.eq.s32.totalorder %s48, 0
      %p421 = por %p419, %p420
      %s423 = sadd.s32 %s422, 1
      %p426 = scmp.eq.s32.totalorder %s42, 1
      %p427 = scmp.ne.s32.totalorder %s422, %s424
      %p428 = scmp.eq.s32.totalorder %s42, 0
      %p429 = por %p427, %p428
      %p430 = scmp.ne.s32.totalorder %s422, %s424
      %p431 = scmp.eq.s32.totalorder %s47, 1
      %p432 = por %p430, %p431
      %p433 = scmp.ne.s32.totalorder %s424, %s425
      %p434 = scmp.eq.s32.totalorder %s47, 0
      %p435 = por %p433, %p434
      %p436 = scmp.ne.s32.totalorder %s424, %s425
      %p437 = scmp.eq.s32.totalorder %s48, 1
      %p438 = por %p436, %p437
      %p440 = scmp.ne.s32.totalorder %s425, %s439
      %p441 = scmp.eq.s32.totalorder %s48, 0
      %p442 = por %p440, %p441
      %s444 = sadd.s32 %s443, 1
      %p447 = scmp.eq.s32.totalorder %s42, 1
      %p448 = scmp.ne.s32.totalorder %s443, %s445
      %p449 = scmp.eq.s32.totalorder %s42, 0
      %p450 = por %p448, %p449
      %p451 = scmp.ne.s32.totalorder %s443, %s445
      %p452 = scmp.eq.s32.totalorder %s47, 1
      %p453 = por %p451, %p452
      %p454 = scmp.ne.s32.totalorder %s445, %s446
      %p455 = scmp.eq.s32.totalorder %s47, 0
      %p456 = por %p454, %p455
      %p457 = scmp.ne.s32.totalorder %s445, %s446
      %p458 = scmp.eq.s32.totalorder %s48, 1
      %p459 = por %p457, %p458
      %p461 = scmp.ne.s32.totalorder %s446, %s460
      %p462 = scmp.eq.s32.totalorder %s48, 0
      %p463 = por %p461, %p462
      %s465 = sadd.s32 %s464, 1
      %p468 = scmp.eq.s32.totalorder %s42, 1
      %p469 = scmp.ne.s32.totalorder %s464, %s466
      %p470 = scmp.eq.s32.totalorder %s42, 0
      %p471 = por %p469, %p470
      %p472 = scmp.ne.s32.totalorder %s464, %s466
      %p473 = scmp.eq.s32.totalorder %s47, 1
      %p474 = por %p472, %p473
      %p475 = scmp.ne.s32.totalorder %s466, %s467
      %p476 = scmp.eq.s32.totalorder %s47, 0
      %p477 = por %p475, %p476
      %p478 = scmp.ne.s32.totalorder %s466, %s467
      %p479 = scmp.eq.s32.totalorder %s48, 1
      %p480 = por %p478, %p479
      %p482 = scmp.ne.s32.totalorder %s467, %s481
      %p483 = scmp.eq.s32.totalorder %s48, 0
      %p484 = por %p482, %p483
      %s486 = sadd.s32 %s485, 1
      %p489 = scmp.eq.s32.totalorder %s42, 1
      %p490 = scmp.ne.s32.totalorder %s485, %s487
      %p491 = scmp.eq.s32.totalorder %s42, 0
      %p492 = por %p490, %p491
      %p493 = scmp.ne.s32.totalorder %s485, %s487
      %p494 = scmp.eq.s32.totalorder %s47, 1
      %p495 = por %p493, %p494
      %p496 = scmp.ne.s32.totalorder %s487, %s488
      %p497 = scmp.eq.s32.totalorder %s47, 0
      %p498 = por %p496, %p497
      %p499 = scmp.ne.s32.totalorder %s487, %s488
      %p500 = scmp.eq.s32.totalorder %s48, 1
      %p501 = por %p499, %p500
      %p503 = scmp.ne.s32.totalorder %s488, %s502
      %p504 = scmp.eq.s32.totalorder %s48, 0
      %p505 = por %p503, %p504
      %s507 = sadd.s32 %s506, 1
      %p510 = scmp.eq.s32.totalorder %s42, 1
      %p511 = scmp.ne.s32.totalorder %s506, %s508
      %p512 = scmp.eq.s32.totalorder %s42, 0
      %p513 = por %p511, %p512
      %p514 = scmp.ne.s32.totalorder %s506, %s508
      %p515 = scmp.eq.s32.totalorder %s47, 1
      %p516 = por %p514, %p515
      %p517 = scmp.ne.s32.totalorder %s508, %s509
      %p518 = scmp.eq.s32.totalorder %s47, 0
      %p519 = por %p517, %p518
      %p520 = scmp.ne.s32.totalorder %s508, %s509
      %p521 = scmp.eq.s32.totalorder %s48, 1
      %p522 = por %p520, %p521
      %p524 = scmp.ne.s32.totalorder %s509, %s523
      %p525 = scmp.eq.s32.totalorder %s48, 0
      %p526 = por %p524, %p525
      %s527 = ssub.s32 %s42, %s49
      %p528 = scmp.eq.s32.totalorder %s527, 0
      %s530 = sadd.s32 %s529, 1
      %s531 = scalar_select %p528, %s529, %s530
      %p534 = pneg %p528
      %p535 = scmp.eq.s32.totalorder %s42, 1
      %p536 = por %p534, %p535
      %p537 = scmp.ne.s32.totalorder %s529, %s532
      %p538 = scmp.eq.s32.totalorder %s42, 0
      %p539 = por %p537, %p538
      %p540 = scmp.ne.s32.totalorder %s529, %s532
      %p541 = scmp.eq.s32.totalorder %s47, 1
      %p542 = por %p540, %p541
      %p543 = scmp.ne.s32.totalorder %s532, %s533
      %p544 = scmp.eq.s32.totalorder %s47, 0
      %p545 = por %p543, %p544
      %p546 = scmp.ne.s32.totalorder %s532, %s533
      %p547 = scmp.eq.s32.totalorder %s48, 1
      %p548 = por %p546, %p547
      %p550 = scmp.ne.s32.totalorder %s533, %s549
      %p551 = scmp.eq.s32.totalorder %s48, 0
      %p552 = por %p550, %p551
      %p553 = scmp.le.s32.totalorder 1, %s42
      %p554 = scmp.lt.s32.totalorder %s42, 3
      %p555 = pnand %p553, %p554
      %p556 = pneg %p555
      // Predicated region
      $region9: #{tpu_custom_call.1} parent=5 // pred_check
        _
      $region10: #{tpu_custom_call.1} parent=5 // pred_check_branch
        %558 = sbr.rel (%p555) target = $region12
      $region11: #{tpu_custom_call.1} parent=5 // pred_region
        %s559 = ssub.s32 %s42, 1
        // Predicated region
        $region13: #{tpu_custom_call.1} parent=11 // pred_check
          %p560 = pneg %p141
        $region14: #{tpu_custom_call.1} parent=11 // pred_check_branch
          %562 = sbr.rel (%p560) target = $region16
        $region15: #{tpu_custom_call.1} parent=11 // pred_region
          _
        $region16: #{tpu_custom_call.1} parent=11 // pred_fallthru
          _
        // Predicated region
        $region17: #{tpu_custom_call.1} parent=11 // pred_check
          %p563 = pneg %p162
        $region18: #{tpu_custom_call.1} parent=11 // pred_check_branch
          %565 = sbr.rel (%p563) target = $region20
        $region19: #{tpu_custom_call.1} parent=11 // pred_region
          _
        $region20: #{tpu_custom_call.1} parent=11 // pred_fallthru
          _
        // Predicated region
        $region21: #{tpu_custom_call.1} parent=11 // pred_check
          %p566 = pneg %p183
        $region22: #{tpu_custom_call.1} parent=11 // pred_check_branch
          %568 = sbr.rel (%p566) target = $region24
        $region23: #{tpu_custom_call.1} parent=11 // pred_region
          _
        $region24: #{tpu_custom_call.1} parent=11 // pred_fallthru
          _
        // Predicated region
        $region25: #{tpu_custom_call.1} parent=11 // pred_check
          %p569 = pneg %p204
        $region26: #{tpu_custom_call.1} parent=11 // pred_check_branch
          %571 = sbr.rel (%p569) target = $region28
        $region27: #{tpu_custom_call.1} parent=11 // pred_region
          %s573 = ssub.s32 48, 48
          %574 = vsyncadd [#allocation11], %s573
          %s576 = sshll.u32 [#allocation10], 4
          %s577 = int_to_ptr.vmem [resolvable:$true] %s576
          %579 = dma.hbm_to_vmem [thread:$0]  %s6, 48, %s577, [#allocation11]
        $region28: #{tpu_custom_call.1} parent=11 // pred_fallthru
          _
        // Predicated region
        $region29: #{tpu_custom_call.1} parent=11 // pred_check
          %p580 = pneg %p225
        $region30: #{tpu_custom_call.1} parent=11 // pred_check_branch
          %582 = sbr.rel (%p580) target = $region32
        $region31: #{tpu_custom_call.1} parent=11 // pred_region
          %s584 = ssub.s32 3072, 3072
          %585 = vsyncadd [#allocation11], %s584
          %s586 = sshll.u32 [#allocation12], 4
          %s587 = int_to_ptr.vmem [resolvable:$true] %s586
          %592 = dma.hbm_to_vmem [thread:$0]  %s7, 3072, %s587, [#allocation11], 384, 384, 24
        $region32: #{tpu_custom_call.1} parent=11 // pred_fallthru
          _
        // Predicated region
        $region33: #{tpu_custom_call.1} parent=11 // pred_check
          %p593 = pneg %p246
        $region34: #{tpu_custom_call.1} parent=11 // pred_check_branch
          %595 = sbr.rel (%p593) target = $region36
        $region35: #{tpu_custom_call.1} parent=11 // pred_region
          %s597 = ssub.s32 6144, 6144
          %598 = vsyncadd [#allocation14], %s597
          %s599 = sshll.u32 [#allocation13], 4
          %s600 = int_to_ptr.vmem [resolvable:$true] %s599
          %605 = dma.hbm_to_vmem [thread:$0]  %s8, 6144, %s600, [#allocation14], 384, 384, 24
        $region36: #{tpu_custom_call.1} parent=11 // pred_fallthru
          _
        // Predicated region
        $region37: #{tpu_custom_call.1} parent=11 // pred_check
          %p606 = pneg %p267
        $region38: #{tpu_custom_call.1} parent=11 // pred_check_branch
          %608 = sbr.rel (%p606) target = $region40
        $region39: #{tpu_custom_call.1} parent=11 // pred_region
          %s610 = ssub.s32 48, 48
          %611 = vsyncadd [#allocation14], %s610
          %s613 = sshll.u32 [#allocation15], 4
          %s614 = int_to_ptr.vmem [resolvable:$true] %s613
          %616 = dma.hbm_to_vmem [thread:$0]  %s9, 48, %s614, [#allocation14]
        $region40: #{tpu_custom_call.1} parent=11 // pred_fallthru
          _
        // Predicated region
        $region41: #{tpu_custom_call.1} parent=11 // pred_check
          %p617 = pneg %p288
        $region42: #{tpu_custom_call.1} parent=11 // pred_check_branch
          %619 = sbr.rel (%p617) target = $region44
        $region43: #{tpu_custom_call.1} parent=11 // pred_region
          %s621 = ssub.s32 48, 48
          %622 = vsyncadd [#allocation17], %s621
          %s624 = sshll.u32 [#allocation16], 4
          %s625 = int_to_ptr.vmem [resolvable:$true] %s624
          %627 = dma.hbm_to_vmem [thread:$0]  %s10, 48, %s625, [#allocation17]
        $region44: #{tpu_custom_call.1} parent=11 // pred_fallthru
          _
        // Predicated region
        $region45: #{tpu_custom_call.1} parent=11 // pred_check
          %p628 = pneg %p309
        $region46: #{tpu_custom_call.1} parent=11 // pred_check_branch
          %630 = sbr.rel (%p628) target = $region48
        $region47: #{tpu_custom_call.1} parent=11 // pred_region
          _
        $region48: #{tpu_custom_call.1} parent=11 // pred_fallthru
          _
        // Predicated region
        $region49: #{tpu_custom_call.1} parent=11 // pred_check
          %p631 = pneg %p330
        $region50: #{tpu_custom_call.1} parent=11 // pred_check_branch
          %633 = sbr.rel (%p631) target = $region52
        $region51: #{tpu_custom_call.1} parent=11 // pred_region
          _
        $region52: #{tpu_custom_call.1} parent=11 // pred_fallthru
          _
        // Predicated region
        $region53: #{tpu_custom_call.1} parent=11 // pred_check
          %p634 = pneg %p351
        $region54: #{tpu_custom_call.1} parent=11 // pred_check_branch
          %636 = sbr.rel (%p634) target = $region56
        $region55: #{tpu_custom_call.1} parent=11 // pred_region
          _
        $region56: #{tpu_custom_call.1} parent=11 // pred_fallthru
          _
        // Predicated region
        $region57: #{tpu_custom_call.1} parent=11 // pred_check
          %p637 = pneg %p372
        $region58: #{tpu_custom_call.1} parent=11 // pred_check_branch
          %639 = sbr.rel (%p637) target = $region60
        $region59: #{tpu_custom_call.1} parent=11 // pred_region
          _
        $region60: #{tpu_custom_call.1} parent=11 // pred_fallthru
          _
        // Predicated region
        $region61: #{tpu_custom_call.1} parent=11 // pred_check
          %p640 = pneg %p393
        $region62: #{tpu_custom_call.1} parent=11 // pred_check_branch
          %642 = sbr.rel (%p640) target = $region64
        $region63: #{tpu_custom_call.1} parent=11 // pred_region
          %s644 = ssub.s32 1024, 1024
          %645 = vsyncadd [#allocation17], %s644
          %s646 = sshll.u32 [#allocation18], 4
          %s647 = int_to_ptr.vmem [resolvable:$true] %s646
          %652 = dma.hbm_to_vmem [thread:$0]  %s15, 1024, %s647, [#allocation17], 128, 128, 8
        $region64: #{tpu_custom_call.1} parent=11 // pred_fallthru
          _
        // Predicated region
        $region65: #{tpu_custom_call.1} parent=11 // pred_check
          %p653 = pneg %p414
        $region66: #{tpu_custom_call.1} parent=11 // pred_check_branch
          %655 = sbr.rel (%p653) target = $region68
        $region67: #{tpu_custom_call.1} parent=11 // pred_region
          %s657 = ssub.s32 1024, 1024
          %658 = vsyncadd [#allocation20], %s657
          %s659 = sshll.u32 [#allocation19], 4
          %s660 = int_to_ptr.vmem [resolvable:$true] %s659
          %665 = dma.hbm_to_vmem [thread:$0]  %s16, 1024, %s660, [#allocation20], 128, 128, 8
        $region68: #{tpu_custom_call.1} parent=11 // pred_fallthru
          _
        // Predicated region
        $region69: #{tpu_custom_call.1} parent=11 // pred_check
          %p666 = pneg %p435
        $region70: #{tpu_custom_call.1} parent=11 // pred_check_branch
          %668 = sbr.rel (%p666) target = $region72
        $region71: #{tpu_custom_call.1} parent=11 // pred_region
          %s670 = ssub.s32 1024, 1024
          %671 = vsyncadd [#allocation20], %s670
          %s672 = sshll.u32 [#allocation21], 4
          %s673 = int_to_ptr.vmem [resolvable:$true] %s672
          %678 = dma.hbm_to_vmem [thread:$0]  %s17, 1024, %s673, [#allocation20], 128, 128, 8
        $region72: #{tpu_custom_call.1} parent=11 // pred_fallthru
          _
        // Predicated region
        $region73: #{tpu_custom_call.1} parent=11 // pred_check
          %p679 = pneg %p456
        $region74: #{tpu_custom_call.1} parent=11 // pred_check_branch
          %681 = sbr.rel (%p679) target = $region76
        $region75: #{tpu_custom_call.1} parent=11 // pred_region
          _
        $region76: #{tpu_custom_call.1} parent=11 // pred_fallthru
          _
        // Predicated region
        $region77: #{tpu_custom_call.1} parent=11 // pred_check
          %p682 = pneg %p477
        $region78: #{tpu_custom_call.1} parent=11 // pred_check_branch
          %684 = sbr.rel (%p682) target = $region80
        $region79: #{tpu_custom_call.1} parent=11 // pred_region
          %s686 = ssub.s32 16, 16
          %687 = vsyncadd [#allocation23], %s686
          %s689 = sshll.u32 [#allocation22], 4
          %s690 = int_to_ptr.vmem [resolvable:$true] %s689
          %692 = dma.hbm_to_vmem [thread:$0]  %s19, 16, %s690, [#allocation23]
        $region80: #{tpu_custom_call.1} parent=11 // pred_fallthru
          _
        // Predicated region
        $region81: #{tpu_custom_call.1} parent=11 // pred_check
          %p693 = pneg %p498
        $region82: #{tpu_custom_call.1} parent=11 // pred_check_branch
          %695 = sbr.rel (%p693) target = $region84
        $region83: #{tpu_custom_call.1} parent=11 // pred_region
          %s697 = ssub.s32 2048, 2048
          %698 = vsyncadd [#allocation23], %s697
          %s699 = sshll.u32 [#allocation24], 4
          %s700 = int_to_ptr.vmem [resolvable:$true] %s699
          %705 = dma.hbm_to_vmem [thread:$0]  %s20, 2048, %s700, [#allocation23], 128, 128, 8
        $region84: #{tpu_custom_call.1} parent=11 // pred_fallthru
          _
        // Predicated region
        $region85: #{tpu_custom_call.1} parent=11 // pred_check
          %p706 = pneg %p519
        $region86: #{tpu_custom_call.1} parent=11 // pred_check_branch
          %708 = sbr.rel (%p706) target = $region88
        $region87: #{tpu_custom_call.1} parent=11 // pred_region
          _
        $region88: #{tpu_custom_call.1} parent=11 // pred_fallthru
          _
      $region12: #{tpu_custom_call.1} parent=5 // pred_fallthru
        _
      %p709 = scmp.lt.s32.totalorder %s42, 2
      // Predicated region
      $region89: #{tpu_custom_call.1} parent=5 // pred_check
        %p710 = pneg %p709
      $region90: #{tpu_custom_call.1} parent=5 // pred_check_branch
        %712 = sbr.rel (%p710) target = $region92
      $region91: #{tpu_custom_call.1} parent=5 // pred_region
        // Predicated region
        $region93: #{tpu_custom_call.1} parent=91 // pred_check
          %p713 = pneg %p62
        $region94: #{tpu_custom_call.1} parent=91 // pred_check_branch
          %715 = sbr.rel (%p713) target = $region96
        $region95: #{tpu_custom_call.1} parent=91 // pred_region
          %s716 = sand.u32 %s52, 1
          %s717 = scalar_lea.sflag [#allocation5], %s716
          %s718 = sand.u32 %s52, 1
          %s719 = smul.addr %s718, 32
          %s720 = scalar_lea.vmem [#allocation4], %s719
          %s722 = ssub.s32 512, 512
          %723 = vsyncadd %s717, %s722
          %s724 = smul.addr %s42, 4
          %s725 = smul.addr %s724, 128
          %s726 = scalar_lea.hbm %s0, %s725
          %s727 = sshll.u32 %s720, 4
          %s728 = int_to_ptr.vmem [resolvable:$true] %s727
          %733 = dma.hbm_to_vmem [thread:$0]  %s726, 512, %s728, %s717, 128, 128, 8
        $region96: #{tpu_custom_call.1} parent=91 // pred_fallthru
          _
        // Predicated region
        $region97: #{tpu_custom_call.1} parent=91 // pred_check
          %p734 = pneg %p88
        $region98: #{tpu_custom_call.1} parent=91 // pred_check_branch
          %736 = sbr.rel (%p734) target = $region100
        $region99: #{tpu_custom_call.1} parent=91 // pred_region
          %s737 = sand.u32 %s42, 1
          %s738 = scalar_lea.sflag [#allocation8], %s737
          %s739 = sand.u32 %s78, 1
          %s740 = smul.addr %s739, 32
          %s741 = scalar_lea.vmem [#allocation7], %s740
          %s743 = ssub.s32 512, 512
          %744 = vsyncadd %s738, %s743
          %s745 = smul.addr %s42, 4
          %s746 = smul.addr %s745, 128
          %s747 = scalar_lea.hbm %s1, %s746
          %s748 = sshll.u32 %s741, 4
          %s749 = int_to_ptr.vmem [resolvable:$true] %s748
          %754 = dma.hbm_to_vmem [thread:$0]  %s747, 512, %s749, %s738, 128, 128, 8
        $region100: #{tpu_custom_call.1} parent=91 // pred_fallthru
          _
        // Predicated region
        $region101: #{tpu_custom_call.1} parent=91 // pred_check
          %p755 = pneg %p114
        $region102: #{tpu_custom_call.1} parent=91 // pred_check_branch
          %757 = sbr.rel (%p755) target = $region104
        $region103: #{tpu_custom_call.1} parent=91 // pred_region
          %s758 = sand.u32 %s42, 1
          %s759 = scalar_lea.sflag [#allocation8], %s758
          %s760 = sand.u32 %s104, 1
          %s761 = smul.addr %s760, 24
          %s762 = scalar_lea.vmem [#allocation9], %s761
          %s764 = ssub.s32 384, 384
          %765 = vsyncadd %s759, %s764
          %s766 = smul.addr %s42, 128
          %s767 = scalar_lea.hbm %s2, %s766
          %s768 = sshll.u32 %s762, 4
          %s769 = int_to_ptr.vmem [resolvable:$true] %s768
          %774 = dma.hbm_to_vmem [thread:$0]  %s767, 384, %s769, %s759, 256, 128, 8
        $region104: #{tpu_custom_call.1} parent=91 // pred_fallthru
          _
      $region92: #{tpu_custom_call.1} parent=5 // pred_fallthru
        _
      %p775 = scmp.le.s32.totalorder 1, %s42
      %p776 = scmp.lt.s32.totalorder %s42, 3
      %p777 = pnand %p775, %p776
      %p778 = pneg %p777
      // Predicated region
      $region105: #{tpu_custom_call.1} parent=5 // pred_check
        _
      $region106: #{tpu_custom_call.1} parent=5 // pred_check_branch
        %780 = sbr.rel (%p777) target = $region108
      $region107: #{tpu_custom_call.1} parent=5 // pred_region
        %s781 = ssub.s32 %s42, 1
        %s782 = sand.u32 %s55, 1
        %s783 = scalar_lea.sflag [#allocation5], %s782
        %s784 = sand.u32 %s55, 1
        %s785 = smul.addr %s784, 32
        %s786 = scalar_lea.vmem [#allocation4], %s785
        // Predicated region
        $region109: #{tpu_custom_call.1} parent=107 // pred_check
          %p787 = pneg %p68
        $region110: #{tpu_custom_call.1} parent=107 // pred_check_branch
          %789 = sbr.rel (%p787) target = $region112
        $region111: #{tpu_custom_call.1} parent=107 // pred_region
          %790 = dma.done %s783, 512
        $region112: #{tpu_custom_call.1} parent=107 // pred_fallthru
          _
        %s791 = sand.u32 %s47, 1
        %s792 = scalar_lea.sflag [#allocation8], %s791
        %s793 = sand.u32 %s81, 1
        %s794 = smul.addr %s793, 32
        %s795 = scalar_lea.vmem [#allocation7], %s794
        // Predicated region
        $region113: #{tpu_custom_call.1} parent=107 // pred_check
          %p796 = pneg %p94
        $region114: #{tpu_custom_call.1} parent=107 // pred_check_branch
          %798 = sbr.rel (%p796) target = $region116
        $region115: #{tpu_custom_call.1} parent=107 // pred_region
          %799 = dma.done %s792, 512
        $region116: #{tpu_custom_call.1} parent=107 // pred_fallthru
          _
        %s800 = sand.u32 %s47, 1
        %s801 = scalar_lea.sflag [#allocation8], %s800
        %s802 = sand.u32 %s107, 1
        %s803 = smul.addr %s802, 24
        %s804 = scalar_lea.vmem [#allocation9], %s803
        // Predicated region
        $region117: #{tpu_custom_call.1} parent=107 // pred_check
          %p805 = pneg %p120
        $region118: #{tpu_custom_call.1} parent=107 // pred_check_branch
          %807 = sbr.rel (%p805) target = $region120
        $region119: #{tpu_custom_call.1} parent=107 // pred_region
          %808 = dma.done %s801, 384
        $region120: #{tpu_custom_call.1} parent=107 // pred_fallthru
          _
        // Predicated region
        $region121: #{tpu_custom_call.1} parent=107 // pred_check
          %p809 = pneg %p204
        $region122: #{tpu_custom_call.1} parent=107 // pred_check_branch
          %811 = sbr.rel (%p809) target = $region124
        $region123: #{tpu_custom_call.1} parent=107 // pred_region
          %812 = dma.done [#allocation11], 48
        $region124: #{tpu_custom_call.1} parent=107 // pred_fallthru
          _
        // Predicated region
        $region125: #{tpu_custom_call.1} parent=107 // pred_check
          %p813 = pneg %p225
        $region126: #{tpu_custom_call.1} parent=107 // pred_check_branch
          %815 = sbr.rel (%p813) target = $region128
        $region127: #{tpu_custom_call.1} parent=107 // pred_region
          %816 = dma.done [#allocation11], 3072
        $region128: #{tpu_custom_call.1} parent=107 // pred_fallthru
          _
        // Predicated region
        $region129: #{tpu_custom_call.1} parent=107 // pred_check
          %p817 = pneg %p246
        $region130: #{tpu_custom_call.1} parent=107 // pred_check_branch
          %819 = sbr.rel (%p817) target = $region132
        $region131: #{tpu_custom_call.1} parent=107 // pred_region
          %820 = dma.done [#allocation14], 6144
        $region132: #{tpu_custom_call.1} parent=107 // pred_fallthru
          _
        // Predicated region
        $region133: #{tpu_custom_call.1} parent=107 // pred_check
          %p821 = pneg %p267
        $region134: #{tpu_custom_call.1} parent=107 // pred_check_branch
          %823 = sbr.rel (%p821) target = $region136
        $region135: #{tpu_custom_call.1} parent=107 // pred_region
          %824 = dma.done [#allocation14], 48
        $region136: #{tpu_custom_call.1} parent=107 // pred_fallthru
          _
        // Predicated region
        $region137: #{tpu_custom_call.1} parent=107 // pred_check
          %p825 = pneg %p288
        $region138: #{tpu_custom_call.1} parent=107 // pred_check_branch
          %827 = sbr.rel (%p825) target = $region140
        $region139: #{tpu_custom_call.1} parent=107 // pred_region
          %828 = dma.done [#allocation17], 48
        $region140: #{tpu_custom_call.1} parent=107 // pred_fallthru
          _
        // Predicated region
        $region141: #{tpu_custom_call.1} parent=107 // pred_check
          %p829 = pneg %p393
        $region142: #{tpu_custom_call.1} parent=107 // pred_check_branch
          %831 = sbr.rel (%p829) target = $region144
        $region143: #{tpu_custom_call.1} parent=107 // pred_region
          %832 = dma.done [#allocation17], 1024
        $region144: #{tpu_custom_call.1} parent=107 // pred_fallthru
          _
        // Predicated region
        $region145: #{tpu_custom_call.1} parent=107 // pred_check
          %p833 = pneg %p414
        $region146: #{tpu_custom_call.1} parent=107 // pred_check_branch
          %835 = sbr.rel (%p833) target = $region148
        $region147: #{tpu_custom_call.1} parent=107 // pred_region
          %836 = dma.done [#allocation20], 1024
        $region148: #{tpu_custom_call.1} parent=107 // pred_fallthru
          _
        // Predicated region
        $region149: #{tpu_custom_call.1} parent=107 // pred_check
          %p837 = pneg %p435
        $region150: #{tpu_custom_call.1} parent=107 // pred_check_branch
          %839 = sbr.rel (%p837) target = $region152
        $region151: #{tpu_custom_call.1} parent=107 // pred_region
          %840 = dma.done [#allocation20], 1024
        $region152: #{tpu_custom_call.1} parent=107 // pred_fallthru
          _
        // Predicated region
        $region153: #{tpu_custom_call.1} parent=107 // pred_check
          %p841 = pneg %p477
        $region154: #{tpu_custom_call.1} parent=107 // pred_check_branch
          %843 = sbr.rel (%p841) target = $region156
        $region155: #{tpu_custom_call.1} parent=107 // pred_region
          %844 = dma.done [#allocation23], 16
        $region156: #{tpu_custom_call.1} parent=107 // pred_fallthru
          _
        // Predicated region
        $region157: #{tpu_custom_call.1} parent=107 // pred_check
          %p845 = pneg %p498
        $region158: #{tpu_custom_call.1} parent=107 // pred_check_branch
          %847 = sbr.rel (%p845) target = $region160
        $region159: #{tpu_custom_call.1} parent=107 // pred_region
          %848 = dma.done [#allocation23], 2048
        $region160: #{tpu_custom_call.1} parent=107 // pred_fallthru
          _
        %s849 = sand.u32 %s55, 1
        %s850 = scalar_lea.sflag [#allocation5], %s849
        %s851 = sand.u32 %s55, 1
        %s852 = smul.addr %s851, 32
        %s853 = scalar_lea.vmem [#allocation4], %s852
        %p854 = pneg %p68
        %p855 = pneg %p65
        %s856 = sand.u32 %s47, 1
        %s857 = scalar_lea.sflag [#allocation8], %s856
        %s858 = sand.u32 %s81, 1
        %s859 = smul.addr %s858, 32
        %s860 = scalar_lea.vmem [#allocation7], %s859
        %p861 = pneg %p94
        %p862 = pneg %p91
        %s863 = sand.u32 %s47, 1
        %s864 = scalar_lea.sflag [#allocation8], %s863
        %s865 = sand.u32 %s107, 1
        %s866 = smul.addr %s865, 24
        %s867 = scalar_lea.vmem [#allocation9], %s866
        %p868 = pneg %p120
        %p869 = pneg %p117
        %p870 = pneg %p141
        %p871 = pneg %p138
        %p872 = pneg %p162
        %p873 = pneg %p159
        %p874 = pneg %p183
        %p875 = pneg %p180
        %p876 = pneg %p204
        %p877 = pneg %p201
        %p878 = pneg %p225
        %p879 = pneg %p222
        %p880 = pneg %p246
        %p881 = pneg %p243
        %p882 = pneg %p267
        %p883 = pneg %p264
        %p884 = pneg %p288
        %p885 = pneg %p285
        %p886 = pneg %p309
        %p887 = pneg %p306
        %p888 = pneg %p330
        %p889 = pneg %p327
        %p890 = pneg %p351
        %p891 = pneg %p348
        %p892 = pneg %p372
        %p893 = pneg %p369
        %p894 = pneg %p393
        %p895 = pneg %p390
        %p896 = pneg %p414
        %p897 = pneg %p411
        %p898 = pneg %p435
        %p899 = pneg %p432
        %p900 = pneg %p456
        %p901 = pneg %p453
        %p902 = pneg %p477
        %p903 = pneg %p474
        %p904 = pneg %p498
        %p905 = pneg %p495
        %p906 = pneg %p519
        %p907 = pneg %p516
        %p908 = pneg %p545
        %p909 = pneg %p542
        %s910 = sand.u32 %s532, 1
        %s911 = scalar_lea.sflag [#allocation6], %s910
        %s912 = sand.u32 %s532, 1
        %s913 = smul.addr %s912, 8
        %s914 = scalar_lea.vmem [#allocation25], %s913
        %v915 = vld [vmem:[%s786] sm:$0xff]
        %v916 = vld [vmem:[%s786 + $0x8] sm:$0xff]
        %v917 = vld [vmem:[%s786 + $0x10] sm:$0xff]
        %v918 = vld [vmem:[%s786 + $0x18] sm:$0xff]
        %v919 = vld [vmem:[%s3] sm:$0xff]
        %v920 = vld [vmem:[%s3 + $0x8] sm:$0xff]
        %v921 = vld [vmem:[%s3 + $0x10] sm:$0xff]
        %v922 = vld [vmem:[%s3 + $0x18] sm:$0xff]
        %v923 = vld [vmem:[%s3 + $0x20] sm:$0xff]
        %v924 = vld [vmem:[%s3 + $0x28] sm:$0xff]
        %v925 = vld [vmem:[%s3 + $0x30] sm:$0xff]
        %v926 = vld [vmem:[%s3 + $0x38] sm:$0xff]
        %v927 = vld [vmem:[%s3 + $0x40] sm:$0xff]
        %v928 = vld [vmem:[%s3 + $0x48] sm:$0xff]
        %v929 = vld [vmem:[%s3 + $0x50] sm:$0xff]
        %v930 = vld [vmem:[%s3 + $0x58] sm:$0xff]
        %v931 = vld [vmem:[%s3 + $0x60] sm:$0xff]
        %v932 = vld [vmem:[%s3 + $0x68] sm:$0xff]
        %v933 = vld [vmem:[%s3 + $0x70] sm:$0xff]
        %v934 = vld [vmem:[%s3 + $0x78] sm:$0xff]
        %v935 = vld [vmem:[%s3 + $0x80] sm:$0xff]
        %v936 = vld [vmem:[%s3 + $0x88] sm:$0xff]
        %v937 = vld [vmem:[%s3 + $0x90] sm:$0xff]
        %v938 = vld [vmem:[%s3 + $0x98] sm:$0xff]
        %v939 = vld [vmem:[%s3 + $0xa0] sm:$0xff]
        %v940 = vld [vmem:[%s3 + $0xa8] sm:$0xff]
        %v941 = vld [vmem:[%s3 + $0xb0] sm:$0xff]
        %v942 = vld [vmem:[%s3 + $0xb8] sm:$0xff]
        %v943 = vld [vmem:[%s5] sm:$0x7]
        %v945 = vlaneseq
        %v946 = vshrl.u32 %v945, 7
        %v947 = vsub.s32 0, %v946
        %v948 = vrot.slane %v943, %v947
        %v949 = vlaneseq
        %v950 = vshrl.u32 %v949, 7
        %v951 = vsub.s32 1, %v950
        %v952 = vrot.slane %v943, %v951
        %v953 = vlaneseq
        %v954 = vshrl.u32 %v953, 7
        %v955 = vsub.s32 2, %v954
        %v956 = vrot.slane %v943, %v955
        %vm960 = vcmask 523264
        %v962 = vsel %vm960, %v915, 0
        %v965 = vsel %vm960, %v916, 0
        %v968 = vsel %vm960, %v917, 0
        %v971 = vsel %vm960, %v918, 0
        %973 = vmatprep.subr.mxu0 %v920
        %974 = vmatpush1.msra.mxu0 %v919
        %975 = vmatprep.subr.mxu0 %v923
        %976 = vmatpush1.msra.mxu0 %v922
        %977 = vmatprep.subr.mxu0 %v926
        %978 = vmatpush1.msra.mxu0 %v925
        %979 = vmatprep.subr.mxu0 %v929
        %980 = vmatpush1.msra.mxu0 %v928
        %981 = vmatprep.subr.mxu0 %v932
        %982 = vmatpush1.msra.mxu0 %v931
        %983 = vmatprep.subr.mxu0 %v935
        %984 = vmatpush1.msra.mxu0 %v934
        %985 = vmatprep.subr.mxu0 %v938
        %986 = vmatpush1.msra.mxu0 %v937
        %987 = vmatprep.subr.mxu0 %v941
        %988 = vmatpush1.msra.mxu0 %v940
        %989 = vmatprep.subr.mxu0 0.0
        %990 = vmatpush1.msra.mxu0 0.0
        %991 = vmatprep.subr.mxu0 0.0
        %992 = vmatpush1.msra.mxu0 0.0
        %993 = vmatprep.subr.mxu0 0.0
        %994 = vmatpush1.msra.mxu0 0.0
        %995 = vmatprep.subr.mxu0 0.0
        %996 = vmatpush1.msra.mxu0 0.0
        %997 = vmatprep.subr.mxu0 0.0
        %998 = vmatpush1.msra.mxu0 0.0
        %999 = vmatprep.subr.mxu0 0.0
        %1000 = vmatpush1.msra.mxu0 0.0
        %1001 = vmatprep.subr.mxu0 0.0
        %1002 = vmatpush1.msra.mxu0 0.0
        %1003 = vmatprep.subr.mxu0 0.0
        %1004 = vmatpush1.msra.mxu0 0.0
        %1005 = vmatprep.subr.mxu0 0.0
        %1006 = vmatpush1.msra.mxu0 0.0
        %1007 = vmatprep.subr.mxu0 0.0
        %1008 = vmatpush1.msra.mxu0 0.0
        %1009 = vmatprep.subr.mxu0 0.0
        %1010 = vmatpush1.msra.mxu0 0.0
        %1011 = vmatprep.subr.mxu0 0.0
        %1012 = vmatpush1.msra.mxu0 0.0
        %1013 = vmatprep.subr.mxu0 0.0
        %1014 = vmatpush1.msra.mxu0 0.0
        %1015 = vmatprep.subr.mxu0 0.0
        %1016 = vmatpush1.msra.mxu0 0.0
        %1017 = vmatprep.subr.mxu0 0.0
        %1018 = vmatpush1.msra.mxu0 0.0
        %1019 = vmatprep.subr.mxu0 0.0
        %1020 = vmatpush1.msra.mxu0 0.0
        %1021 = vmatprep.subr.mxu0 0.0
        %1022 = vmatpush1.msra.mxu0 0.0
        %1023 = vmatprep.subr.mxu0 0.0
        %1024 = vmatpush1.msra.mxu0 0.0
        %1025 = vmatprep.subr.mxu0 0.0
        %1026 = vmatpush1.msra.mxu0 0.0
        %1027 = vmatprep.subr.mxu0 0.0
        %1028 = vmatpush1.msra.mxu0 0.0
        %1029 = vmatprep.subr.mxu0 0.0
        %1030 = vmatpush1.msra.mxu0 0.0
        %1031 = vmatprep.subr.mxu0 0.0
        %1032 = vmatpush1.msra.mxu0 0.0
        %1033 = vmatprep.subr.mxu0 0.0
        %1034 = vmatpush1.msra.mxu0 0.0
        %1035 = vmatprep.subr.mxu0 0.0
        %1036 = vmatpush1.msra.mxu0 0.0
        %1037 = vmatprep.mubr.f32.mxu0 0.0
        %1038 = vmatmul.mubr.f32.gmra.mrb[0].mxu0 %v962
        %v1039 = vpop.f32.mrb[0].mxu0
        %v1040 = vadd.f32 %v948, %v1039
        %v1041 = vpop.f32.mrb[0].mxu0
        %v1042 = vadd.f32 %v952, %v1041
        %1043 = vmatprep.mubr.f32.mxu0 0.0
        %1044 = vmatmul.mubr.f32.gmra.mrb[0].mxu0 %v965
        %v1045 = vpop.f32.mrb[0].mxu0
        %v1046 = vadd.f32 %v948, %v1045
        %v1047 = vpop.f32.mrb[0].mxu0
        %v1048 = vadd.f32 %v952, %v1047
        %1049 = vmatprep.mubr.f32.mxu0 0.0
        %1050 = vmatmul.mubr.f32.gmra.mrb[0].mxu0 %v968
        %v1051 = vpop.f32.mrb[0].mxu0
        %v1052 = vadd.f32 %v948, %v1051
        %v1053 = vpop.f32.mrb[0].mxu0
        %v1054 = vadd.f32 %v952, %v1053
        %1055 = vmatprep.mubr.f32.mxu0 0.0
        %1056 = vmatmul.mubr.f32.gmra.mrb[0].mxu0 %v971
        %v1057 = vpop.f32.mrb[0].mxu0
        %v1058 = vadd.f32 %v948, %v1057
        %v1059 = vpop.f32.mrb[0].mxu0
        %v1060 = vadd.f32 %v952, %v1059
        %1061 = vdwg.mxu0
        %1062 = vmatprep.subr.mxu0 0.0
        %1063 = vmatpush1.msra.mxu0 %v921
        %1064 = vmatprep.subr.mxu0 0.0
        %1065 = vmatpush1.msra.mxu0 %v924
        %1066 = vmatprep.subr.mxu0 0.0
        %1067 = vmatpush1.msra.mxu0 %v927
        %1068 = vmatprep.subr.mxu0 0.0
        %1069 = vmatpush1.msra.mxu0 %v930
        %1070 = vmatprep.subr.mxu0 0.0
        %1071 = vmatpush1.msra.mxu0 %v933
        %1072 = vmatprep.subr.mxu0 0.0
        %1073 = vmatpush1.msra.mxu0 %v936
        %1074 = vmatprep.subr.mxu0 0.0
        %1075 = vmatpush1.msra.mxu0 %v939
        %1076 = vmatprep.subr.mxu0 0.0
        %1077 = vmatpush1.msra.mxu0 %v942
        %1078 = vmatprep.subr.mxu0 0.0
        %1079 = vmatpush1.msra.mxu0 0.0
        %1080 = vmatprep.subr.mxu0 0.0
        %1081 = vmatpush1.msra.mxu0 0.0
        %1082 = vmatprep.subr.mxu0 0.0
        %1083 = vmatpush1.msra.mxu0 0.0
        %1084 = vmatprep.subr.mxu0 0.0
        %1085 = vmatpush1.msra.mxu0 0.0
        %1086 = vmatprep.subr.mxu0 0.0
        %1087 = vmatpush1.msra.mxu0 0.0
        %1088 = vmatprep.subr.mxu0 0.0
        %1089 = vmatpush1.msra.mxu0 0.0
        %1090 = vmatprep.subr.mxu0 0.0
        %1091 = vmatpush1.msra.mxu0 0.0
        %1092 = vmatprep.subr.mxu0 0.0
        %1093 = vmatpush1.msra.mxu0 0.0
        %1094 = vmatprep.subr.mxu0 0.0
        %1095 = vmatpush1.msra.mxu0 0.0
        %1096 = vmatprep.subr.mxu0 0.0
        %1097 = vmatpush1.msra.mxu0 0.0
        %1098 = vmatprep.subr.mxu0 0.0
        %1099 = vmatpush1.msra.mxu0 0.0
        %1100 = vmatprep.subr.mxu0 0.0
        %1101 = vmatpush1.msra.mxu0 0.0
        %1102 = vmatprep.subr.mxu0 0.0
        %1103 = vmatpush1.msra.mxu0 0.0
        %1104 = vmatprep.subr.mxu0 0.0
        %1105 = vmatpush1.msra.mxu0 0.0
        %1106 = vmatprep.subr.mxu0 0.0
        %1107 = vmatpush1.msra.mxu0 0.0
        %1108 = vmatprep.subr.mxu0 0.0
        %1109 = vmatpush1.msra.mxu0 0.0
        %1110 = vmatprep.subr.mxu0 0.0
        %1111 = vmatpush1.msra.mxu0 0.0
        %1112 = vmatprep.subr.mxu0 0.0
        %1113 = vmatpush1.msra.mxu0 0.0
        %1114 = vmatprep.subr.mxu0 0.0
        %1115 = vmatpush1.msra.mxu0 0.0
        %1116 = vmatprep.subr.mxu0 0.0
        %1117 = vmatpush1.msra.mxu0 0.0
        %1118 = vmatprep.subr.mxu0 0.0
        %1119 = vmatpush1.msra.mxu0 0.0
        %1120 = vmatprep.subr.mxu0 0.0
        %1121 = vmatpush1.msra.mxu0 0.0
        %1122 = vmatprep.subr.mxu0 0.0
        %1123 = vmatpush1.msra.mxu0 0.0
        %1124 = vmatprep.subr.mxu0 0.0
        %1125 = vmatpush1.msra.mxu0 0.0
        %1126 = vmatprep.mubr.f32.mxu0 0.0
        %1127 = vmatmul.mubr.f32.gmra.mrb[0].mxu0 %v962
        %v1128 = vpop.f32.mrb[0].mxu0
        %v1129 = vadd.f32 %v956, %v1128
        %v1130 = vpop.f32.mrb[0].mxu0
        %1131 = vmatprep.mubr.f32.mxu0 0.0
        %1132 = vmatmul.mubr.f32.gmra.mrb[0].mxu0 %v965
        %v1133 = vpop.f32.mrb[0].mxu0
        %v1134 = vadd.f32 %v956, %v1133
        %v1135 = vpop.f32.mrb[0].mxu0
        %1136 = vmatprep.mubr.f32.mxu0 0.0
        %1137 = vmatmul.mubr.f32.gmra.mrb[0].mxu0 %v968
        %v1138 = vpop.f32.mrb[0].mxu0
        %v1139 = vadd.f32 %v956, %v1138
        %v1140 = vpop.f32.mrb[0].mxu0
        %1141 = vmatprep.mubr.f32.mxu0 0.0
        %1142 = vmatmul.mubr.f32.gmra.mrb[0].mxu0 %v971
        %v1143 = vpop.f32.mrb[0].mxu0
        %v1144 = vadd.f32 %v956, %v1143
        %v1145 = vpop.f32.mrb[0].mxu0
        %1146 = vdwg.mxu0
        %v1147 = vld [vmem:[%s795] sm:$0xff]
        %v1148 = vld [vmem:[%s795 + $0x8] sm:$0xff]
        %v1149 = vld [vmem:[%s795 + $0x10] sm:$0xff]
        %v1150 = vld [vmem:[%s795 + $0x18] sm:$0xff]
        %v1151 = vld [vmem:[#allocation12] sm:$0xff]
        %v1152 = vld [vmem:[#allocation12 + $0x8] sm:$0xff]
        %v1153 = vld [vmem:[#allocation12 + $0x10] sm:$0xff]
        %v1154 = vld [vmem:[#allocation12 + $0x18] sm:$0xff]
        %v1155 = vld [vmem:[#allocation12 + $0x20] sm:$0xff]
        %v1156 = vld [vmem:[#allocation12 + $0x28] sm:$0xff]
        %v1157 = vld [vmem:[#allocation12 + $0x30] sm:$0xff]
        %v1158 = vld [vmem:[#allocation12 + $0x38] sm:$0xff]
        %v1159 = vld [vmem:[#allocation12 + $0x40] sm:$0xff]
        %v1160 = vld [vmem:[#allocation12 + $0x48] sm:$0xff]
        %v1161 = vld [vmem:[#allocation12 + $0x50] sm:$0xff]
        %v1162 = vld [vmem:[#allocation12 + $0x58] sm:$0xff]
        %v1163 = vld [vmem:[#allocation12 + $0x60] sm:$0xff]
        %v1164 = vld [vmem:[#allocation12 + $0x68] sm:$0xff]
        %v1165 = vld [vmem:[#allocation12 + $0x70] sm:$0xff]
        %v1166 = vld [vmem:[#allocation12 + $0x78] sm:$0xff]
        %v1167 = vld [vmem:[#allocation12 + $0x80] sm:$0xff]
        %v1168 = vld [vmem:[#allocation12 + $0x88] sm:$0xff]
        %v1169 = vld [vmem:[#allocation12 + $0x90] sm:$0xff]
        %v1170 = vld [vmem:[#allocation12 + $0x98] sm:$0xff]
        %v1171 = vld [vmem:[#allocation12 + $0xa0] sm:$0xff]
        %v1172 = vld [vmem:[#allocation12 + $0xa8] sm:$0xff]
        %v1173 = vld [vmem:[#allocation12 + $0xb0] sm:$0xff]
        %v1174 = vld [vmem:[#allocation12 + $0xb8] sm:$0xff]
        %v1175 = vld [vmem:[#allocation15] sm:$0x7]
        %v1177 = vlaneseq
        %v1178 = vshrl.u32 %v1177, 7
        %v1179 = vsub.s32 0, %v1178
        %v1180 = vrot.slane %v1175, %v1179
        %v1181 = vlaneseq
        %v1182 = vshrl.u32 %v1181, 7
        %v1183 = vsub.s32 1, %v1182
        %v1184 = vrot.slane %v1175, %v1183
        %v1185 = vlaneseq
        %v1186 = vshrl.u32 %v1185, 7
        %v1187 = vsub.s32 2, %v1186
        %v1188 = vrot.slane %v1175, %v1187
        %v1193 = vsel %vm960, %v1147, 0
        %v1196 = vsel %vm960, %v1148, 0
        %v1199 = vsel %vm960, %v1149, 0
        %v1202 = vsel %vm960, %v1150, 0
        %1204 = vmatprep.subr.mxu0 %v1152
        %1205 = vmatpush1.msra.mxu0 %v1151
        %1206 = vmatprep.subr.mxu0 %v1155
        %1207 = vmatpush1.msra.mxu0 %v1154
        %1208 = vmatprep.subr.mxu0 %v1158
        %1209 = vmatpush1.msra.mxu0 %v1157
        %1210 = vmatprep.subr.mxu0 %v1161
        %1211 = vmatpush1.msra.mxu0 %v1160
        %1212 = vmatprep.subr.mxu0 %v1164
        %1213 = vmatpush1.msra.mxu0 %v1163
        %1214 = vmatprep.subr.mxu0 %v1167
        %1215 = vmatpush1.msra.mxu0 %v1166
        %1216 = vmatprep.subr.mxu0 %v1170
        %1217 = vmatpush1.msra.mxu0 %v1169
        %1218 = vmatprep.subr.mxu0 %v1173
        %1219 = vmatpush1.msra.mxu0 %v1172
        %1220 = vmatprep.subr.mxu0 0.0
        %1221 = vmatpush1.msra.mxu0 0.0
        %1222 = vmatprep.subr.mxu0 0.0
        %1223 = vmatpush1.msra.mxu0 0.0
        %1224 = vmatprep.subr.mxu0 0.0
        %1225 = vmatpush1.msra.mxu0 0.0
        %1226 = vmatprep.subr.mxu0 0.0
        %1227 = vmatpush1.msra.mxu0 0.0
        %1228 = vmatprep.subr.mxu0 0.0
        %1229 = vmatpush1.msra.mxu0 0.0
        %1230 = vmatprep.subr.mxu0 0.0
        %1231 = vmatpush1.msra.mxu0 0.0
        %1232 = vmatprep.subr.mxu0 0.0
        %1233 = vmatpush1.msra.mxu0 0.0
        %1234 = vmatprep.subr.mxu0 0.0
        %1235 = vmatpush1.msra.mxu0 0.0
        %1236 = vmatprep.subr.mxu0 0.0
        %1237 = vmatpush1.msra.mxu0 0.0
        %1238 = vmatprep.subr.mxu0 0.0
        %1239 = vmatpush1.msra.mxu0 0.0
        %1240 = vmatprep.subr.mxu0 0.0
        %1241 = vmatpush1.msra.mxu0 0.0
        %1242 = vmatprep.subr.mxu0 0.0
        %1243 = vmatpush1.msra.mxu0 0.0
        %1244 = vmatprep.subr.mxu0 0.0
        %1245 = vmatpush1.msra.mxu0 0.0
        %1246 = vmatprep.subr.mxu0 0.0
        %1247 = vmatpush1.msra.mxu0 0.0
        %1248 = vmatprep.subr.mxu0 0.0
        %1249 = vmatpush1.msra.mxu0 0.0
        %1250 = vmatprep.subr.mxu0 0.0
        %1251 = vmatpush1.msra.mxu0 0.0
        %1252 = vmatprep.subr.mxu0 0.0
        %1253 = vmatpush1.msra.mxu0 0.0
        %1254 = vmatprep.subr.mxu0 0.0
        %1255 = vmatpush1.msra.mxu0 0.0
        %1256 = vmatprep.subr.mxu0 0.0
        %1257 = vmatpush1.msra.mxu0 0.0
        %1258 = vmatprep.subr.mxu0 0.0
        %1259 = vmatpush1.msra.mxu0 0.0
        %1260 = vmatprep.subr.mxu0 0.0
        %1261 = vmatpush1.msra.mxu0 0.0
        %1262 = vmatprep.subr.mxu0 0.0
        %1263 = vmatpush1.msra.mxu0 0.0
        %1264 = vmatprep.subr.mxu0 0.0
        %1265 = vmatpush1.msra.mxu0 0.0
        %1266 = vmatprep.subr.mxu0 0.0
        %1267 = vmatpush1.msra.mxu0 0.0
        %1268 = vmatprep.mubr.f32.mxu0 0.0
        %1269 = vmatmul.mubr.f32.gmra.mrb[0].mxu0 %v1193
        %v1270 = vpop.f32.mrb[0].mxu0
        %v1271 = vadd.f32 %v1180, %v1270
        %v1272 = vpop.f32.mrb[0].mxu0
        %v1273 = vadd.f32 %v1184, %v1272
        %1274 = vmatprep.mubr.f32.mxu0 0.0
        %1275 = vmatmul.mubr.f32.gmra.mrb[0].mxu0 %v1196
        %v1276 = vpop.f32.mrb[0].mxu0
        %v1277 = vadd.f32 %v1180, %v1276
        %v1278 = vpop.f32.mrb[0].mxu0
        %v1279 = vadd.f32 %v1184, %v1278
        %1280 = vmatprep.mubr.f32.mxu0 0.0
        %1281 = vmatmul.mubr.f32.gmra.mrb[0].mxu0 %v1199
        %v1282 = vpop.f32.mrb[0].mxu0
        %v1283 = vadd.f32 %v1180, %v1282
        %v1284 = vpop.f32.mrb[0].mxu0
        %v1285 = vadd.f32 %v1184, %v1284
        %1286 = vmatprep.mubr.f32.mxu0 0.0
        %1287 = vmatmul.mubr.f32.gmra.mrb[0].mxu0 %v1202
        %v1288 = vpop.f32.mrb[0].mxu0
        %v1289 = vadd.f32 %v1180, %v1288
        %v1290 = vpop.f32.mrb[0].mxu0
        %v1291 = vadd.f32 %v1184, %v1290
        %1292 = vdwg.mxu0
        %1293 = vmatprep.subr.mxu0 0.0
        %1294 = vmatpush1.msra.mxu0 %v1153
        %1295 = vmatprep.subr.mxu0 0.0
        %1296 = vmatpush1.msra.mxu0 %v1156
        %1297 = vmatprep.subr.mxu0 0.0
        %1298 = vmatpush1.msra.mxu0 %v1159
        %1299 = vmatprep.subr.mxu0 0.0
        %1300 = vmatpush1.msra.mxu0 %v1162
        %1301 = vmatprep.subr.mxu0 0.0
        %1302 = vmatpush1.msra.mxu0 %v1165
        %1303 = vmatprep.subr.mxu0 0.0
        %1304 = vmatpush1.msra.mxu0 %v1168
        %1305 = vmatprep.subr.mxu0 0.0
        %1306 = vmatpush1.msra.mxu0 %v1171
        %1307 = vmatprep.subr.mxu0 0.0
        %1308 = vmatpush1.msra.mxu0 %v1174
        %1309 = vmatprep.subr.mxu0 0.0
        %1310 = vmatpush1.msra.mxu0 0.0
        %1311 = vmatprep.subr.mxu0 0.0
        %1312 = vmatpush1.msra.mxu0 0.0
        %1313 = vmatprep.subr.mxu0 0.0
        %1314 = vmatpush1.msra.mxu0 0.0
        %1315 = vmatprep.subr.mxu0 0.0
        %1316 = vmatpush1.msra.mxu0 0.0
        %1317 = vmatprep.subr.mxu0 0.0
        %1318 = vmatpush1.msra.mxu0 0.0
        %1319 = vmatprep.subr.mxu0 0.0
        %1320 = vmatpush1.msra.mxu0 0.0
        %1321 = vmatprep.subr.mxu0 0.0
        %1322 = vmatpush1.msra.mxu0 0.0
        %1323 = vmatprep.subr.mxu0 0.0
        %1324 = vmatpush1.msra.mxu0 0.0
        %1325 = vmatprep.subr.mxu0 0.0
        %1326 = vmatpush1.msra.mxu0 0.0
        %1327 = vmatprep.subr.mxu0 0.0
        %1328 = vmatpush1.msra.mxu0 0.0
        %1329 = vmatprep.subr.mxu0 0.0
        %1330 = vmatpush1.msra.mxu0 0.0
        %1331 = vmatprep.subr.mxu0 0.0
        %1332 = vmatpush1.msra.mxu0 0.0
        %1333 = vmatprep.subr.mxu0 0.0
        %1334 = vmatpush1.msra.mxu0 0.0
        %1335 = vmatprep.subr.mxu0 0.0
        %1336 = vmatpush1.msra.mxu0 0.0
        %1337 = vmatprep.subr.mxu0 0.0
        %1338 = vmatpush1.msra.mxu0 0.0
        %1339 = vmatprep.subr.mxu0 0.0
        %1340 = vmatpush1.msra.mxu0 0.0
        %1341 = vmatprep.subr.mxu0 0.0
        %1342 = vmatpush1.msra.mxu0 0.0
        %1343 = vmatprep.subr.mxu0 0.0
        %1344 = vmatpush1.msra.mxu0 0.0
        %1345 = vmatprep.subr.mxu0 0.0
        %1346 = vmatpush1.msra.mxu0 0.0
        %1347 = vmatprep.subr.mxu0 0.0
        %1348 = vmatpush1.msra.mxu0 0.0
        %1349 = vmatprep.subr.mxu0 0.0
        %1350 = vmatpush1.msra.mxu0 0.0
        %1351 = vmatprep.subr.mxu0 0.0
        %1352 = vmatpush1.msra.mxu0 0.0
        %1353 = vmatprep.subr.mxu0 0.0
        %1354 = vmatpush1.msra.mxu0 0.0
        %1355 = vmatprep.subr.mxu0 0.0
        %1356 = vmatpush1.msra.mxu0 0.0
        %1357 = vmatprep.mubr.f32.mxu0 0.0
        %1358 = vmatmul.mubr.f32.gmra.mrb[0].mxu0 %v1193
        %v1359 = vpop.f32.mrb[0].mxu0
        %v1360 = vadd.f32 %v1188, %v1359
        %v1361 = vpop.f32.mrb[0].mxu0
        %1362 = vmatprep.mubr.f32.mxu0 0.0
        %1363 = vmatmul.mubr.f32.gmra.mrb[0].mxu0 %v1196
        %v1364 = vpop.f32.mrb[0].mxu0
        %v1365 = vadd.f32 %v1188, %v1364
        %v1366 = vpop.f32.mrb[0].mxu0
        %1367 = vmatprep.mubr.f32.mxu0 0.0
        %1368 = vmatmul.mubr.f32.gmra.mrb[0].mxu0 %v1199
        %v1369 = vpop.f32.mrb[0].mxu0
        %v1370 = vadd.f32 %v1188, %v1369
        %v1371 = vpop.f32.mrb[0].mxu0
        %1372 = vmatprep.mubr.f32.mxu0 0.0
        %1373 = vmatmul.mubr.f32.gmra.mrb[0].mxu0 %v1202
        %v1374 = vpop.f32.mrb[0].mxu0
        %v1375 = vadd.f32 %v1188, %v1374
        %v1376 = vpop.f32.mrb[0].mxu0
        %1377 = vdwg.mxu0
        %v1378 = vld [vmem:[%s4] sm:$0xff]
        %v1379 = vld [vmem:[%s4 + $0x8] sm:$0xff]
        %v1380 = vld [vmem:[%s4 + $0x10] sm:$0xff]
        %v1381 = vld [vmem:[%s4 + $0x18] sm:$0xff]
        %v1382 = vld [vmem:[%s4 + $0x20] sm:$0xff]
        %v1383 = vld [vmem:[%s4 + $0x28] sm:$0xff]
        %v1384 = vld [vmem:[%s4 + $0x30] sm:$0xff]
        %v1385 = vld [vmem:[%s4 + $0x38] sm:$0xff]
        %v1386 = vld [vmem:[%s4 + $0x40] sm:$0xff]
        %v1387 = vld [vmem:[%s4 + $0x48] sm:$0xff]
        %v1388 = vld [vmem:[%s4 + $0x50] sm:$0xff]
        %v1389 = vld [vmem:[%s4 + $0x58] sm:$0xff]
        %v1390 = vld [vmem:[%s4 + $0x60] sm:$0xff]
        %v1391 = vld [vmem:[%s4 + $0x68] sm:$0xff]
        %v1392 = vld [vmem:[%s4 + $0x70] sm:$0xff]
        %v1393 = vld [vmem:[%s4 + $0x78] sm:$0xff]
        %v1394 = vld [vmem:[%s4 + $0x80] sm:$0xff]
        %v1395 = vld [vmem:[%s4 + $0x88] sm:$0xff]
        %v1396 = vld [vmem:[%s4 + $0x90] sm:$0xff]
        %v1397 = vld [vmem:[%s4 + $0x98] sm:$0xff]
        %v1398 = vld [vmem:[%s4 + $0xa0] sm:$0xff]
        %v1399 = vld [vmem:[%s4 + $0xa8] sm:$0xff]
        %v1400 = vld [vmem:[%s4 + $0xb0] sm:$0xff]
        %v1401 = vld [vmem:[%s4 + $0xb8] sm:$0xff]
        %v1402 = vld [vmem:[%s4 + $0xc0] sm:$0xff]
        %v1403 = vld [vmem:[%s4 + $0xc8] sm:$0xff]
        %v1404 = vld [vmem:[%s4 + $0xd0] sm:$0xff]
        %v1405 = vld [vmem:[%s4 + $0xd8] sm:$0xff]
        %v1406 = vld [vmem:[%s4 + $0xe0] sm:$0xff]
        %v1407 = vld [vmem:[%s4 + $0xe8] sm:$0xff]
        %v1408 = vld [vmem:[%s4 + $0xf0] sm:$0xff]
        %v1409 = vld [vmem:[%s4 + $0xf8] sm:$0xff]
        %v1410 = vld [vmem:[%s4 + $0x100] sm:$0xff]
        %v1411 = vld [vmem:[%s4 + $0x108] sm:$0xff]
        %v1412 = vld [vmem:[%s4 + $0x110] sm:$0xff]
        %v1413 = vld [vmem:[%s4 + $0x118] sm:$0xff]
        %v1414 = vld [vmem:[%s4 + $0x120] sm:$0xff]
        %v1415 = vld [vmem:[%s4 + $0x128] sm:$0xff]
        %v1416 = vld [vmem:[%s4 + $0x130] sm:$0xff]
        %v1417 = vld [vmem:[%s4 + $0x138] sm:$0xff]
        %v1418 = vld [vmem:[%s4 + $0x140] sm:$0xff]
        %v1419 = vld [vmem:[%s4 + $0x148] sm:$0xff]
        %v1420 = vld [vmem:[%s4 + $0x150] sm:$0xff]
        %v1421 = vld [vmem:[%s4 + $0x158] sm:$0xff]
        %v1422 = vld [vmem:[%s4 + $0x160] sm:$0xff]
        %v1423 = vld [vmem:[%s4 + $0x168] sm:$0xff]
        %v1424 = vld [vmem:[%s4 + $0x170] sm:$0xff]
        %v1425 = vld [vmem:[%s4 + $0x178] sm:$0xff]
        %v1426 = vld [vmem:[#allocation13] sm:$0xff]
        %v1427 = vld [vmem:[#allocation13 + $0x8] sm:$0xff]
        %v1428 = vld [vmem:[#allocation13 + $0x10] sm:$0xff]
        %v1429 = vld [vmem:[#allocation13 + $0x18] sm:$0xff]
        %v1430 = vld [vmem:[#allocation13 + $0x20] sm:$0xff]
        %v1431 = vld [vmem:[#allocation13 + $0x28] sm:$0xff]
        %v1432 = vld [vmem:[#allocation13 + $0x30] sm:$0xff]
        %v1433 = vld [vmem:[#allocation13 + $0x38] sm:$0xff]
        %v1434 = vld [vmem:[#allocation13 + $0x40] sm:$0xff]
        %v1435 = vld [vmem:[#allocation13 + $0x48] sm:$0xff]
        %v1436 = vld [vmem:[#allocation13 + $0x50] sm:$0xff]
        %v1437 = vld [vmem:[#allocation13 + $0x58] sm:$0xff]
        %v1438 = vld [vmem:[#allocation13 + $0x60] sm:$0xff]
        %v1439 = vld [vmem:[#allocation13 + $0x68] sm:$0xff]
        %v1440 = vld [vmem:[#allocation13 + $0x70] sm:$0xff]
        %v1441 = vld [vmem:[#allocation13 + $0x78] sm:$0xff]
        %v1442 = vld [vmem:[#allocation13 + $0x80] sm:$0xff]
        %v1443 = vld [vmem:[#allocation13 + $0x88] sm:$0xff]
        %v1444 = vld [vmem:[#allocation13 + $0x90] sm:$0xff]
        %v1445 = vld [vmem:[#allocation13 + $0x98] sm:$0xff]
        %v1446 = vld [vmem:[#allocation13 + $0xa0] sm:$0xff]
        %v1447 = vld [vmem:[#allocation13 + $0xa8] sm:$0xff]
        %v1448 = vld [vmem:[#allocation13 + $0xb0] sm:$0xff]
        %v1449 = vld [vmem:[#allocation13 + $0xb8] sm:$0xff]
        %v1450 = vld [vmem:[#allocation13 + $0xc0] sm:$0xff]
        %v1451 = vld [vmem:[#allocation13 + $0xc8] sm:$0xff]
        %v1452 = vld [vmem:[#allocation13 + $0xd0] sm:$0xff]
        %v1453 = vld [vmem:[#allocation13 + $0xd8] sm:$0xff]
        %v1454 = vld [vmem:[#allocation13 + $0xe0] sm:$0xff]
        %v1455 = vld [vmem:[#allocation13 + $0xe8] sm:$0xff]
        %v1456 = vld [vmem:[#allocation13 + $0xf0] sm:$0xff]
        %v1457 = vld [vmem:[#allocation13 + $0xf8] sm:$0xff]
        %v1458 = vld [vmem:[#allocation13 + $0x100] sm:$0xff]
        %v1459 = vld [vmem:[#allocation13 + $0x108] sm:$0xff]
        %v1460 = vld [vmem:[#allocation13 + $0x110] sm:$0xff]
        %v1461 = vld [vmem:[#allocation13 + $0x118] sm:$0xff]
        %v1462 = vld [vmem:[#allocation13 + $0x120] sm:$0xff]
        %v1463 = vld [vmem:[#allocation13 + $0x128] sm:$0xff]
        %v1464 = vld [vmem:[#allocation13 + $0x130] sm:$0xff]
        %v1465 = vld [vmem:[#allocation13 + $0x138] sm:$0xff]
        %v1466 = vld [vmem:[#allocation13 + $0x140] sm:$0xff]
        %v1467 = vld [vmem:[#allocation13 + $0x148] sm:$0xff]
        %v1468 = vld [vmem:[#allocation13 + $0x150] sm:$0xff]
        %v1469 = vld [vmem:[#allocation13 + $0x158] sm:$0xff]
        %v1470 = vld [vmem:[#allocation13 + $0x160] sm:$0xff]
        %v1471 = vld [vmem:[#allocation13 + $0x168] sm:$0xff]
        %v1472 = vld [vmem:[#allocation13 + $0x170] sm:$0xff]
        %v1473 = vld [vmem:[#allocation13 + $0x178] sm:$0xff]
        %v1474 = vld [vmem:[#allocation10] sm:$0x7]
        %v1475 = vld [vmem:[#allocation16] sm:$0x7]
        %v1477 = vlaneseq
        %v1478 = vshrl.u32 %v1477, 7
        %v1479 = vsub.s32 0, %v1478
        %v1480 = vrot.slane %v1474, %v1479
        %v1481 = vlaneseq
        %v1482 = vshrl.u32 %v1481, 7
        %v1483 = vsub.s32 1, %v1482
        %v1484 = vrot.slane %v1474, %v1483
        %v1485 = vlaneseq
        %v1486 = vshrl.u32 %v1485, 7
        %v1487 = vsub.s32 2, %v1486
        %v1488 = vrot.slane %v1474, %v1487
        %1492 = vmatprep.subr.mxu0 %v1379
        %1493 = vmatpush1.msra.mxu0 %v1378
        %1494 = vmatprep.subr.mxu0 %v1382
        %1495 = vmatpush1.msra.mxu0 %v1381
        %1496 = vmatprep.subr.mxu0 %v1385
        %1497 = vmatpush1.msra.mxu0 %v1384
        %1498 = vmatprep.subr.mxu0 %v1388
        %1499 = vmatpush1.msra.mxu0 %v1387
        %1500 = vmatprep.subr.mxu0 %v1391
        %1501 = vmatpush1.msra.mxu0 %v1390
        %1502 = vmatprep.subr.mxu0 %v1394
        %1503 = vmatpush1.msra.mxu0 %v1393
        %1504 = vmatprep.subr.mxu0 %v1397
        %1505 = vmatpush1.msra.mxu0 %v1396
        %1506 = vmatprep.subr.mxu0 %v1400
        %1507 = vmatpush1.msra.mxu0 %v1399
        %1508 = vmatprep.subr.mxu0 %v1403
        %1509 = vmatpush1.msra.mxu0 %v1402
        %1510 = vmatprep.subr.mxu0 %v1406
        %1511 = vmatpush1.msra.mxu0 %v1405
        %1512 = vmatprep.subr.mxu0 %v1409
        %1513 = vmatpush1.msra.mxu0 %v1408
        %1514 = vmatprep.subr.mxu0 %v1412
        %1515 = vmatpush1.msra.mxu0 %v1411
        %1516 = vmatprep.subr.mxu0 %v1415
        %1517 = vmatpush1.msra.mxu0 %v1414
        %1518 = vmatprep.subr.mxu0 %v1418
        %1519 = vmatpush1.msra.mxu0 %v1417
        %1520 = vmatprep.subr.mxu0 %v1421
        %1521 = vmatpush1.msra.mxu0 %v1420
        %1522 = vmatprep.subr.mxu0 %v1424
        %1523 = vmatpush1.msra.mxu0 %v1423
        %1524 = vmatprep.subr.mxu0 0.0
        %1525 = vmatpush1.msra.mxu0 0.0
        %1526 = vmatprep.subr.mxu0 0.0
        %1527 = vmatpush1.msra.mxu0 0.0
        %1528 = vmatprep.subr.mxu0 0.0
        %1529 = vmatpush1.msra.mxu0 0.0
        %1530 = vmatprep.subr.mxu0 0.0
        %1531 = vmatpush1.msra.mxu0 0.0
        %1532 = vmatprep.subr.mxu0 0.0
        %1533 = vmatpush1.msra.mxu0 0.0
        %1534 = vmatprep.subr.mxu0 0.0
        %1535 = vmatpush1.msra.mxu0 0.0
        %1536 = vmatprep.subr.mxu0 0.0
        %1537 = vmatpush1.msra.mxu0 0.0
        %1538 = vmatprep.subr.mxu0 0.0
        %1539 = vmatpush1.msra.mxu0 0.0
        %1540 = vmatprep.subr.mxu0 0.0
        %1541 = vmatpush1.msra.mxu0 0.0
        %1542 = vmatprep.subr.mxu0 0.0
        %1543 = vmatpush1.msra.mxu0 0.0
        %1544 = vmatprep.subr.mxu0 0.0
        %1545 = vmatpush1.msra.mxu0 0.0
        %1546 = vmatprep.subr.mxu0 0.0
        %1547 = vmatpush1.msra.mxu0 0.0
        %1548 = vmatprep.subr.mxu0 0.0
        %1549 = vmatpush1.msra.mxu0 0.0
        %1550 = vmatprep.subr.mxu0 0.0
        %1551 = vmatpush1.msra.mxu0 0.0
        %1552 = vmatprep.subr.mxu0 0.0
        %1553 = vmatpush1.msra.mxu0 0.0
        %1554 = vmatprep.subr.mxu0 0.0
        %1555 = vmatpush1.msra.mxu0 0.0
        %1556 = vmatprep.mubr.f32.mxu0 0.0
        %1557 = vmatmul.mubr.f32.gmra.mrb[0].mxu0 0.0
        %v1558 = vpop.f32.mrb[0].mxu0
        %v1559 = vadd.f32 %v1480, %v1558
        %v1560 = vpop.f32.mrb[0].mxu0
        %v1561 = vadd.f32 %v1484, %v1560
        %1562 = vdwg.mxu0
        %1563 = vmatprep.subr.mxu0 0.0
        %1564 = vmatpush1.msra.mxu0 %v1380
        %1565 = vmatprep.subr.mxu0 0.0
        %1566 = vmatpush1.msra.mxu0 %v1383
        %1567 = vmatprep.subr.mxu0 0.0
        %1568 = vmatpush1.msra.mxu0 %v1386
        %1569 = vmatprep.subr.mxu0 0.0
        %1570 = vmatpush1.msra.mxu0 %v1389
        %1571 = vmatprep.subr.mxu0 0.0
        %1572 = vmatpush1.msra.mxu0 %v1392
        %1573 = vmatprep.subr.mxu0 0.0
        %1574 = vmatpush1.msra.mxu0 %v1395
        %1575 = vmatprep.subr.mxu0 0.0
        %1576 = vmatpush1.msra.mxu0 %v1398
        %1577 = vmatprep.subr.mxu0 0.0
        %1578 = vmatpush1.msra.mxu0 %v1401
        %1579 = vmatprep.subr.mxu0 0.0
        %1580 = vmatpush1.msra.mxu0 %v1404
        %1581 = vmatprep.subr.mxu0 0.0
        %1582 = vmatpush1.msra.mxu0 %v1407
        %1583 = vmatprep.subr.mxu0 0.0
        %1584 = vmatpush1.msra.mxu0 %v1410
        %1585 = vmatprep.subr.mxu0 0.0
        %1586 = vmatpush1.msra.mxu0 %v1413
        %1587 = vmatprep.subr.mxu0 0.0
        %1588 = vmatpush1.msra.mxu0 %v1416
        %1589 = vmatprep.subr.mxu0 0.0
        %1590 = vmatpush1.msra.mxu0 %v1419
        %1591 = vmatprep.subr.mxu0 0.0
        %1592 = vmatpush1.msra.mxu0 %v1422
        %1593 = vmatprep.subr.mxu0 0.0
        %1594 = vmatpush1.msra.mxu0 %v1425
        %1595 = vmatprep.subr.mxu0 0.0
        %1596 = vmatpush1.msra.mxu0 0.0
        %1597 = vmatprep.subr.mxu0 0.0
        %1598 = vmatpush1.msra.mxu0 0.0
        %1599 = vmatprep.subr.mxu0 0.0
        %1600 = vmatpush1.msra.mxu0 0.0
        %1601 = vmatprep.subr.mxu0 0.0
        %1602 = vmatpush1.msra.mxu0 0.0
        %1603 = vmatprep.subr.mxu0 0.0
        %1604 = vmatpush1.msra.mxu0 0.0
        %1605 = vmatprep.subr.mxu0 0.0
        %1606 = vmatpush1.msra.mxu0 0.0
        %1607 = vmatprep.subr.mxu0 0.0
        %1608 = vmatpush1.msra.mxu0 0.0
        %1609 = vmatprep.subr.mxu0 0.0
        %1610 = vmatpush1.msra.mxu0 0.0
        %1611 = vmatprep.subr.mxu0 0.0
        %1612 = vmatpush1.msra.mxu0 0.0
        %1613 = vmatprep.subr.mxu0 0.0
        %1614 = vmatpush1.msra.mxu0 0.0
        %1615 = vmatprep.subr.mxu0 0.0
        %1616 = vmatpush1.msra.mxu0 0.0
        %1617 = vmatprep.subr.mxu0 0.0
        %1618 = vmatpush1.msra.mxu0 0.0
        %1619 = vmatprep.subr.mxu0 0.0
        %1620 = vmatpush1.msra.mxu0 0.0
        %1621 = vmatprep.subr.mxu0 0.0
        %1622 = vmatpush1.msra.mxu0 0.0
        %1623 = vmatprep.subr.mxu0 0.0
        %1624 = vmatpush1.msra.mxu0 0.0
        %1625 = vmatprep.subr.mxu0 0.0
        %1626 = vmatpush1.msra.mxu0 0.0
        %1627 = vmatprep.mubr.f32.mxu0 0.0
        %1628 = vmatmul.mubr.f32.gmra.mrb[0].mxu0 0.0
        %v1629 = vpop.f32.mrb[0].mxu0
        %v1630 = vadd.f32 %v1488, %v1629
        %v1631 = vpop.f32.mrb[0].mxu0
        %1632 = vdwg.mxu0
        %v1634 = vlaneseq
        %v1635 = vshrl.u32 %v1634, 7
        %v1636 = vsub.s32 0, %v1635
        %v1637 = vrot.slane %v1475, %v1636
        %v1638 = vlaneseq
        %v1639 = vshrl.u32 %v1638, 7
        %v1640 = vsub.s32 1, %v1639
        %v1641 = vrot.slane %v1475, %v1640
        %v1642 = vlaneseq
        %v1643 = vshrl.u32 %v1642, 7
        %v1644 = vsub.s32 2, %v1643
        %v1645 = vrot.slane %v1475, %v1644
        %1649 = vmatprep.subr.mxu0 %v1427
        %1650 = vmatpush1.msra.mxu0 %v1426
        %1651 = vmatprep.subr.mxu0 %v1430
        %1652 = vmatpush1.msra.mxu0 %v1429
        %1653 = vmatprep.subr.mxu0 %v1433
        %1654 = vmatpush1.msra.mxu0 %v1432
        %1655 = vmatprep.subr.mxu0 %v1436
        %1656 = vmatpush1.msra.mxu0 %v1435
        %1657 = vmatprep.subr.mxu0 %v1439
        %1658 = vmatpush1.msra.mxu0 %v1438
        %1659 = vmatprep.subr.mxu0 %v1442
        %1660 = vmatpush1.msra.mxu0 %v1441
        %1661 = vmatprep.subr.mxu0 %v1445
        %1662 = vmatpush1.msra.mxu0 %v1444
        %1663 = vmatprep.subr.mxu0 %v1448
        %1664 = vmatpush1.msra.mxu0 %v1447
        %1665 = vmatprep.subr.mxu0 %v1451
        %1666 = vmatpush1.msra.mxu0 %v1450
        %1667 = vmatprep.subr.mxu0 %v1454
        %1668 = vmatpush1.msra.mxu0 %v1453
        %1669 = vmatprep.subr.mxu0 %v1457
        %1670 = vmatpush1.msra.mxu0 %v1456
        %1671 = vmatprep.subr.mxu0 %v1460
        %1672 = vmatpush1.msra.mxu0 %v1459
        %1673 = vmatprep.subr.mxu0 %v1463
        %1674 = vmatpush1.msra.mxu0 %v1462
        %1675 = vmatprep.subr.mxu0 %v1466
        %1676 = vmatpush1.msra.mxu0 %v1465
        %1677 = vmatprep.subr.mxu0 %v1469
        %1678 = vmatpush1.msra.mxu0 %v1468
        %1679 = vmatprep.subr.mxu0 %v1472
        %1680 = vmatpush1.msra.mxu0 %v1471
        %1681 = vmatprep.subr.mxu0 0.0
        %1682 = vmatpush1.msra.mxu0 0.0
        %1683 = vmatprep.subr.mxu0 0.0
        %1684 = vmatpush1.msra.mxu0 0.0
        %1685 = vmatprep.subr.mxu0 0.0
        %1686 = vmatpush1.msra.mxu0 0.0
        %1687 = vmatprep.subr.mxu0 0.0
        %1688 = vmatpush1.msra.mxu0 0.0
        %1689 = vmatprep.subr.mxu0 0.0
        %1690 = vmatpush1.msra.mxu0 0.0
        %1691 = vmatprep.subr.mxu0 0.0
        %1692 = vmatpush1.msra.mxu0 0.0
        %1693 = vmatprep.subr.mxu0 0.0
        %1694 = vmatpush1.msra.mxu0 0.0
        %1695 = vmatprep.subr.mxu0 0.0
        %1696 = vmatpush1.msra.mxu0 0.0
        %1697 = vmatprep.subr.mxu0 0.0
        %1698 = vmatpush1.msra.mxu0 0.0
        %1699 = vmatprep.subr.mxu0 0.0
        %1700 = vmatpush1.msra.mxu0 0.0
        %1701 = vmatprep.subr.mxu0 0.0
        %1702 = vmatpush1.msra.mxu0 0.0
        %1703 = vmatprep.subr.mxu0 0.0
        %1704 = vmatpush1.msra.mxu0 0.0
        %1705 = vmatprep.subr.mxu0 0.0
        %1706 = vmatpush1.msra.mxu0 0.0
        %1707 = vmatprep.subr.mxu0 0.0
        %1708 = vmatpush1.msra.mxu0 0.0
        %1709 = vmatprep.subr.mxu0 0.0
        %1710 = vmatpush1.msra.mxu0 0.0
        %1711 = vmatprep.subr.mxu0 0.0
        %1712 = vmatpush1.msra.mxu0 0.0
        %1713 = vmatprep.mubr.f32.mxu0 0.0
        %1714 = vmatmul.mubr.f32.gmra.mrb[0].mxu0 0.0
        %v1715 = vpop.f32.mrb[0].mxu0
        %v1716 = vadd.f32 %v1637, %v1715
        %v1717 = vpop.f32.mrb[0].mxu0
        %v1718 = vadd.f32 %v1641, %v1717
        %1719 = vdwg.mxu0
        %1720 = vmatprep.subr.mxu0 0.0
        %1721 = vmatpush1.msra.mxu0 %v1428
        %1722 = vmatprep.subr.mxu0 0.0
        %1723 = vmatpush1.msra.mxu0 %v1431
        %1724 = vmatprep.subr.mxu0 0.0
        %1725 = vmatpush1.msra.mxu0 %v1434
        %1726 = vmatprep.subr.mxu0 0.0
        %1727 = vmatpush1.msra.mxu0 %v1437
        %1728 = vmatprep.subr.mxu0 0.0
        %1729 = vmatpush1.msra.mxu0 %v1440
        %1730 = vmatprep.subr.mxu0 0.0
        %1731 = vmatpush1.msra.mxu0 %v1443
        %1732 = vmatprep.subr.mxu0 0.0
        %1733 = vmatpush1.msra.mxu0 %v1446
        %1734 = vmatprep.subr.mxu0 0.0
        %1735 = vmatpush1.msra.mxu0 %v1449
        %1736 = vmatprep.subr.mxu0 0.0
        %1737 = vmatpush1.msra.mxu0 %v1452
        %1738 = vmatprep.subr.mxu0 0.0
        %1739 = vmatpush1.msra.mxu0 %v1455
        %1740 = vmatprep.subr.mxu0 0.0
        %1741 = vmatpush1.msra.mxu0 %v1458
        %1742 = vmatprep.subr.mxu0 0.0
        %1743 = vmatpush1.msra.mxu0 %v1461
        %1744 = vmatprep.subr.mxu0 0.0
        %1745 = vmatpush1.msra.mxu0 %v1464
        %1746 = vmatprep.subr.mxu0 0.0
        %1747 = vmatpush1.msra.mxu0 %v1467
        %1748 = vmatprep.subr.mxu0 0.0
        %1749 = vmatpush1.msra.mxu0 %v1470
        %1750 = vmatprep.subr.mxu0 0.0
        %1751 = vmatpush1.msra.mxu0 %v1473
        %1752 = vmatprep.subr.mxu0 0.0
        %1753 = vmatpush1.msra.mxu0 0.0
        %1754 = vmatprep.subr.mxu0 0.0
        %1755 = vmatpush1.msra.mxu0 0.0
        %1756 = vmatprep.subr.mxu0 0.0
        %1757 = vmatpush1.msra.mxu0 0.0
        %1758 = vmatprep.subr.mxu0 0.0
        %1759 = vmatpush1.msra.mxu0 0.0
        %1760 = vmatprep.subr.mxu0 0.0
        %1761 = vmatpush1.msra.mxu0 0.0
        %1762 = vmatprep.subr.mxu0 0.0
        %1763 = vmatpush1.msra.mxu0 0.0
        %1764 = vmatprep.subr.mxu0 0.0
        %1765 = vmatpush1.msra.mxu0 0.0
        %1766 = vmatprep.subr.mxu0 0.0
        %1767 = vmatpush1.msra.mxu0 0.0
        %1768 = vmatprep.subr.mxu0 0.0
        %1769 = vmatpush1.msra.mxu0 0.0
        %1770 = vmatprep.subr.mxu0 0.0
        %1771 = vmatpush1.msra.mxu0 0.0
        %1772 = vmatprep.subr.mxu0 0.0
        %1773 = vmatpush1.msra.mxu0 0.0
        %1774 = vmatprep.subr.mxu0 0.0
        %1775 = vmatpush1.msra.mxu0 0.0
        %1776 = vmatprep.subr.mxu0 0.0
        %1777 = vmatpush1.msra.mxu0 0.0
        %1778 = vmatprep.subr.mxu0 0.0
        %1779 = vmatpush1.msra.mxu0 0.0
        %1780 = vmatprep.subr.mxu0 0.0
        %1781 = vmatpush1.msra.mxu0 0.0
        %1782 = vmatprep.subr.mxu0 0.0
        %1783 = vmatpush1.msra.mxu0 0.0
        %1784 = vmatprep.mubr.f32.mxu0 0.0
        %1785 = vmatmul.mubr.f32.gmra.mrb[0].mxu0 0.0
        %v1786 = vpop.f32.mrb[0].mxu0
        %v1787 = vadd.f32 %v1645, %v1786
        %v1788 = vpop.f32.mrb[0].mxu0
        %1789 = vdwg.mxu0
        %v1790 = vadd.f32 %v1040, %v1559
        %v1791 = vxor.u32 %v1790, 2147483648
        %v1792 = vmul.f32 %v1791, 1.442695
        %v1793 = vpow.pop %v1792
        %v1794 = vadd.f32 %v1793, 1.0
        %v1795 = vrcp.pop %v1794
        %v1796 = vmul.f32 1.0, %v1795
        %v1797 = vadd.f32 %v1042, %v1561
        %v1798 = vxor.u32 %v1797, 2147483648
        %v1799 = vmul.f32 %v1798, 1.442695
        %v1800 = vpow.pop %v1799
        %v1801 = vadd.f32 %v1800, 1.0
        %v1802 = vrcp.pop %v1801
        %v1803 = vmul.f32 1.0, %v1802
        %v1804 = vmul.f32 %v1796, %v1630
        %v1805 = vadd.f32 %v1129, %v1804
        %v1806 = vtanh.pop %v1805
        %v1807 = vsub.f32 1.0, %v1803
        %v1808 = vmul.f32 %v1807, %v1806
        %v1809 = vmul.f32 %v1803, 0.0
        %v1810 = vadd.f32 %v1808, %v1809
        %v1811 = vadd.f32 %v1271, %v1716
        %v1812 = vxor.u32 %v1811, 2147483648
        %v1813 = vmul.f32 %v1812, 1.442695
        %v1814 = vpow.pop %v1813
        %v1815 = vadd.f32 %v1814, 1.0
        %v1816 = vrcp.pop %v1815
        %v1817 = vmul.f32 1.0, %v1816
        %v1818 = vadd.f32 %v1273, %v1718
        %v1819 = vxor.u32 %v1818, 2147483648
        %v1820 = vmul.f32 %v1819, 1.442695
        %v1821 = vpow.pop %v1820
        %v1822 = vadd.f32 %v1821, 1.0
        %v1823 = vrcp.pop %v1822
        %v1824 = vmul.f32 1.0, %v1823
        %v1825 = vmul.f32 %v1817, %v1787
        %v1826 = vadd.f32 %v1360, %v1825
        %v1827 = vtanh.pop %v1826
        %v1828 = vsub.f32 1.0, %v1824
        %v1829 = vmul.f32 %v1828, %v1827
        %v1830 = vmul.f32 %v1824, 0.0
        %v1831 = vadd.f32 %v1829, %v1830
        %1832 = vst [vmem:[#allocation2] sm:$0xff] %v1810
        %1833 = vst [vmem:[#allocation3] sm:$0xff] %v1831
        %1834 = vmatprep.subr.mxu0 %v1379
        %1835 = vmatpush1.msra.mxu0 %v1378
        %1836 = vmatprep.subr.mxu0 %v1382
        %1837 = vmatpush1.msra.mxu0 %v1381
        %1838 = vmatprep.subr.mxu0 %v1385
        %1839 = vmatpush1.msra.mxu0 %v1384
        %1840 = vmatprep.subr.mxu0 %v1388
        %1841 = vmatpush1.msra.mxu0 %v1387
        %1842 = vmatprep.subr.mxu0 %v1391
        %1843 = vmatpush1.msra.mxu0 %v1390
        %1844 = vmatprep.subr.mxu0 %v1394
        %1845 = vmatpush1.msra.mxu0 %v1393
        %1846 = vmatprep.subr.mxu0 %v1397
        %1847 = vmatpush1.msra.mxu0 %v1396
        %1848 = vmatprep.subr.mxu0 %v1400
        %1849 = vmatpush1.msra.mxu0 %v1399
        %1850 = vmatprep.subr.mxu0 %v1403
        %1851 = vmatpush1.msra.mxu0 %v1402
        %1852 = vmatprep.subr.mxu0 %v1406
        %1853 = vmatpush1.msra.mxu0 %v1405
        %1854 = vmatprep.subr.mxu0 %v1409
        %1855 = vmatpush1.msra.mxu0 %v1408
        %1856 = vmatprep.subr.mxu0 %v1412
        %1857 = vmatpush1.msra.mxu0 %v1411
        %1858 = vmatprep.subr.mxu0 %v1415
        %1859 = vmatpush1.msra.mxu0 %v1414
        %1860 = vmatprep.subr.mxu0 %v1418
        %1861 = vmatpush1.msra.mxu0 %v1417
        %1862 = vmatprep.subr.mxu0 %v1421
        %1863 = vmatpush1.msra.mxu0 %v1420
        %1864 = vmatprep.subr.mxu0 %v1424
        %1865 = vmatpush1.msra.mxu0 %v1423
        %1866 = vmatprep.subr.mxu0 0.0
        %1867 = vmatpush1.msra.mxu0 0.0
        %1868 = vmatprep.subr.mxu0 0.0
        %1869 = vmatpush1.msra.mxu0 0.0
        %1870 = vmatprep.subr.mxu0 0.0
        %1871 = vmatpush1.msra.mxu0 0.0
        %1872 = vmatprep.subr.mxu0 0.0
        %1873 = vmatpush1.msra.mxu0 0.0
        %1874 = vmatprep.subr.mxu0 0.0
        %1875 = vmatpush1.msra.mxu0 0.0
        %1876 = vmatprep.subr.mxu0 0.0
        %1877 = vmatpush1.msra.mxu0 0.0
        %1878 = vmatprep.subr.mxu0 0.0
        %1879 = vmatpush1.msra.mxu0 0.0
        %1880 = vmatprep.subr.mxu0 0.0
        %1881 = vmatpush1.msra.mxu0 0.0
        %1882 = vmatprep.subr.mxu0 0.0
        %1883 = vmatpush1.msra.mxu0 0.0
        %1884 = vmatprep.subr.mxu0 0.0
        %1885 = vmatpush1.msra.mxu0 0.0
        %1886 = vmatprep.subr.mxu0 0.0
        %1887 = vmatpush1.msra.mxu0 0.0
        %1888 = vmatprep.subr.mxu0 0.0
        %1889 = vmatpush1.msra.mxu0 0.0
        %1890 = vmatprep.subr.mxu0 0.0
        %1891 = vmatpush1.msra.mxu0 0.0
        %1892 = vmatprep.subr.mxu0 0.0
        %1893 = vmatpush1.msra.mxu0 0.0
        %1894 = vmatprep.subr.mxu0 0.0
        %1895 = vmatpush1.msra.mxu0 0.0
        %1896 = vmatprep.subr.mxu0 0.0
        %1897 = vmatpush1.msra.mxu0 0.0
        %1898 = vmatprep.mubr.f32.mxu0 0.0
        %1899 = vmatmul.mubr.f32.gmra.mrb[0].mxu0 %v1810
        %v1900 = vpop.f32.mrb[0].mxu0
        %v1901 = vadd.f32 %v1480, %v1900
        %v1902 = vpop.f32.mrb[0].mxu0
        %v1903 = vadd.f32 %v1484, %v1902
        %1904 = vdwg.mxu0
        %1905 = vmatprep.subr.mxu0 0.0
        %1906 = vmatpush1.msra.mxu0 %v1380
        %1907 = vmatprep.subr.mxu0 0.0
        %1908 = vmatpush1.msra.mxu0 %v1383
        %1909 = vmatprep.subr.mxu0 0.0
        %1910 = vmatpush1.msra.mxu0 %v1386
        %1911 = vmatprep.subr.mxu0 0.0
        %1912 = vmatpush1.msra.mxu0 %v1389
        %1913 = vmatprep.subr.mxu0 0.0
        %1914 = vmatpush1.msra.mxu0 %v1392
        %1915 = vmatprep.subr.mxu0 0.0
        %1916 = vmatpush1.msra.mxu0 %v1395
        %1917 = vmatprep.subr.mxu0 0.0
        %1918 = vmatpush1.msra.mxu0 %v1398
        %1919 = vmatprep.subr.mxu0 0.0
        %1920 = vmatpush1.msra.mxu0 %v1401
        %1921 = vmatprep.subr.mxu0 0.0
        %1922 = vmatpush1.msra.mxu0 %v1404
        %1923 = vmatprep.subr.mxu0 0.0
        %1924 = vmatpush1.msra.mxu0 %v1407
        %1925 = vmatprep.subr.mxu0 0.0
        %1926 = vmatpush1.msra.mxu0 %v1410
        %1927 = vmatprep.subr.mxu0 0.0
        %1928 = vmatpush1.msra.mxu0 %v1413
        %1929 = vmatprep.subr.mxu0 0.0
        %1930 = vmatpush1.msra.mxu0 %v1416
        %1931 = vmatprep.subr.mxu0 0.0
        %1932 = vmatpush1.msra.mxu0 %v1419
        %1933 = vmatprep.subr.mxu0 0.0
        %1934 = vmatpush1.msra.mxu0 %v1422
        %1935 = vmatprep.subr.mxu0 0.0
        %1936 = vmatpush1.msra.mxu0 %v1425
        %1937 = vmatprep.subr.mxu0 0.0
        %1938 = vmatpush1.msra.mxu0 0.0
        %1939 = vmatprep.subr.mxu0 0.0
        %1940 = vmatpush1.msra.mxu0 0.0
        %1941 = vmatprep.subr.mxu0 0.0
        %1942 = vmatpush1.msra.mxu0 0.0
        %1943 = vmatprep.subr.mxu0 0.0
        %1944 = vmatpush1.msra.mxu0 0.0
        %1945 = vmatprep.subr.mxu0 0.0
        %1946 = vmatpush1.msra.mxu0 0.0
        %1947 = vmatprep.subr.mxu0 0.0
        %1948 = vmatpush1.msra.mxu0 0.0
        %1949 = vmatprep.subr.mxu0 0.0
        %1950 = vmatpush1.msra.mxu0 0.0
        %1951 = vmatprep.subr.mxu0 0.0
        %1952 = vmatpush1.msra.mxu0 0.0
        %1953 = vmatprep.subr.mxu0 0.0
        %1954 = vmatpush1.msra.mxu0 0.0
        %1955 = vmatprep.subr.mxu0 0.0
        %1956 = vmatpush1.msra.mxu0 0.0
        %1957 = vmatprep.subr.mxu0 0.0
        %1958 = vmatpush1.msra.mxu0 0.0
        %1959 = vmatprep.subr.mxu0 0.0
        %1960 = vmatpush1.msra.mxu0 0.0
        %1961 = vmatprep.subr.mxu0 0.0
        %1962 = vmatpush1.msra.mxu0 0.0
        %1963 = vmatprep.subr.mxu0 0.0
        %1964 = vmatpush1.msra.mxu0 0.0
        %1965 = vmatprep.subr.mxu0 0.0
        %1966 = vmatpush1.msra.mxu0 0.0
        %1967 = vmatprep.subr.mxu0 0.0
        %1968 = vmatpush1.msra.mxu0 0.0
        %1969 = vmatprep.mubr.f32.mxu0 0.0
        %1970 = vmatmul.mubr.f32.gmra.mrb[0].mxu0 %v1810
        %v1971 = vpop.f32.mrb[0].mxu0
        %v1972 = vadd.f32 %v1488, %v1971
        %v1973 = vpop.f32.mrb[0].mxu0
        %1974 = vdwg.mxu0
        %1975 = vmatprep.subr.mxu0 %v1427
        %1976 = vmatpush1.msra.mxu0 %v1426
        %1977 = vmatprep.subr.mxu0 %v1430
        %1978 = vmatpush1.msra.mxu0 %v1429
        %1979 = vmatprep.subr.mxu0 %v1433
        %1980 = vmatpush1.msra.mxu0 %v1432
        %1981 = vmatprep.subr.mxu0 %v1436
        %1982 = vmatpush1.msra.mxu0 %v1435
        %1983 = vmatprep.subr.mxu0 %v1439
        %1984 = vmatpush1.msra.mxu0 %v1438
        %1985 = vmatprep.subr.mxu0 %v1442
        %1986 = vmatpush1.msra.mxu0 %v1441
        %1987 = vmatprep.subr.mxu0 %v1445
        %1988 = vmatpush1.msra.mxu0 %v1444
        %1989 = vmatprep.subr.mxu0 %v1448
        %1990 = vmatpush1.msra.mxu0 %v1447
        %1991 = vmatprep.subr.mxu0 %v1451
        %1992 = vmatpush1.msra.mxu0 %v1450
        %1993 = vmatprep.subr.mxu0 %v1454
        %1994 = vmatpush1.msra.mxu0 %v1453
        %1995 = vmatprep.subr.mxu0 %v1457
        %1996 = vmatpush1.msra.mxu0 %v1456
        %1997 = vmatprep.subr.mxu0 %v1460
        %1998 = vmatpush1.msra.mxu0 %v1459
        %1999 = vmatprep.subr.mxu0 %v1463
        %2000 = vmatpush1.msra.mxu0 %v1462
        %2001 = vmatprep.subr.mxu0 %v1466
        %2002 = vmatpush1.msra.mxu0 %v1465
        %2003 = vmatprep.subr.mxu0 %v1469
        %2004 = vmatpush1.msra.mxu0 %v1468
        %2005 = vmatprep.subr.mxu0 %v1472
        %2006 = vmatpush1.msra.mxu0 %v1471
        %2007 = vmatprep.subr.mxu0 0.0
        %2008 = vmatpush1.msra.mxu0 0.0
        %2009 = vmatprep.subr.mxu0 0.0
        %2010 = vmatpush1.msra.mxu0 0.0
        %2011 = vmatprep.subr.mxu0 0.0
        %2012 = vmatpush1.msra.mxu0 0.0
        %2013 = vmatprep.subr.mxu0 0.0
        %2014 = vmatpush1.msra.mxu0 0.0
        %2015 = vmatprep.subr.mxu0 0.0
        %2016 = vmatpush1.msra.mxu0 0.0
        %2017 = vmatprep.subr.mxu0 0.0
        %2018 = vmatpush1.msra.mxu0 0.0
        %2019 = vmatprep.subr.mxu0 0.0
        %2020 = vmatpush1.msra.mxu0 0.0
        %2021 = vmatprep.subr.mxu0 0.0
        %2022 = vmatpush1.msra.mxu0 0.0
        %2023 = vmatprep.subr.mxu0 0.0
        %2024 = vmatpush1.msra.mxu0 0.0
        %2025 = vmatprep.subr.mxu0 0.0
        %2026 = vmatpush1.msra.mxu0 0.0
        %2027 = vmatprep.subr.mxu0 0.0
        %2028 = vmatpush1.msra.mxu0 0.0
        %2029 = vmatprep.subr.mxu0 0.0
        %2030 = vmatpush1.msra.mxu0 0.0
        %2031 = vmatprep.subr.mxu0 0.0
        %2032 = vmatpush1.msra.mxu0 0.0
        %2033 = vmatprep.subr.mxu0 0.0
        %2034 = vmatpush1.msra.mxu0 0.0
        %2035 = vmatprep.subr.mxu0 0.0
        %2036 = vmatpush1.msra.mxu0 0.0
        %2037 = vmatprep.subr.mxu0 0.0
        %2038 = vmatpush1.msra.mxu0 0.0
        %2039 = vmatprep.mubr.f32.mxu0 0.0
        %2040 = vmatmul.mubr.f32.gmra.mrb[0].mxu0 %v1831
        %v2041 = vpop.f32.mrb[0].mxu0
        %v2042 = vadd.f32 %v1637, %v2041
        %v2043 = vpop.f32.mrb[0].mxu0
        %v2044 = vadd.f32 %v1641, %v2043
        %2045 = vdwg.mxu0
        %2046 = vmatprep.subr.mxu0 0.0
        %2047 = vmatpush1.msra.mxu0 %v1428
        %2048 = vmatprep.subr.mxu0 0.0
        %2049 = vmatpush1.msra.mxu0 %v1431
        %2050 = vmatprep.subr.mxu0 0.0
        %2051 = vmatpush1.msra.mxu0 %v1434
        %2052 = vmatprep.subr.mxu0 0.0
        %2053 = vmatpush1.msra.mxu0 %v1437
        %2054 = vmatprep.subr.mxu0 0.0
        %2055 = vmatpush1.msra.mxu0 %v1440
        %2056 = vmatprep.subr.mxu0 0.0
        %2057 = vmatpush1.msra.mxu0 %v1443
        %2058 = vmatprep.subr.mxu0 0.0
        %2059 = vmatpush1.msra.mxu0 %v1446
        %2060 = vmatprep.subr.mxu0 0.0
        %2061 = vmatpush1.msra.mxu0 %v1449
        %2062 = vmatprep.subr.mxu0 0.0
        %2063 = vmatpush1.msra.mxu0 %v1452
        %2064 = vmatprep.subr.mxu0 0.0
        %2065 = vmatpush1.msra.mxu0 %v1455
        %2066 = vmatprep.subr.mxu0 0.0
        %2067 = vmatpush1.msra.mxu0 %v1458
        %2068 = vmatprep.subr.mxu0 0.0
        %2069 = vmatpush1.msra.mxu0 %v1461
        %2070 = vmatprep.subr.mxu0 0.0
        %2071 = vmatpush1.msra.mxu0 %v1464
        %2072 = vmatprep.subr.mxu0 0.0
        %2073 = vmatpush1.msra.mxu0 %v1467
        %2074 = vmatprep.subr.mxu0 0.0
        %2075 = vmatpush1.msra.mxu0 %v1470
        %2076 = vmatprep.subr.mxu0 0.0
        %2077 = vmatpush1.msra.mxu0 %v1473
        %2078 = vmatprep.subr.mxu0 0.0
        %2079 = vmatpush1.msra.mxu0 0.0
        %2080 = vmatprep.subr.mxu0 0.0
        %2081 = vmatpush1.msra.mxu0 0.0
        %2082 = vmatprep.subr.mxu0 0.0
        %2083 = vmatpush1.msra.mxu0 0.0
        %2084 = vmatprep.subr.mxu0 0.0
        %2085 = vmatpush1.msra.mxu0 0.0
        %2086 = vmatprep.subr.mxu0 0.0
        %2087 = vmatpush1.msra.mxu0 0.0
        %2088 = vmatprep.subr.mxu0 0.0
        %2089 = vmatpush1.msra.mxu0 0.0
        %2090 = vmatprep.subr.mxu0 0.0
        %2091 = vmatpush1.msra.mxu0 0.0
        %2092 = vmatprep.subr.mxu0 0.0
        %2093 = vmatpush1.msra.mxu0 0.0
        %2094 = vmatprep.subr.mxu0 0.0
        %2095 = vmatpush1.msra.mxu0 0.0
        %2096 = vmatprep.subr.mxu0 0.0
        %2097 = vmatpush1.msra.mxu0 0.0
        %2098 = vmatprep.subr.mxu0 0.0
        %2099 = vmatpush1.msra.mxu0 0.0
        %2100 = vmatprep.subr.mxu0 0.0
        %2101 = vmatpush1.msra.mxu0 0.0
        %2102 = vmatprep.subr.mxu0 0.0
        %2103 = vmatpush1.msra.mxu0 0.0
        %2104 = vmatprep.subr.mxu0 0.0
        %2105 = vmatpush1.msra.mxu0 0.0
        %2106 = vmatprep.subr.mxu0 0.0
        %2107 = vmatpush1.msra.mxu0 0.0
        %2108 = vmatprep.subr.mxu0 0.0
        %2109 = vmatpush1.msra.mxu0 0.0
        %2110 = vmatprep.mubr.f32.mxu0 0.0
        %2111 = vmatmul.mubr.f32.gmra.mrb[0].mxu0 %v1831
        %v2112 = vpop.f32.mrb[0].mxu0
        %v2113 = vadd.f32 %v1645, %v2112
        %v2114 = vpop.f32.mrb[0].mxu0
        %2115 = vdwg.mxu0
        %v2116 = vadd.f32 %v1046, %v1901
        %v2117 = vxor.u32 %v2116, 2147483648
        %v2118 = vmul.f32 %v2117, 1.442695
        %v2119 = vpow.pop %v2118
        %v2120 = vadd.f32 %v2119, 1.0
        %v2121 = vrcp.pop %v2120
        %v2122 = vmul.f32 1.0, %v2121
        %v2123 = vadd.f32 %v1048, %v1903
        %v2124 = vxor.u32 %v2123, 2147483648
        %v2125 = vmul.f32 %v2124, 1.442695
        %v2126 = vpow.pop %v2125
        %v2127 = vadd.f32 %v2126, 1.0
        %v2128 = vrcp.pop %v2127
        %v2129 = vmul.f32 1.0, %v2128
        %v2130 = vmul.f32 %v2122, %v1972
        %v2131 = vadd.f32 %v1134, %v2130
        %v2132 = vtanh.pop %v2131
        %v2133 = vsub.f32 1.0, %v2129
        %v2134 = vmul.f32 %v2133, %v2132
        %v2135 = vmul.f32 %v2129, %v1810
        %v2136 = vadd.f32 %v2134, %v2135
        %v2137 = vadd.f32 %v1277, %v2042
        %v2138 = vxor.u32 %v2137, 2147483648
        %v2139 = vmul.f32 %v2138, 1.442695
        %v2140 = vpow.pop %v2139
        %v2141 = vadd.f32 %v2140, 1.0
        %v2142 = vrcp.pop %v2141
        %v2143 = vmul.f32 1.0, %v2142
        %v2144 = vadd.f32 %v1279, %v2044
        %v2145 = vxor.u32 %v2144, 2147483648
        %v2146 = vmul.f32 %v2145, 1.442695
        %v2147 = vpow.pop %v2146
        %v2148 = vadd.f32 %v2147, 1.0
        %v2149 = vrcp.pop %v2148
        %v2150 = vmul.f32 1.0, %v2149
        %v2151 = vmul.f32 %v2143, %v2113
        %v2152 = vadd.f32 %v1365, %v2151
        %v2153 = vtanh.pop %v2152
        %v2154 = vsub.f32 1.0, %v2150
        %v2155 = vmul.f32 %v2154, %v2153
        %v2156 = vmul.f32 %v2150, %v1831
        %v2157 = vadd.f32 %v2155, %v2156
        %2158 = vst [vmem:[#allocation2 + $0x8] sm:$0xff] %v2136
        %2159 = vst [vmem:[#allocation3 + $0x8] sm:$0xff] %v2157
        %2160 = vmatprep.subr.mxu0 %v1379
        %2161 = vmatpush1.msra.mxu0 %v1378
        %2162 = vmatprep.subr.mxu0 %v1382
        %2163 = vmatpush1.msra.mxu0 %v1381
        %2164 = vmatprep.subr.mxu0 %v1385
        %2165 = vmatpush1.msra.mxu0 %v1384
        %2166 = vmatprep.subr.mxu0 %v1388
        %2167 = vmatpush1.msra.mxu0 %v1387
        %2168 = vmatprep.subr.mxu0 %v1391
        %2169 = vmatpush1.msra.mxu0 %v1390
        %2170 = vmatprep.subr.mxu0 %v1394
        %2171 = vmatpush1.msra.mxu0 %v1393
        %2172 = vmatprep.subr.mxu0 %v1397
        %2173 = vmatpush1.msra.mxu0 %v1396
        %2174 = vmatprep.subr.mxu0 %v1400
        %2175 = vmatpush1.msra.mxu0 %v1399
        %2176 = vmatprep.subr.mxu0 %v1403
        %2177 = vmatpush1.msra.mxu0 %v1402
        %2178 = vmatprep.subr.mxu0 %v1406
        %2179 = vmatpush1.msra.mxu0 %v1405
        %2180 = vmatprep.subr.mxu0 %v1409
        %2181 = vmatpush1.msra.mxu0 %v1408
        %2182 = vmatprep.subr.mxu0 %v1412
        %2183 = vmatpush1.msra.mxu0 %v1411
        %2184 = vmatprep.subr.mxu0 %v1415
        %2185 = vmatpush1.msra.mxu0 %v1414
        %2186 = vmatprep.subr.mxu0 %v1418
        %2187 = vmatpush1.msra.mxu0 %v1417
        %2188 = vmatprep.subr.mxu0 %v1421
        %2189 = vmatpush1.msra.mxu0 %v1420
        %2190 = vmatprep.subr.mxu0 %v1424
        %2191 = vmatpush1.msra.mxu0 %v1423
        %2192 = vmatprep.subr.mxu0 0.0
        %2193 = vmatpush1.msra.mxu0 0.0
        %2194 = vmatprep.subr.mxu0 0.0
        %2195 = vmatpush1.msra.mxu0 0.0
        %2196 = vmatprep.subr.mxu0 0.0
        %2197 = vmatpush1.msra.mxu0 0.0
        %2198 = vmatprep.subr.mxu0 0.0
        %2199 = vmatpush1.msra.mxu0 0.0
        %2200 = vmatprep.subr.mxu0 0.0
        %2201 = vmatpush1.msra.mxu0 0.0
        %2202 = vmatprep.subr.mxu0 0.0
        %2203 = vmatpush1.msra.mxu0 0.0
        %2204 = vmatprep.subr.mxu0 0.0
        %2205 = vmatpush1.msra.mxu0 0.0
        %2206 = vmatprep.subr.mxu0 0.0
        %2207 = vmatpush1.msra.mxu0 0.0
        %2208 = vmatprep.subr.mxu0 0.0
        %2209 = vmatpush1.msra.mxu0 0.0
        %2210 = vmatprep.subr.mxu0 0.0
        %2211 = vmatpush1.msra.mxu0 0.0
        %2212 = vmatprep.subr.mxu0 0.0
        %2213 = vmatpush1.msra.mxu0 0.0
        %2214 = vmatprep.subr.mxu0 0.0
        %2215 = vmatpush1.msra.mxu0 0.0
        %2216 = vmatprep.subr.mxu0 0.0
        %2217 = vmatpush1.msra.mxu0 0.0
        %2218 = vmatprep.subr.mxu0 0.0
        %2219 = vmatpush1.msra.mxu0 0.0
        %2220 = vmatprep.subr.mxu0 0.0
        %2221 = vmatpush1.msra.mxu0 0.0
        %2222 = vmatprep.subr.mxu0 0.0
        %2223 = vmatpush1.msra.mxu0 0.0
        %2224 = vmatprep.mubr.f32.mxu0 0.0
        %2225 = vmatmul.mubr.f32.gmra.mrb[0].mxu0 %v2136
        %v2226 = vpop.f32.mrb[0].mxu0
        %v2227 = vadd.f32 %v1480, %v2226
        %v2228 = vpop.f32.mrb[0].mxu0
        %v2229 = vadd.f32 %v1484, %v2228
        %2230 = vdwg.mxu0
        %2231 = vmatprep.subr.mxu0 0.0
        %2232 = vmatpush1.msra.mxu0 %v1380
        %2233 = vmatprep.subr.mxu0 0.0
        %2234 = vmatpush1.msra.mxu0 %v1383
        %2235 = vmatprep.subr.mxu0 0.0
        %2236 = vmatpush1.msra.mxu0 %v1386
        %2237 = vmatprep.subr.mxu0 0.0
        %2238 = vmatpush1.msra.mxu0 %v1389
        %2239 = vmatprep.subr.mxu0 0.0
        %2240 = vmatpush1.msra.mxu0 %v1392
        %2241 = vmatprep.subr.mxu0 0.0
        %2242 = vmatpush1.msra.mxu0 %v1395
        %2243 = vmatprep.subr.mxu0 0.0
        %2244 = vmatpush1.msra.mxu0 %v1398
        %2245 = vmatprep.subr.mxu0 0.0
        %2246 = vmatpush1.msra.mxu0 %v1401
        %2247 = vmatprep.subr.mxu0 0.0
        %2248 = vmatpush1.msra.mxu0 %v1404
        %2249 = vmatprep.subr.mxu0 0.0
        %2250 = vmatpush1.msra.mxu0 %v1407
        %2251 = vmatprep.subr.mxu0 0.0
        %2252 = vmatpush1.msra.mxu0 %v1410
        %2253 = vmatprep.subr.mxu0 0.0
        %2254 = vmatpush1.msra.mxu0 %v1413
        %2255 = vmatprep.subr.mxu0 0.0
        %2256 = vmatpush1.msra.mxu0 %v1416
        %2257 = vmatprep.subr.mxu0 0.0
        %2258 = vmatpush1.msra.mxu0 %v1419
        %2259 = vmatprep.subr.mxu0 0.0
        %2260 = vmatpush1.msra.mxu0 %v1422
        %2261 = vmatprep.subr.mxu0 0.0
        %2262 = vmatpush1.msra.mxu0 %v1425
        %2263 = vmatprep.subr.mxu0 0.0
        %2264 = vmatpush1.msra.mxu0 0.0
        %2265 = vmatprep.subr.mxu0 0.0
        %2266 = vmatpush1.msra.mxu0 0.0
        %2267 = vmatprep.subr.mxu0 0.0
        %2268 = vmatpush1.msra.mxu0 0.0
        %2269 = vmatprep.subr.mxu0 0.0
        %2270 = vmatpush1.msra.mxu0 0.0
        %2271 = vmatprep.subr.mxu0 0.0
        %2272 = vmatpush1.msra.mxu0 0.0
        %2273 = vmatprep.subr.mxu0 0.0
        %2274 = vmatpush1.msra.mxu0 0.0
        %2275 = vmatprep.subr.mxu0 0.0
        %2276 = vmatpush1.msra.mxu0 0.0
        %2277 = vmatprep.subr.mxu0 0.0
        %2278 = vmatpush1.msra.mxu0 0.0
        %2279 = vmatprep.subr.mxu0 0.0
        %2280 = vmatpush1.msra.mxu0 0.0
        %2281 = vmatprep.subr.mxu0 0.0
        %2282 = vmatpush1.msra.mxu0 0.0
        %2283 = vmatprep.subr.mxu0 0.0
        %2284 = vmatpush1.msra.mxu0 0.0
        %2285 = vmatprep.subr.mxu0 0.0
        %2286 = vmatpush1.msra.mxu0 0.0
        %2287 = vmatprep.subr.mxu0 0.0
        %2288 = vmatpush1.msra.mxu0 0.0
        %2289 = vmatprep.subr.mxu0 0.0
        %2290 = vmatpush1.msra.mxu0 0.0
        %2291 = vmatprep.subr.mxu0 0.0
        %2292 = vmatpush1.msra.mxu0 0.0
        %2293 = vmatprep.subr.mxu0 0.0
        %2294 = vmatpush1.msra.mxu0 0.0
        %2295 = vmatprep.mubr.f32.mxu0 0.0
        %2296 = vmatmul.mubr.f32.gmra.mrb[0].mxu0 %v2136
        %v2297 = vpop.f32.mrb[0].mxu0
        %v2298 = vadd.f32 %v1488, %v2297
        %v2299 = vpop.f32.mrb[0].mxu0
        %2300 = vdwg.mxu0
        %2301 = vmatprep.subr.mxu0 %v1427
        %2302 = vmatpush1.msra.mxu0 %v1426
        %2303 = vmatprep.subr.mxu0 %v1430
        %2304 = vmatpush1.msra.mxu0 %v1429
        %2305 = vmatprep.subr.mxu0 %v1433
        %2306 = vmatpush1.msra.mxu0 %v1432
        %2307 = vmatprep.subr.mxu0 %v1436
        %2308 = vmatpush1.msra.mxu0 %v1435
        %2309 = vmatprep.subr.mxu0 %v1439
        %2310 = vmatpush1.msra.mxu0 %v1438
        %2311 = vmatprep.subr.mxu0 %v1442
        %2312 = vmatpush1.msra.mxu0 %v1441
        %2313 = vmatprep.subr.mxu0 %v1445
        %2314 = vmatpush1.msra.mxu0 %v1444
        %2315 = vmatprep.subr.mxu0 %v1448
        %2316 = vmatpush1.msra.mxu0 %v1447
        %2317 = vmatprep.subr.mxu0 %v1451
        %2318 = vmatpush1.msra.mxu0 %v1450
        %2319 = vmatprep.subr.mxu0 %v1454
        %2320 = vmatpush1.msra.mxu0 %v1453
        %2321 = vmatprep.subr.mxu0 %v1457
        %2322 = vmatpush1.msra.mxu0 %v1456
        %2323 = vmatprep.subr.mxu0 %v1460
        %2324 = vmatpush1.msra.mxu0 %v1459
        %2325 = vmatprep.subr.mxu0 %v1463
        %2326 = vmatpush1.msra.mxu0 %v1462
        %2327 = vmatprep.subr.mxu0 %v1466
        %2328 = vmatpush1.msra.mxu0 %v1465
        %2329 = vmatprep.subr.mxu0 %v1469
        %2330 = vmatpush1.msra.mxu0 %v1468
        %2331 = vmatprep.subr.mxu0 %v1472
        %2332 = vmatpush1.msra.mxu0 %v1471
        %2333 = vmatprep.subr.mxu0 0.0
        %2334 = vmatpush1.msra.mxu0 0.0
        %2335 = vmatprep.subr.mxu0 0.0
        %2336 = vmatpush1.msra.mxu0 0.0
        %2337 = vmatprep.subr.mxu0 0.0
        %2338 = vmatpush1.msra.mxu0 0.0
        %2339 = vmatprep.subr.mxu0 0.0
        %2340 = vmatpush1.msra.mxu0 0.0
        %2341 = vmatprep.subr.mxu0 0.0
        %2342 = vmatpush1.msra.mxu0 0.0
        %2343 = vmatprep.subr.mxu0 0.0
        %2344 = vmatpush1.msra.mxu0 0.0
        %2345 = vmatprep.subr.mxu0 0.0
        %2346 = vmatpush1.msra.mxu0 0.0
        %2347 = vmatprep.subr.mxu0 0.0
        %2348 = vmatpush1.msra.mxu0 0.0
        %2349 = vmatprep.subr.mxu0 0.0
        %2350 = vmatpush1.msra.mxu0 0.0
        %2351 = vmatprep.subr.mxu0 0.0
        %2352 = vmatpush1.msra.mxu0 0.0
        %2353 = vmatprep.subr.mxu0 0.0
        %2354 = vmatpush1.msra.mxu0 0.0
        %2355 = vmatprep.subr.mxu0 0.0
        %2356 = vmatpush1.msra.mxu0 0.0
        %2357 = vmatprep.subr.mxu0 0.0
        %2358 = vmatpush1.msra.mxu0 0.0
        %2359 = vmatprep.subr.mxu0 0.0
        %2360 = vmatpush1.msra.mxu0 0.0
        %2361 = vmatprep.subr.mxu0 0.0
        %2362 = vmatpush1.msra.mxu0 0.0
        %2363 = vmatprep.subr.mxu0 0.0
        %2364 = vmatpush1.msra.mxu0 0.0
        %2365 = vmatprep.mubr.f32.mxu0 0.0
        %2366 = vmatmul.mubr.f32.gmra.mrb[0].mxu0 %v2157
        %v2367 = vpop.f32.mrb[0].mxu0
        %v2368 = vadd.f32 %v1637, %v2367
        %v2369 = vpop.f32.mrb[0].mxu0
        %v2370 = vadd.f32 %v1641, %v2369
        %2371 = vdwg.mxu0
        %2372 = vmatprep.subr.mxu0 0.0
        %2373 = vmatpush1.msra.mxu0 %v1428
        %2374 = vmatprep.subr.mxu0 0.0
        %2375 = vmatpush1.msra.mxu0 %v1431
        %2376 = vmatprep.subr.mxu0 0.0
        %2377 = vmatpush1.msra.mxu0 %v1434
        %2378 = vmatprep.subr.mxu0 0.0
        %2379 = vmatpush1.msra.mxu0 %v1437
        %2380 = vmatprep.subr.mxu0 0.0
        %2381 = vmatpush1.msra.mxu0 %v1440
        %2382 = vmatprep.subr.mxu0 0.0
        %2383 = vmatpush1.msra.mxu0 %v1443
        %2384 = vmatprep.subr.mxu0 0.0
        %2385 = vmatpush1.msra.mxu0 %v1446
        %2386 = vmatprep.subr.mxu0 0.0
        %2387 = vmatpush1.msra.mxu0 %v1449
        %2388 = vmatprep.subr.mxu0 0.0
        %2389 = vmatpush1.msra.mxu0 %v1452
        %2390 = vmatprep.subr.mxu0 0.0
        %2391 = vmatpush1.msra.mxu0 %v1455
        %2392 = vmatprep.subr.mxu0 0.0
        %2393 = vmatpush1.msra.mxu0 %v1458
        %2394 = vmatprep.subr.mxu0 0.0
        %2395 = vmatpush1.msra.mxu0 %v1461
        %2396 = vmatprep.subr.mxu0 0.0
        %2397 = vmatpush1.msra.mxu0 %v1464
        %2398 = vmatprep.subr.mxu0 0.0
        %2399 = vmatpush1.msra.mxu0 %v1467
        %2400 = vmatprep.subr.mxu0 0.0
        %2401 = vmatpush1.msra.mxu0 %v1470
        %2402 = vmatprep.subr.mxu0 0.0
        %2403 = vmatpush1.msra.mxu0 %v1473
        %2404 = vmatprep.subr.mxu0 0.0
        %2405 = vmatpush1.msra.mxu0 0.0
        %2406 = vmatprep.subr.mxu0 0.0
        %2407 = vmatpush1.msra.mxu0 0.0
        %2408 = vmatprep.subr.mxu0 0.0
        %2409 = vmatpush1.msra.mxu0 0.0
        %2410 = vmatprep.subr.mxu0 0.0
        %2411 = vmatpush1.msra.mxu0 0.0
        %2412 = vmatprep.subr.mxu0 0.0
        %2413 = vmatpush1.msra.mxu0 0.0
        %2414 = vmatprep.subr.mxu0 0.0
        %2415 = vmatpush1.msra.mxu0 0.0
        %2416 = vmatprep.subr.mxu0 0.0
        %2417 = vmatpush1.msra.mxu0 0.0
        %2418 = vmatprep.subr.mxu0 0.0
        %2419 = vmatpush1.msra.mxu0 0.0
        %2420 = vmatprep.subr.mxu0 0.0
        %2421 = vmatpush1.msra.mxu0 0.0
        %2422 = vmatprep.subr.mxu0 0.0
        %2423 = vmatpush1.msra.mxu0 0.0
        %2424 = vmatprep.subr.mxu0 0.0
        %2425 = vmatpush1.msra.mxu0 0.0
        %2426 = vmatprep.subr.mxu0 0.0
        %2427 = vmatpush1.msra.mxu0 0.0
        %2428 = vmatprep.subr.mxu0 0.0
        %2429 = vmatpush1.msra.mxu0 0.0
        %2430 = vmatprep.subr.mxu0 0.0
        %2431 = vmatpush1.msra.mxu0 0.0
        %2432 = vmatprep.subr.mxu0 0.0
        %2433 = vmatpush1.msra.mxu0 0.0
        %2434 = vmatprep.subr.mxu0 0.0
        %2435 = vmatpush1.msra.mxu0 0.0
        %2436 = vmatprep.mubr.f32.mxu0 0.0
        %2437 = vmatmul.mubr.f32.gmra.mrb[0].mxu0 %v2157
        %v2438 = vpop.f32.mrb[0].mxu0
        %v2439 = vadd.f32 %v1645, %v2438
        %v2440 = vpop.f32.mrb[0].mxu0
        %2441 = vdwg.mxu0
        %v2442 = vadd.f32 %v1052, %v2227
        %v2443 = vxor.u32 %v2442, 2147483648
        %v2444 = vmul.f32 %v2443, 1.442695
        %v2445 = vpow.pop %v2444
        %v2446 = vadd.f32 %v2445, 1.0
        %v2447 = vrcp.pop %v2446
        %v2448 = vmul.f32 1.0, %v2447
        %v2449 = vadd.f32 %v1054, %v2229
        %v2450 = vxor.u32 %v2449, 2147483648
        %v2451 = vmul.f32 %v2450, 1.442695
        %v2452 = vpow.pop %v2451
        %v2453 = vadd.f32 %v2452, 1.0
        %v2454 = vrcp.pop %v2453
        %v2455 = vmul.f32 1.0, %v2454
        %v2456 = vmul.f32 %v2448, %v2298
        %v2457 = vadd.f32 %v1139, %v2456
        %v2458 = vtanh.pop %v2457
        %v2459 = vsub.f32 1.0, %v2455
        %v2460 = vmul.f32 %v2459, %v2458
        %v2461 = vmul.f32 %v2455, %v2136
        %v2462 = vadd.f32 %v2460, %v2461
        %v2463 = vadd.f32 %v1283, %v2368
        %v2464 = vxor.u32 %v2463, 2147483648
        %v2465 = vmul.f32 %v2464, 1.442695
        %v2466 = vpow.pop %v2465
        %v2467 = vadd.f32 %v2466, 1.0
        %v2468 = vrcp.pop %v2467
        %v2469 = vmul.f32 1.0, %v2468
        %v2470 = vadd.f32 %v1285, %v2370
        %v2471 = vxor.u32 %v2470, 2147483648
        %v2472 = vmul.f32 %v2471, 1.442695
        %v2473 = vpow.pop %v2472
        %v2474 = vadd.f32 %v2473, 1.0
        %v2475 = vrcp.pop %v2474
        %v2476 = vmul.f32 1.0, %v2475
        %v2477 = vmul.f32 %v2469, %v2439
        %v2478 = vadd.f32 %v1370, %v2477
        %v2479 = vtanh.pop %v2478
        %v2480 = vsub.f32 1.0, %v2476
        %v2481 = vmul.f32 %v2480, %v2479
        %v2482 = vmul.f32 %v2476, %v2157
        %v2483 = vadd.f32 %v2481, %v2482
        %2484 = vst [vmem:[#allocation2 + $0x10] sm:$0xff] %v2462
        %2485 = vst [vmem:[#allocation3 + $0x10] sm:$0xff] %v2483
        %2486 = vmatprep.subr.mxu0 %v1379
        %2487 = vmatpush1.msra.mxu0 %v1378
        %2488 = vmatprep.subr.mxu0 %v1382
        %2489 = vmatpush1.msra.mxu0 %v1381
        %2490 = vmatprep.subr.mxu0 %v1385
        %2491 = vmatpush1.msra.mxu0 %v1384
        %2492 = vmatprep.subr.mxu0 %v1388
        %2493 = vmatpush1.msra.mxu0 %v1387
        %2494 = vmatprep.subr.mxu0 %v1391
        %2495 = vmatpush1.msra.mxu0 %v1390
        %2496 = vmatprep.subr.mxu0 %v1394
        %2497 = vmatpush1.msra.mxu0 %v1393
        %2498 = vmatprep.subr.mxu0 %v1397
        %2499 = vmatpush1.msra.mxu0 %v1396
        %2500 = vmatprep.subr.mxu0 %v1400
        %2501 = vmatpush1.msra.mxu0 %v1399
        %2502 = vmatprep.subr.mxu0 %v1403
        %2503 = vmatpush1.msra.mxu0 %v1402
        %2504 = vmatprep.subr.mxu0 %v1406
        %2505 = vmatpush1.msra.mxu0 %v1405
        %2506 = vmatprep.subr.mxu0 %v1409
        %2507 = vmatpush1.msra.mxu0 %v1408
        %2508 = vmatprep.subr.mxu0 %v1412
        %2509 = vmatpush1.msra.mxu0 %v1411
        %2510 = vmatprep.subr.mxu0 %v1415
        %2511 = vmatpush1.msra.mxu0 %v1414
        %2512 = vmatprep.subr.mxu0 %v1418
        %2513 = vmatpush1.msra.mxu0 %v1417
        %2514 = vmatprep.subr.mxu0 %v1421
        %2515 = vmatpush1.msra.mxu0 %v1420
        %2516 = vmatprep.subr.mxu0 %v1424
        %2517 = vmatpush1.msra.mxu0 %v1423
        %2518 = vmatprep.subr.mxu0 0.0
        %2519 = vmatpush1.msra.mxu0 0.0
        %2520 = vmatprep.subr.mxu0 0.0
        %2521 = vmatpush1.msra.mxu0 0.0
        %2522 = vmatprep.subr.mxu0 0.0
        %2523 = vmatpush1.msra.mxu0 0.0
        %2524 = vmatprep.subr.mxu0 0.0
        %2525 = vmatpush1.msra.mxu0 0.0
        %2526 = vmatprep.subr.mxu0 0.0
        %2527 = vmatpush1.msra.mxu0 0.0
        %2528 = vmatprep.subr.mxu0 0.0
        %2529 = vmatpush1.msra.mxu0 0.0
        %2530 = vmatprep.subr.mxu0 0.0
        %2531 = vmatpush1.msra.mxu0 0.0
        %2532 = vmatprep.subr.mxu0 0.0
        %2533 = vmatpush1.msra.mxu0 0.0
        %2534 = vmatprep.subr.mxu0 0.0
        %2535 = vmatpush1.msra.mxu0 0.0
        %2536 = vmatprep.subr.mxu0 0.0
        %2537 = vmatpush1.msra.mxu0 0.0
        %2538 = vmatprep.subr.mxu0 0.0
        %2539 = vmatpush1.msra.mxu0 0.0
        %2540 = vmatprep.subr.mxu0 0.0
        %2541 = vmatpush1.msra.mxu0 0.0
        %2542 = vmatprep.subr.mxu0 0.0
        %2543 = vmatpush1.msra.mxu0 0.0
        %2544 = vmatprep.subr.mxu0 0.0
        %2545 = vmatpush1.msra.mxu0 0.0
        %2546 = vmatprep.subr.mxu0 0.0
        %2547 = vmatpush1.msra.mxu0 0.0
        %2548 = vmatprep.subr.mxu0 0.0
        %2549 = vmatpush1.msra.mxu0 0.0
        %2550 = vmatprep.mubr.f32.mxu0 0.0
        %2551 = vmatmul.mubr.f32.gmra.mrb[0].mxu0 %v2462
        %v2552 = vpop.f32.mrb[0].mxu0
        %v2553 = vadd.f32 %v1480, %v2552
        %v2554 = vpop.f32.mrb[0].mxu0
        %v2555 = vadd.f32 %v1484, %v2554
        %2556 = vdwg.mxu0
        %2557 = vmatprep.subr.mxu0 0.0
        %2558 = vmatpush1.msra.mxu0 %v1380
        %2559 = vmatprep.subr.mxu0 0.0
        %2560 = vmatpush1.msra.mxu0 %v1383
        %2561 = vmatprep.subr.mxu0 0.0
        %2562 = vmatpush1.msra.mxu0 %v1386
        %2563 = vmatprep.subr.mxu0 0.0
        %2564 = vmatpush1.msra.mxu0 %v1389
        %2565 = vmatprep.subr.mxu0 0.0
        %2566 = vmatpush1.msra.mxu0 %v1392
        %2567 = vmatprep.subr.mxu0 0.0
        %2568 = vmatpush1.msra.mxu0 %v1395
        %2569 = vmatprep.subr.mxu0 0.0
        %2570 = vmatpush1.msra.mxu0 %v1398
        %2571 = vmatprep.subr.mxu0 0.0
        %2572 = vmatpush1.msra.mxu0 %v1401
        %2573 = vmatprep.subr.mxu0 0.0
        %2574 = vmatpush1.msra.mxu0 %v1404
        %2575 = vmatprep.subr.mxu0 0.0
        %2576 = vmatpush1.msra.mxu0 %v1407
        %2577 = vmatprep.subr.mxu0 0.0
        %2578 = vmatpush1.msra.mxu0 %v1410
        %2579 = vmatprep.subr.mxu0 0.0
        %2580 = vmatpush1.msra.mxu0 %v1413
        %2581 = vmatprep.subr.mxu0 0.0
        %2582 = vmatpush1.msra.mxu0 %v1416
        %2583 = vmatprep.subr.mxu0 0.0
        %2584 = vmatpush1.msra.mxu0 %v1419
        %2585 = vmatprep.subr.mxu0 0.0
        %2586 = vmatpush1.msra.mxu0 %v1422
        %2587 = vmatprep.subr.mxu0 0.0
        %2588 = vmatpush1.msra.mxu0 %v1425
        %2589 = vmatprep.subr.mxu0 0.0
        %2590 = vmatpush1.msra.mxu0 0.0
        %2591 = vmatprep.subr.mxu0 0.0
        %2592 = vmatpush1.msra.mxu0 0.0
        %2593 = vmatprep.subr.mxu0 0.0
        %2594 = vmatpush1.msra.mxu0 0.0
        %2595 = vmatprep.subr.mxu0 0.0
        %2596 = vmatpush1.msra.mxu0 0.0
        %2597 = vmatprep.subr.mxu0 0.0
        %2598 = vmatpush1.msra.mxu0 0.0
        %2599 = vmatprep.subr.mxu0 0.0
        %2600 = vmatpush1.msra.mxu0 0.0
        %2601 = vmatprep.subr.mxu0 0.0
        %2602 = vmatpush1.msra.mxu0 0.0
        %2603 = vmatprep.subr.mxu0 0.0
        %2604 = vmatpush1.msra.mxu0 0.0
        %2605 = vmatprep.subr.mxu0 0.0
        %2606 = vmatpush1.msra.mxu0 0.0
        %2607 = vmatprep.subr.mxu0 0.0
        %2608 = vmatpush1.msra.mxu0 0.0
        %2609 = vmatprep.subr.mxu0 0.0
        %2610 = vmatpush1.msra.mxu0 0.0
        %2611 = vmatprep.subr.mxu0 0.0
        %2612 = vmatpush1.msra.mxu0 0.0
        %2613 = vmatprep.subr.mxu0 0.0
        %2614 = vmatpush1.msra.mxu0 0.0
        %2615 = vmatprep.subr.mxu0 0.0
        %2616 = vmatpush1.msra.mxu0 0.0
        %2617 = vmatprep.subr.mxu0 0.0
        %2618 = vmatpush1.msra.mxu0 0.0
        %2619 = vmatprep.subr.mxu0 0.0
        %2620 = vmatpush1.msra.mxu0 0.0
        %2621 = vmatprep.mubr.f32.mxu0 0.0
        %2622 = vmatmul.mubr.f32.gmra.mrb[0].mxu0 %v2462
        %v2623 = vpop.f32.mrb[0].mxu0
        %v2624 = vadd.f32 %v1488, %v2623
        %v2625 = vpop.f32.mrb[0].mxu0
        %2626 = vdwg.mxu0
        %2627 = vmatprep.subr.mxu0 %v1427
        %2628 = vmatpush1.msra.mxu0 %v1426
        %2629 = vmatprep.subr.mxu0 %v1430
        %2630 = vmatpush1.msra.mxu0 %v1429
        %2631 = vmatprep.subr.mxu0 %v1433
        %2632 = vmatpush1.msra.mxu0 %v1432
        %2633 = vmatprep.subr.mxu0 %v1436
        %2634 = vmatpush1.msra.mxu0 %v1435
        %2635 = vmatprep.subr.mxu0 %v1439
        %2636 = vmatpush1.msra.mxu0 %v1438
        %2637 = vmatprep.subr.mxu0 %v1442
        %2638 = vmatpush1.msra.mxu0 %v1441
        %2639 = vmatprep.subr.mxu0 %v1445
        %2640 = vmatpush1.msra.mxu0 %v1444
        %2641 = vmatprep.subr.mxu0 %v1448
        %2642 = vmatpush1.msra.mxu0 %v1447
        %2643 = vmatprep.subr.mxu0 %v1451
        %2644 = vmatpush1.msra.mxu0 %v1450
        %2645 = vmatprep.subr.mxu0 %v1454
        %2646 = vmatpush1.msra.mxu0 %v1453
        %2647 = vmatprep.subr.mxu0 %v1457
        %2648 = vmatpush1.msra.mxu0 %v1456
        %2649 = vmatprep.subr.mxu0 %v1460
        %2650 = vmatpush1.msra.mxu0 %v1459
        %2651 = vmatprep.subr.mxu0 %v1463
        %2652 = vmatpush1.msra.mxu0 %v1462
        %2653 = vmatprep.subr.mxu0 %v1466
        %2654 = vmatpush1.msra.mxu0 %v1465
        %2655 = vmatprep.subr.mxu0 %v1469
        %2656 = vmatpush1.msra.mxu0 %v1468
        %2657 = vmatprep.subr.mxu0 %v1472
        %2658 = vmatpush1.msra.mxu0 %v1471
        %2659 = vmatprep.subr.mxu0 0.0
        %2660 = vmatpush1.msra.mxu0 0.0
        %2661 = vmatprep.subr.mxu0 0.0
        %2662 = vmatpush1.msra.mxu0 0.0
        %2663 = vmatprep.subr.mxu0 0.0
        %2664 = vmatpush1.msra.mxu0 0.0
        %2665 = vmatprep.subr.mxu0 0.0
        %2666 = vmatpush1.msra.mxu0 0.0
        %2667 = vmatprep.subr.mxu0 0.0
        %2668 = vmatpush1.msra.mxu0 0.0
        %2669 = vmatprep.subr.mxu0 0.0
        %2670 = vmatpush1.msra.mxu0 0.0
        %2671 = vmatprep.subr.mxu0 0.0
        %2672 = vmatpush1.msra.mxu0 0.0
        %2673 = vmatprep.subr.mxu0 0.0
        %2674 = vmatpush1.msra.mxu0 0.0
        %2675 = vmatprep.subr.mxu0 0.0
        %2676 = vmatpush1.msra.mxu0 0.0
        %2677 = vmatprep.subr.mxu0 0.0
        %2678 = vmatpush1.msra.mxu0 0.0
        %2679 = vmatprep.subr.mxu0 0.0
        %2680 = vmatpush1.msra.mxu0 0.0
        %2681 = vmatprep.subr.mxu0 0.0
        %2682 = vmatpush1.msra.mxu0 0.0
        %2683 = vmatprep.subr.mxu0 0.0
        %2684 = vmatpush1.msra.mxu0 0.0
        %2685 = vmatprep.subr.mxu0 0.0
        %2686 = vmatpush1.msra.mxu0 0.0
        %2687 = vmatprep.subr.mxu0 0.0
        %2688 = vmatpush1.msra.mxu0 0.0
        %2689 = vmatprep.subr.mxu0 0.0
        %2690 = vmatpush1.msra.mxu0 0.0
        %2691 = vmatprep.mubr.f32.mxu0 0.0
        %2692 = vmatmul.mubr.f32.gmra.mrb[0].mxu0 %v2483
        %v2693 = vpop.f32.mrb[0].mxu0
        %v2694 = vadd.f32 %v1637, %v2693
        %v2695 = vpop.f32.mrb[0].mxu0
        %v2696 = vadd.f32 %v1641, %v2695
        %2697 = vdwg.mxu0
        %2698 = vmatprep.subr.mxu0 0.0
        %2699 = vmatpush1.msra.mxu0 %v1428
        %2700 = vmatprep.subr.mxu0 0.0
        %2701 = vmatpush1.msra.mxu0 %v1431
        %2702 = vmatprep.subr.mxu0 0.0
        %2703 = vmatpush1.msra.mxu0 %v1434
        %2704 = vmatprep.subr.mxu0 0.0
        %2705 = vmatpush1.msra.mxu0 %v1437
        %2706 = vmatprep.subr.mxu0 0.0
        %2707 = vmatpush1.msra.mxu0 %v1440
        %2708 = vmatprep.subr.mxu0 0.0
        %2709 = vmatpush1.msra.mxu0 %v1443
        %2710 = vmatprep.subr.mxu0 0.0
        %2711 = vmatpush1.msra.mxu0 %v1446
        %2712 = vmatprep.subr.mxu0 0.0
        %2713 = vmatpush1.msra.mxu0 %v1449
        %2714 = vmatprep.subr.mxu0 0.0
        %2715 = vmatpush1.msra.mxu0 %v1452
        %2716 = vmatprep.subr.mxu0 0.0
        %2717 = vmatpush1.msra.mxu0 %v1455
        %2718 = vmatprep.subr.mxu0 0.0
        %2719 = vmatpush1.msra.mxu0 %v1458
        %2720 = vmatprep.subr.mxu0 0.0
        %2721 = vmatpush1.msra.mxu0 %v1461
        %2722 = vmatprep.subr.mxu0 0.0
        %2723 = vmatpush1.msra.mxu0 %v1464
        %2724 = vmatprep.subr.mxu0 0.0
        %2725 = vmatpush1.msra.mxu0 %v1467
        %2726 = vmatprep.subr.mxu0 0.0
        %2727 = vmatpush1.msra.mxu0 %v1470
        %2728 = vmatprep.subr.mxu0 0.0
        %2729 = vmatpush1.msra.mxu0 %v1473
        %2730 = vmatprep.subr.mxu0 0.0
        %2731 = vmatpush1.msra.mxu0 0.0
        %2732 = vmatprep.subr.mxu0 0.0
        %2733 = vmatpush1.msra.mxu0 0.0
        %2734 = vmatprep.subr.mxu0 0.0
        %2735 = vmatpush1.msra.mxu0 0.0
        %2736 = vmatprep.subr.mxu0 0.0
        %2737 = vmatpush1.msra.mxu0 0.0
        %2738 = vmatprep.subr.mxu0 0.0
        %2739 = vmatpush1.msra.mxu0 0.0
        %2740 = vmatprep.subr.mxu0 0.0
        %2741 = vmatpush1.msra.mxu0 0.0
        %2742 = vmatprep.subr.mxu0 0.0
        %2743 = vmatpush1.msra.mxu0 0.0
        %2744 = vmatprep.subr.mxu0 0.0
        %2745 = vmatpush1.msra.mxu0 0.0
        %2746 = vmatprep.subr.mxu0 0.0
        %2747 = vmatpush1.msra.mxu0 0.0
        %2748 = vmatprep.subr.mxu0 0.0
        %2749 = vmatpush1.msra.mxu0 0.0
        %2750 = vmatprep.subr.mxu0 0.0
        %2751 = vmatpush1.msra.mxu0 0.0
        %2752 = vmatprep.subr.mxu0 0.0
        %2753 = vmatpush1.msra.mxu0 0.0
        %2754 = vmatprep.subr.mxu0 0.0
        %2755 = vmatpush1.msra.mxu0 0.0
        %2756 = vmatprep.subr.mxu0 0.0
        %2757 = vmatpush1.msra.mxu0 0.0
        %2758 = vmatprep.subr.mxu0 0.0
        %2759 = vmatpush1.msra.mxu0 0.0
        %2760 = vmatprep.subr.mxu0 0.0
        %2761 = vmatpush1.msra.mxu0 0.0
        %2762 = vmatprep.mubr.f32.mxu0 0.0
        %2763 = vmatmul.mubr.f32.gmra.mrb[0].mxu0 %v2483
        %v2764 = vpop.f32.mrb[0].mxu0
        %v2765 = vadd.f32 %v1645, %v2764
        %v2766 = vpop.f32.mrb[0].mxu0
        %2767 = vdwg.mxu0
        %v2768 = vadd.f32 %v1058, %v2553
        %v2769 = vxor.u32 %v2768, 2147483648
        %v2770 = vmul.f32 %v2769, 1.442695
        %v2771 = vpow.pop %v2770
        %v2772 = vadd.f32 %v2771, 1.0
        %v2773 = vrcp.pop %v2772
        %v2774 = vmul.f32 1.0, %v2773
        %v2775 = vadd.f32 %v1060, %v2555
        %v2776 = vxor.u32 %v2775, 2147483648
        %v2777 = vmul.f32 %v2776, 1.442695
        %v2778 = vpow.pop %v2777
        %v2779 = vadd.f32 %v2778, 1.0
        %v2780 = vrcp.pop %v2779
        %v2781 = vmul.f32 1.0, %v2780
        %v2782 = vmul.f32 %v2774, %v2624
        %v2783 = vadd.f32 %v1144, %v2782
        %v2784 = vtanh.pop %v2783
        %v2785 = vsub.f32 1.0, %v2781
        %v2786 = vmul.f32 %v2785, %v2784
        %v2787 = vmul.f32 %v2781, %v2462
        %v2788 = vadd.f32 %v2786, %v2787
        %v2789 = vadd.f32 %v1289, %v2694
        %v2790 = vxor.u32 %v2789, 2147483648
        %v2791 = vmul.f32 %v2790, 1.442695
        %v2792 = vpow.pop %v2791
        %v2793 = vadd.f32 %v2792, 1.0
        %v2794 = vrcp.pop %v2793
        %v2795 = vmul.f32 1.0, %v2794
        %v2796 = vadd.f32 %v1291, %v2696
        %v2797 = vxor.u32 %v2796, 2147483648
        %v2798 = vmul.f32 %v2797, 1.442695
        %v2799 = vpow.pop %v2798
        %v2800 = vadd.f32 %v2799, 1.0
        %v2801 = vrcp.pop %v2800
        %v2802 = vmul.f32 1.0, %v2801
        %v2803 = vmul.f32 %v2795, %v2765
        %v2804 = vadd.f32 %v1375, %v2803
        %v2805 = vtanh.pop %v2804
        %v2806 = vsub.f32 1.0, %v2802
        %v2807 = vmul.f32 %v2806, %v2805
        %v2808 = vmul.f32 %v2802, %v2483
        %v2809 = vadd.f32 %v2807, %v2808
        %2810 = vst [vmem:[#allocation2 + $0x18] sm:$0xff] %v2788
        %2811 = vst [vmem:[#allocation3 + $0x18] sm:$0xff] %v2809
        %v2812 = vld [vmem:[#allocation2] sm:$0xff]
        %v2813 = vld [vmem:[#allocation2 + $0x8] sm:$0xff]
        %v2814 = vld [vmem:[#allocation2 + $0x10] sm:$0xff]
        %v2815 = vld [vmem:[#allocation2 + $0x18] sm:$0xff]
        %v2816 = vmax.f32 %v2812, 0.0
        %v2817 = vmax.f32 %v2813, 0.0
        %v2818 = vmax.f32 %v2814, 0.0
        %v2819 = vmax.f32 %v2815, 0.0
        %v2820 = vld [vmem:[%s11] sm:$0xff]
        %v2821 = vld [vmem:[%s11 + $0x8] sm:$0xff]
        %v2822 = vld [vmem:[%s11 + $0x10] sm:$0xff]
        %v2823 = vld [vmem:[%s11 + $0x18] sm:$0xff]
        %v2824 = vld [vmem:[%s11 + $0x20] sm:$0xff]
        %v2825 = vld [vmem:[%s11 + $0x28] sm:$0xff]
        %v2826 = vld [vmem:[%s11 + $0x30] sm:$0xff]
        %v2827 = vld [vmem:[%s11 + $0x38] sm:$0xff]
        %v2828 = vld [vmem:[%s11 + $0x40] sm:$0xff]
        %v2829 = vld [vmem:[%s11 + $0x48] sm:$0xff]
        %v2830 = vld [vmem:[%s11 + $0x50] sm:$0xff]
        %v2831 = vld [vmem:[%s11 + $0x58] sm:$0xff]
        %v2832 = vld [vmem:[%s11 + $0x60] sm:$0xff]
        %v2833 = vld [vmem:[%s11 + $0x68] sm:$0xff]
        %v2834 = vld [vmem:[%s11 + $0x70] sm:$0xff]
        %v2835 = vld [vmem:[%s11 + $0x78] sm:$0xff]
        %v2836 = vld [vmem:[#allocation3] sm:$0xff]
        %v2837 = vld [vmem:[#allocation3 + $0x8] sm:$0xff]
        %v2838 = vld [vmem:[#allocation3 + $0x10] sm:$0xff]
        %v2839 = vld [vmem:[#allocation3 + $0x18] sm:$0xff]
        %v2840 = vmax.f32 %v2836, 0.0
        %v2841 = vmax.f32 %v2837, 0.0
        %v2842 = vmax.f32 %v2838, 0.0
        %v2843 = vmax.f32 %v2839, 0.0
        %v2844 = vld [vmem:[%s12] sm:$0xff]
        %v2845 = vld [vmem:[%s12 + $0x8] sm:$0xff]
        %v2846 = vld [vmem:[%s12 + $0x10] sm:$0xff]
        %v2847 = vld [vmem:[%s12 + $0x18] sm:$0xff]
        %v2848 = vld [vmem:[%s12 + $0x20] sm:$0xff]
        %v2849 = vld [vmem:[%s12 + $0x28] sm:$0xff]
        %v2850 = vld [vmem:[%s12 + $0x30] sm:$0xff]
        %v2851 = vld [vmem:[%s12 + $0x38] sm:$0xff]
        %v2852 = vld [vmem:[%s12 + $0x40] sm:$0xff]
        %v2853 = vld [vmem:[%s12 + $0x48] sm:$0xff]
        %v2854 = vld [vmem:[%s12 + $0x50] sm:$0xff]
        %v2855 = vld [vmem:[%s12 + $0x58] sm:$0xff]
        %v2856 = vld [vmem:[%s12 + $0x60] sm:$0xff]
        %v2857 = vld [vmem:[%s12 + $0x68] sm:$0xff]
        %v2858 = vld [vmem:[%s12 + $0x70] sm:$0xff]
        %v2859 = vld [vmem:[%s12 + $0x78] sm:$0xff]
        %2860 = vmatprep.subr.mxu0 0.0
        %2861 = vmatpush1.msra.mxu0 %v2844
        %2862 = vmatprep.subr.mxu0 0.0
        %2863 = vmatpush1.msra.mxu0 %v2845
        %2864 = vmatprep.subr.mxu0 0.0
        %2865 = vmatpush1.msra.mxu0 %v2846
        %2866 = vmatprep.subr.mxu0 0.0
        %2867 = vmatpush1.msra.mxu0 %v2847
        %2868 = vmatprep.subr.mxu0 0.0
        %2869 = vmatpush1.msra.mxu0 %v2848
        %2870 = vmatprep.subr.mxu0 0.0
        %2871 = vmatpush1.msra.mxu0 %v2849
        %2872 = vmatprep.subr.mxu0 0.0
        %2873 = vmatpush1.msra.mxu0 %v2850
        %2874 = vmatprep.subr.mxu0 0.0
        %2875 = vmatpush1.msra.mxu0 %v2851
        %2876 = vmatprep.subr.mxu0 0.0
        %2877 = vmatpush1.msra.mxu0 %v2852
        %2878 = vmatprep.subr.mxu0 0.0
        %2879 = vmatpush1.msra.mxu0 %v2853
        %2880 = vmatprep.subr.mxu0 0.0
        %2881 = vmatpush1.msra.mxu0 %v2854
        %2882 = vmatprep.subr.mxu0 0.0
        %2883 = vmatpush1.msra.mxu0 %v2855
        %2884 = vmatprep.subr.mxu0 0.0
        %2885 = vmatpush1.msra.mxu0 %v2856
        %2886 = vmatprep.subr.mxu0 0.0
        %2887 = vmatpush1.msra.mxu0 %v2857
        %2888 = vmatprep.subr.mxu0 0.0
        %2889 = vmatpush1.msra.mxu0 %v2858
        %2890 = vmatprep.subr.mxu0 0.0
        %2891 = vmatpush1.msra.mxu0 %v2859
        %2892 = vmatprep.subr.mxu0 0.0
        %2893 = vmatpush1.msra.mxu0 0.0
        %2894 = vmatprep.subr.mxu0 0.0
        %2895 = vmatpush1.msra.mxu0 0.0
        %2896 = vmatprep.subr.mxu0 0.0
        %2897 = vmatpush1.msra.mxu0 0.0
        %2898 = vmatprep.subr.mxu0 0.0
        %2899 = vmatpush1.msra.mxu0 0.0
        %2900 = vmatprep.subr.mxu0 0.0
        %2901 = vmatpush1.msra.mxu0 0.0
        %2902 = vmatprep.subr.mxu0 0.0
        %2903 = vmatpush1.msra.mxu0 0.0
        %2904 = vmatprep.subr.mxu0 0.0
        %2905 = vmatpush1.msra.mxu0 0.0
        %2906 = vmatprep.subr.mxu0 0.0
        %2907 = vmatpush1.msra.mxu0 0.0
        %2908 = vmatprep.subr.mxu0 0.0
        %2909 = vmatpush1.msra.mxu0 0.0
        %2910 = vmatprep.subr.mxu0 0.0
        %2911 = vmatpush1.msra.mxu0 0.0
        %2912 = vmatprep.subr.mxu0 0.0
        %2913 = vmatpush1.msra.mxu0 0.0
        %2914 = vmatprep.subr.mxu0 0.0
        %2915 = vmatpush1.msra.mxu0 0.0
        %2916 = vmatprep.subr.mxu0 0.0
        %2917 = vmatpush1.msra.mxu0 0.0
        %2918 = vmatprep.subr.mxu0 0.0
        %2919 = vmatpush1.msra.mxu0 0.0
        %2920 = vmatprep.subr.mxu0 0.0
        %2921 = vmatpush1.msra.mxu0 0.0
        %2922 = vmatprep.subr.mxu0 0.0
        %2923 = vmatpush1.msra.mxu0 0.0
        %2924 = vmatprep.mubr.f32.mxu0 0.0
        %2925 = vmatmul.mubr.f32.gmra.mrb[0].mxu0 %v2840
        %v2926 = vpop.f32.mrb[0].mxu0
        %v2927 = vadd.f32 0.0, %v2926
        %v2928 = vpop.f32.mrb[0].mxu0
        %2929 = vmatprep.mubr.f32.mxu0 0.0
        %2930 = vmatmul.mubr.f32.gmra.mrb[0].mxu0 %v2841
        %v2931 = vpop.f32.mrb[0].mxu0
        %v2932 = vadd.f32 0.0, %v2931
        %v2933 = vpop.f32.mrb[0].mxu0
        %2934 = vmatprep.mubr.f32.mxu0 0.0
        %2935 = vmatmul.mubr.f32.gmra.mrb[0].mxu0 %v2842
        %v2936 = vpop.f32.mrb[0].mxu0
        %v2937 = vadd.f32 0.0, %v2936
        %v2938 = vpop.f32.mrb[0].mxu0
        %2939 = vmatprep.mubr.f32.mxu0 0.0
        %2940 = vmatmul.mubr.f32.gmra.mrb[0].mxu0 %v2843
        %v2941 = vpop.f32.mrb[0].mxu0
        %v2942 = vadd.f32 0.0, %v2941
        %v2943 = vpop.f32.mrb[0].mxu0
        %2944 = vdwg.mxu0
        %2945 = vmatprep.subr.mxu0 0.0
        %2946 = vmatpush1.msra.mxu0 %v2820
        %2947 = vmatprep.subr.mxu0 0.0
        %2948 = vmatpush1.msra.mxu0 %v2821
        %2949 = vmatprep.subr.mxu0 0.0
        %2950 = vmatpush1.msra.mxu0 %v2822
        %2951 = vmatprep.subr.mxu0 0.0
        %2952 = vmatpush1.msra.mxu0 %v2823
        %2953 = vmatprep.subr.mxu0 0.0
        %2954 = vmatpush1.msra.mxu0 %v2824
        %2955 = vmatprep.subr.mxu0 0.0
        %2956 = vmatpush1.msra.mxu0 %v2825
        %2957 = vmatprep.subr.mxu0 0.0
        %2958 = vmatpush1.msra.mxu0 %v2826
        %2959 = vmatprep.subr.mxu0 0.0
        %2960 = vmatpush1.msra.mxu0 %v2827
        %2961 = vmatprep.subr.mxu0 0.0
        %2962 = vmatpush1.msra.mxu0 %v2828
        %2963 = vmatprep.subr.mxu0 0.0
        %2964 = vmatpush1.msra.mxu0 %v2829
        %2965 = vmatprep.subr.mxu0 0.0
        %2966 = vmatpush1.msra.mxu0 %v2830
        %2967 = vmatprep.subr.mxu0 0.0
        %2968 = vmatpush1.msra.mxu0 %v2831
        %2969 = vmatprep.subr.mxu0 0.0
        %2970 = vmatpush1.msra.mxu0 %v2832
        %2971 = vmatprep.subr.mxu0 0.0
        %2972 = vmatpush1.msra.mxu0 %v2833
        %2973 = vmatprep.subr.mxu0 0.0
        %2974 = vmatpush1.msra.mxu0 %v2834
        %2975 = vmatprep.subr.mxu0 0.0
        %2976 = vmatpush1.msra.mxu0 %v2835
        %2977 = vmatprep.subr.mxu0 0.0
        %2978 = vmatpush1.msra.mxu0 0.0
        %2979 = vmatprep.subr.mxu0 0.0
        %2980 = vmatpush1.msra.mxu0 0.0
        %2981 = vmatprep.subr.mxu0 0.0
        %2982 = vmatpush1.msra.mxu0 0.0
        %2983 = vmatprep.subr.mxu0 0.0
        %2984 = vmatpush1.msra.mxu0 0.0
        %2985 = vmatprep.subr.mxu0 0.0
        %2986 = vmatpush1.msra.mxu0 0.0
        %2987 = vmatprep.subr.mxu0 0.0
        %2988 = vmatpush1.msra.mxu0 0.0
        %2989 = vmatprep.subr.mxu0 0.0
        %2990 = vmatpush1.msra.mxu0 0.0
        %2991 = vmatprep.subr.mxu0 0.0
        %2992 = vmatpush1.msra.mxu0 0.0
        %2993 = vmatprep.subr.mxu0 0.0
        %2994 = vmatpush1.msra.mxu0 0.0
        %2995 = vmatprep.subr.mxu0 0.0
        %2996 = vmatpush1.msra.mxu0 0.0
        %2997 = vmatprep.subr.mxu0 0.0
        %2998 = vmatpush1.msra.mxu0 0.0
        %2999 = vmatprep.subr.mxu0 0.0
        %3000 = vmatpush1.msra.mxu0 0.0
        %3001 = vmatprep.subr.mxu0 0.0
        %3002 = vmatpush1.msra.mxu0 0.0
        %3003 = vmatprep.subr.mxu0 0.0
        %3004 = vmatpush1.msra.mxu0 0.0
        %3005 = vmatprep.subr.mxu0 0.0
        %3006 = vmatpush1.msra.mxu0 0.0
        %3007 = vmatprep.subr.mxu0 0.0
        %3008 = vmatpush1.msra.mxu0 0.0
        %3009 = vmatprep.mubr.f32.mxu0 0.0
        %3010 = vmatmul.mubr.f32.gmra.mrb[0].mxu0 %v2816
        %v3011 = vpop.f32.mrb[0].mxu0
        %v3012 = vadd.f32 %v2927, %v3011
        %v3013 = vpop.f32.mrb[0].mxu0
        %3014 = vmatprep.mubr.f32.mxu0 0.0
        %3015 = vmatmul.mubr.f32.gmra.mrb[0].mxu0 %v2817
        %v3016 = vpop.f32.mrb[0].mxu0
        %v3017 = vadd.f32 %v2932, %v3016
        %v3018 = vpop.f32.mrb[0].mxu0
        %3019 = vmatprep.mubr.f32.mxu0 0.0
        %3020 = vmatmul.mubr.f32.gmra.mrb[0].mxu0 %v2818
        %v3021 = vpop.f32.mrb[0].mxu0
        %v3022 = vadd.f32 %v2937, %v3021
        %v3023 = vpop.f32.mrb[0].mxu0
        %3024 = vmatprep.mubr.f32.mxu0 0.0
        %3025 = vmatmul.mubr.f32.gmra.mrb[0].mxu0 %v2819
        %v3026 = vpop.f32.mrb[0].mxu0
        %v3027 = vadd.f32 %v2942, %v3026
        %v3028 = vpop.f32.mrb[0].mxu0
        %3029 = vdwg.mxu0
        %v3030 = vld [vmem:[%s13] sm:$0x1]
        %v3032 = vlaneseq
        %v3033 = vshrl.u32 %v3032, 7
        %v3034 = vsub.s32 0, %v3033
        %v3035 = vrot.slane %v3030, %v3034
        %v3037 = vadd.f32 %v3012, %v3035
        %v3038 = vadd.f32 %v3017, %v3035
        %v3039 = vadd.f32 %v3022, %v3035
        %v3040 = vadd.f32 %v3027, %v3035
        %v3041 = vld [vmem:[%s14] sm:$0xff]
        %v3042 = vld [vmem:[%s14 + $0x8] sm:$0xff]
        %v3043 = vld [vmem:[%s14 + $0x10] sm:$0xff]
        %v3044 = vld [vmem:[%s14 + $0x18] sm:$0xff]
        %v3045 = vld [vmem:[%s14 + $0x20] sm:$0xff]
        %v3046 = vld [vmem:[%s14 + $0x28] sm:$0xff]
        %v3047 = vld [vmem:[%s14 + $0x30] sm:$0xff]
        %v3048 = vld [vmem:[%s14 + $0x38] sm:$0xff]
        %v3049 = vld [vmem:[%s14 + $0x40] sm:$0xff]
        %v3050 = vld [vmem:[%s14 + $0x48] sm:$0xff]
        %v3051 = vld [vmem:[%s14 + $0x50] sm:$0xff]
        %v3052 = vld [vmem:[%s14 + $0x58] sm:$0xff]
        %v3053 = vld [vmem:[%s14 + $0x60] sm:$0xff]
        %v3054 = vld [vmem:[%s14 + $0x68] sm:$0xff]
        %v3055 = vld [vmem:[%s14 + $0x70] sm:$0xff]
        %v3056 = vld [vmem:[%s14 + $0x78] sm:$0xff]
        %v3057 = vld [vmem:[#allocation18] sm:$0xff]
        %v3058 = vld [vmem:[#allocation18 + $0x8] sm:$0xff]
        %v3059 = vld [vmem:[#allocation18 + $0x10] sm:$0xff]
        %v3060 = vld [vmem:[#allocation18 + $0x18] sm:$0xff]
        %v3061 = vld [vmem:[#allocation18 + $0x20] sm:$0xff]
        %v3062 = vld [vmem:[#allocation18 + $0x28] sm:$0xff]
        %v3063 = vld [vmem:[#allocation18 + $0x30] sm:$0xff]
        %v3064 = vld [vmem:[#allocation18 + $0x38] sm:$0xff]
        %v3066 = vsel %vm960, %v3040, 0
        %3068 = vmatprep.subr.mxu0 0.0
        %3069 = vmatpush1.msra.mxu0 %v3057
        %3070 = vmatprep.subr.mxu0 0.0
        %3071 = vmatpush1.msra.mxu0 %v3058
        %3072 = vmatprep.subr.mxu0 0.0
        %3073 = vmatpush1.msra.mxu0 %v3059
        %3074 = vmatprep.subr.mxu0 0.0
        %3075 = vmatpush1.msra.mxu0 %v3060
        %3076 = vmatprep.subr.mxu0 0.0
        %3077 = vmatpush1.msra.mxu0 %v3061
        %3078 = vmatprep.subr.mxu0 0.0
        %3079 = vmatpush1.msra.mxu0 %v3062
        %3080 = vmatprep.subr.mxu0 0.0
        %3081 = vmatpush1.msra.mxu0 %v3063
        %3082 = vmatprep.subr.mxu0 0.0
        %3083 = vmatpush1.msra.mxu0 %v3064
        %3084 = vmatprep.subr.mxu0 0.0
        %3085 = vmatpush1.msra.mxu0 0.0
        %3086 = vmatprep.subr.mxu0 0.0
        %3087 = vmatpush1.msra.mxu0 0.0
        %3088 = vmatprep.subr.mxu0 0.0
        %3089 = vmatpush1.msra.mxu0 0.0
        %3090 = vmatprep.subr.mxu0 0.0
        %3091 = vmatpush1.msra.mxu0 0.0
        %3092 = vmatprep.subr.mxu0 0.0
        %3093 = vmatpush1.msra.mxu0 0.0
        %3094 = vmatprep.subr.mxu0 0.0
        %3095 = vmatpush1.msra.mxu0 0.0
        %3096 = vmatprep.subr.mxu0 0.0
        %3097 = vmatpush1.msra.mxu0 0.0
        %3098 = vmatprep.subr.mxu0 0.0
        %3099 = vmatpush1.msra.mxu0 0.0
        %3100 = vmatprep.subr.mxu0 0.0
        %3101 = vmatpush1.msra.mxu0 0.0
        %3102 = vmatprep.subr.mxu0 0.0
        %3103 = vmatpush1.msra.mxu0 0.0
        %3104 = vmatprep.subr.mxu0 0.0
        %3105 = vmatpush1.msra.mxu0 0.0
        %3106 = vmatprep.subr.mxu0 0.0
        %3107 = vmatpush1.msra.mxu0 0.0
        %3108 = vmatprep.subr.mxu0 0.0
        %3109 = vmatpush1.msra.mxu0 0.0
        %3110 = vmatprep.subr.mxu0 0.0
        %3111 = vmatpush1.msra.mxu0 0.0
        %3112 = vmatprep.subr.mxu0 0.0
        %3113 = vmatpush1.msra.mxu0 0.0
        %3114 = vmatprep.subr.mxu0 0.0
        %3115 = vmatpush1.msra.mxu0 0.0
        %3116 = vmatprep.subr.mxu0 0.0
        %3117 = vmatpush1.msra.mxu0 0.0
        %3118 = vmatprep.subr.mxu0 0.0
        %3119 = vmatpush1.msra.mxu0 0.0
        %3120 = vmatprep.subr.mxu0 0.0
        %3121 = vmatpush1.msra.mxu0 0.0
        %3122 = vmatprep.subr.mxu0 0.0
        %3123 = vmatpush1.msra.mxu0 0.0
        %3124 = vmatprep.subr.mxu0 0.0
        %3125 = vmatpush1.msra.mxu0 0.0
        %3126 = vmatprep.subr.mxu0 0.0
        %3127 = vmatpush1.msra.mxu0 0.0
        %3128 = vmatprep.subr.mxu0 0.0
        %3129 = vmatpush1.msra.mxu0 0.0
        %3130 = vmatprep.subr.mxu0 0.0
        %3131 = vmatpush1.msra.mxu0 0.0
        %3132 = vmatprep.mubr.f32.mxu0 0.0
        %3133 = vmatmul.mubr.f32.gmra.mrb[0].mxu0 %v3066
        %v3134 = vpop.f32.mrb[0].mxu0
        %v3135 = vadd.f32 0.0, %v3134
        %v3136 = vpop.f32.mrb[0].mxu0
        %3137 = vdwg.mxu0
        %3138 = vmax.xlane.f32.xlu0 %v3135
        %v3139 = vpop.xlane.xlu0 %3138
        %v3140 = vsub.f32 %v3135, %v3139
        %v3141 = vmul.f32 %v3140, 1.442695
        %v3142 = vpow.pop %v3141
        %3143 = vadd.xlane.f32.xlu0 %v3142
        %v3144 = vpop.xlane.xlu0 %3143
        %v3145 = vrcp.pop %v3144
        %v3146 = vmul.f32 %v3142, %v3145
        %3147 = vmatprep.subr.mxu0 0.0
        %3148 = vmatpush1.msra.mxu0 %v3041
        %3149 = vmatprep.subr.mxu0 0.0
        %3150 = vmatpush1.msra.mxu0 %v3042
        %3151 = vmatprep.subr.mxu0 0.0
        %3152 = vmatpush1.msra.mxu0 %v3043
        %3153 = vmatprep.subr.mxu0 0.0
        %3154 = vmatpush1.msra.mxu0 %v3044
        %3155 = vmatprep.subr.mxu0 0.0
        %3156 = vmatpush1.msra.mxu0 %v3045
        %3157 = vmatprep.subr.mxu0 0.0
        %3158 = vmatpush1.msra.mxu0 %v3046
        %3159 = vmatprep.subr.mxu0 0.0
        %3160 = vmatpush1.msra.mxu0 %v3047
        %3161 = vmatprep.subr.mxu0 0.0
        %3162 = vmatpush1.msra.mxu0 %v3048
        %3163 = vmatprep.subr.mxu0 0.0
        %3164 = vmatpush1.msra.mxu0 %v3049
        %3165 = vmatprep.subr.mxu0 0.0
        %3166 = vmatpush1.msra.mxu0 %v3050
        %3167 = vmatprep.subr.mxu0 0.0
        %3168 = vmatpush1.msra.mxu0 %v3051
        %3169 = vmatprep.subr.mxu0 0.0
        %3170 = vmatpush1.msra.mxu0 %v3052
        %3171 = vmatprep.subr.mxu0 0.0
        %3172 = vmatpush1.msra.mxu0 %v3053
        %3173 = vmatprep.subr.mxu0 0.0
        %3174 = vmatpush1.msra.mxu0 %v3054
        %3175 = vmatprep.subr.mxu0 0.0
        %3176 = vmatpush1.msra.mxu0 %v3055
        %3177 = vmatprep.subr.mxu0 0.0
        %3178 = vmatpush1.msra.mxu0 %v3056
        %3179 = vmatprep.subr.mxu0 0.0
        %3180 = vmatpush1.msra.mxu0 0.0
        %3181 = vmatprep.subr.mxu0 0.0
        %3182 = vmatpush1.msra.mxu0 0.0
        %3183 = vmatprep.subr.mxu0 0.0
        %3184 = vmatpush1.msra.mxu0 0.0
        %3185 = vmatprep.subr.mxu0 0.0
        %3186 = vmatpush1.msra.mxu0 0.0
        %3187 = vmatprep.subr.mxu0 0.0
        %3188 = vmatpush1.msra.mxu0 0.0
        %3189 = vmatprep.subr.mxu0 0.0
        %3190 = vmatpush1.msra.mxu0 0.0
        %3191 = vmatprep.subr.mxu0 0.0
        %3192 = vmatpush1.msra.mxu0 0.0
        %3193 = vmatprep.subr.mxu0 0.0
        %3194 = vmatpush1.msra.mxu0 0.0
        %3195 = vmatprep.subr.mxu0 0.0
        %3196 = vmatpush1.msra.mxu0 0.0
        %3197 = vmatprep.subr.mxu0 0.0
        %3198 = vmatpush1.msra.mxu0 0.0
        %3199 = vmatprep.subr.mxu0 0.0
        %3200 = vmatpush1.msra.mxu0 0.0
        %3201 = vmatprep.subr.mxu0 0.0
        %3202 = vmatpush1.msra.mxu0 0.0
        %3203 = vmatprep.subr.mxu0 0.0
        %3204 = vmatpush1.msra.mxu0 0.0
        %3205 = vmatprep.subr.mxu0 0.0
        %3206 = vmatpush1.msra.mxu0 0.0
        %3207 = vmatprep.subr.mxu0 0.0
        %3208 = vmatpush1.msra.mxu0 0.0
        %3209 = vmatprep.subr.mxu0 0.0
        %3210 = vmatpush1.msra.mxu0 0.0
        %3211 = vmatprep.mubr.f32.mxu0 0.0
        %3212 = vmatmul.mubr.f32.gmra.mrb[0].mxu0 %v3146
        %v3213 = vpop.f32.mrb[0].mxu0
        %v3214 = vadd.f32 0.0, %v3213
        %v3215 = vpop.f32.mrb[0].mxu0
        %3216 = vdwg.mxu0
        %v3217 = vmul.f32 %v3040, %v3037
        %v3218 = vsel %vm960, %v3217, 0.0
        %3219 = vadd.xlane.f32.xlu0 %v3218
        %v3220 = vpop.xlane.xlu0 %3219
        %v3221 = vmul.f32 %v3040, %v3038
        %v3222 = vsel %vm960, %v3221, 0.0
        %3223 = vadd.xlane.f32.xlu0 %v3222
        %v3224 = vpop.xlane.xlu0 %3223
        %v3225 = vmul.f32 %v3040, %v3039
        %v3226 = vsel %vm960, %v3225, 0.0
        %3227 = vadd.xlane.f32.xlu0 %v3226
        %v3228 = vpop.xlane.xlu0 %3227
        %v3229 = vmax.f32 %v3220, %v3224
        %v3230 = vmax.f32 %v3229, %v3228
        %v3231 = vsub.f32 %v3220, %v3230
        %v3232 = vmul.f32 %v3231, 1.442695
        %v3233 = vpow.pop %v3232
        %v3234 = vsub.f32 %v3224, %v3230
        %v3235 = vmul.f32 %v3234, 1.442695
        %v3236 = vpow.pop %v3235
        %v3237 = vsub.f32 %v3228, %v3230
        %v3238 = vmul.f32 %v3237, 1.442695
        %v3239 = vpow.pop %v3238
        %v3240 = vadd.f32 %v3233, %v3236
        %v3241 = vadd.f32 %v3240, %v3239
        %v3242 = vrcp.pop %v3241
        %v3243 = vmul.f32 %v3233, %v3242
        %v3244 = vld [vmem:[%s804] sm:$0xff]
        %v3245 = vmul.f32 %v3243, %v3244
        %v3246 = vadd.f32 %v3245, 0.0
        %v3247 = vmul.f32 %v3236, %v3242
        %s3248 = scalar_lea.vmem %s804, 8 [#allocation9]
        %v3249 = vld [vmem:[%s3248] sm:$0xff]
        %v3250 = vmul.f32 %v3247, %v3249
        %v3251 = vadd.f32 %v3246, %v3250
        %v3252 = vmul.f32 %v3239, %v3242
        %s3253 = scalar_lea.vmem %s804, 16 [#allocation9]
        %v3254 = vld [vmem:[%s3253] sm:$0xff]
        %v3255 = vmul.f32 %v3252, %v3254
        %v3256 = vadd.f32 %v3251, %v3255
        %3257 = vmatprep.subr.mxu0 0.0
        %3258 = vmatpush1.msra.mxu0 %v3041
        %3259 = vmatprep.subr.mxu0 0.0
        %3260 = vmatpush1.msra.mxu0 %v3042
        %3261 = vmatprep.subr.mxu0 0.0
        %3262 = vmatpush1.msra.mxu0 %v3043
        %3263 = vmatprep.subr.mxu0 0.0
        %3264 = vmatpush1.msra.mxu0 %v3044
        %3265 = vmatprep.subr.mxu0 0.0
        %3266 = vmatpush1.msra.mxu0 %v3045
        %3267 = vmatprep.subr.mxu0 0.0
        %3268 = vmatpush1.msra.mxu0 %v3046
        %3269 = vmatprep.subr.mxu0 0.0
        %3270 = vmatpush1.msra.mxu0 %v3047
        %3271 = vmatprep.subr.mxu0 0.0
        %3272 = vmatpush1.msra.mxu0 %v3048
        %3273 = vmatprep.subr.mxu0 0.0
        %3274 = vmatpush1.msra.mxu0 %v3049
        %3275 = vmatprep.subr.mxu0 0.0
        %3276 = vmatpush1.msra.mxu0 %v3050
        %3277 = vmatprep.subr.mxu0 0.0
        %3278 = vmatpush1.msra.mxu0 %v3051
        %3279 = vmatprep.subr.mxu0 0.0
        %3280 = vmatpush1.msra.mxu0 %v3052
        %3281 = vmatprep.subr.mxu0 0.0
        %3282 = vmatpush1.msra.mxu0 %v3053
        %3283 = vmatprep.subr.mxu0 0.0
        %3284 = vmatpush1.msra.mxu0 %v3054
        %3285 = vmatprep.subr.mxu0 0.0
        %3286 = vmatpush1.msra.mxu0 %v3055
        %3287 = vmatprep.subr.mxu0 0.0
        %3288 = vmatpush1.msra.mxu0 %v3056
        %3289 = vmatprep.subr.mxu0 0.0
        %3290 = vmatpush1.msra.mxu0 0.0
        %3291 = vmatprep.subr.mxu0 0.0
        %3292 = vmatpush1.msra.mxu0 0.0
        %3293 = vmatprep.subr.mxu0 0.0
        %3294 = vmatpush1.msra.mxu0 0.0
        %3295 = vmatprep.subr.mxu0 0.0
        %3296 = vmatpush1.msra.mxu0 0.0
        %3297 = vmatprep.subr.mxu0 0.0
        %3298 = vmatpush1.msra.mxu0 0.0
        %3299 = vmatprep.subr.mxu0 0.0
        %3300 = vmatpush1.msra.mxu0 0.0
        %3301 = vmatprep.subr.mxu0 0.0
        %3302 = vmatpush1.msra.mxu0 0.0
        %3303 = vmatprep.subr.mxu0 0.0
        %3304 = vmatpush1.msra.mxu0 0.0
        %3305 = vmatprep.subr.mxu0 0.0
        %3306 = vmatpush1.msra.mxu0 0.0
        %3307 = vmatprep.subr.mxu0 0.0
        %3308 = vmatpush1.msra.mxu0 0.0
        %3309 = vmatprep.subr.mxu0 0.0
        %3310 = vmatpush1.msra.mxu0 0.0
        %3311 = vmatprep.subr.mxu0 0.0
        %3312 = vmatpush1.msra.mxu0 0.0
        %3313 = vmatprep.subr.mxu0 0.0
        %3314 = vmatpush1.msra.mxu0 0.0
        %3315 = vmatprep.subr.mxu0 0.0
        %3316 = vmatpush1.msra.mxu0 0.0
        %3317 = vmatprep.subr.mxu0 0.0
        %3318 = vmatpush1.msra.mxu0 0.0
        %3319 = vmatprep.subr.mxu0 0.0
        %3320 = vmatpush1.msra.mxu0 0.0
        %3321 = vmatprep.mubr.f32.mxu0 0.0
        %3322 = vmatmul.mubr.f32.gmra.mrb[0].mxu0 %v3256
        %v3323 = vpop.f32.mrb[0].mxu0
        %v3324 = vadd.f32 0.0, %v3323
        %v3325 = vpop.f32.mrb[0].mxu0
        %3326 = vdwg.mxu0
        %v3327 = vmax.f32 %v3040, 0.0
        %v3328 = vld [vmem:[#allocation19] sm:$0xff]
        %v3329 = vld [vmem:[#allocation19 + $0x8] sm:$0xff]
        %v3330 = vld [vmem:[#allocation19 + $0x10] sm:$0xff]
        %v3331 = vld [vmem:[#allocation19 + $0x18] sm:$0xff]
        %v3332 = vld [vmem:[#allocation19 + $0x20] sm:$0xff]
        %v3333 = vld [vmem:[#allocation19 + $0x28] sm:$0xff]
        %v3334 = vld [vmem:[#allocation19 + $0x30] sm:$0xff]
        %v3335 = vld [vmem:[#allocation19 + $0x38] sm:$0xff]
        %v3336 = vmax.f32 %v3214, 0.0
        %v3337 = vld [vmem:[#allocation21] sm:$0xff]
        %v3338 = vld [vmem:[#allocation21 + $0x8] sm:$0xff]
        %v3339 = vld [vmem:[#allocation21 + $0x10] sm:$0xff]
        %v3340 = vld [vmem:[#allocation21 + $0x18] sm:$0xff]
        %v3341 = vld [vmem:[#allocation21 + $0x20] sm:$0xff]
        %v3342 = vld [vmem:[#allocation21 + $0x28] sm:$0xff]
        %v3343 = vld [vmem:[#allocation21 + $0x30] sm:$0xff]
        %v3344 = vld [vmem:[#allocation21 + $0x38] sm:$0xff]
        %v3346 = vsel %vm960, %v3336, 0
        %3348 = vmatprep.subr.mxu0 0.0
        %3349 = vmatpush1.msra.mxu0 %v3337
        %3350 = vmatprep.subr.mxu0 0.0
        %3351 = vmatpush1.msra.mxu0 %v3338
        %3352 = vmatprep.subr.mxu0 0.0
        %3353 = vmatpush1.msra.mxu0 %v3339
        %3354 = vmatprep.subr.mxu0 0.0
        %3355 = vmatpush1.msra.mxu0 %v3340
        %3356 = vmatprep.subr.mxu0 0.0
        %3357 = vmatpush1.msra.mxu0 %v3341
        %3358 = vmatprep.subr.mxu0 0.0
        %3359 = vmatpush1.msra.mxu0 %v3342
        %3360 = vmatprep.subr.mxu0 0.0
        %3361 = vmatpush1.msra.mxu0 %v3343
        %3362 = vmatprep.subr.mxu0 0.0
        %3363 = vmatpush1.msra.mxu0 %v3344
        %3364 = vmatprep.subr.mxu0 0.0
        %3365 = vmatpush1.msra.mxu0 0.0
        %3366 = vmatprep.subr.mxu0 0.0
        %3367 = vmatpush1.msra.mxu0 0.0
        %3368 = vmatprep.subr.mxu0 0.0
        %3369 = vmatpush1.msra.mxu0 0.0
        %3370 = vmatprep.subr.mxu0 0.0
        %3371 = vmatpush1.msra.mxu0 0.0
        %3372 = vmatprep.subr.mxu0 0.0
        %3373 = vmatpush1.msra.mxu0 0.0
        %3374 = vmatprep.subr.mxu0 0.0
        %3375 = vmatpush1.msra.mxu0 0.0
        %3376 = vmatprep.subr.mxu0 0.0
        %3377 = vmatpush1.msra.mxu0 0.0
        %3378 = vmatprep.subr.mxu0 0.0
        %3379 = vmatpush1.msra.mxu0 0.0
        %3380 = vmatprep.subr.mxu0 0.0
        %3381 = vmatpush1.msra.mxu0 0.0
        %3382 = vmatprep.subr.mxu0 0.0
        %3383 = vmatpush1.msra.mxu0 0.0
        %3384 = vmatprep.subr.mxu0 0.0
        %3385 = vmatpush1.msra.mxu0 0.0
        %3386 = vmatprep.subr.mxu0 0.0
        %3387 = vmatpush1.msra.mxu0 0.0
        %3388 = vmatprep.subr.mxu0 0.0
        %3389 = vmatpush1.msra.mxu0 0.0
        %3390 = vmatprep.subr.mxu0 0.0
        %3391 = vmatpush1.msra.mxu0 0.0
        %3392 = vmatprep.subr.mxu0 0.0
        %3393 = vmatpush1.msra.mxu0 0.0
        %3394 = vmatprep.subr.mxu0 0.0
        %3395 = vmatpush1.msra.mxu0 0.0
        %3396 = vmatprep.subr.mxu0 0.0
        %3397 = vmatpush1.msra.mxu0 0.0
        %3398 = vmatprep.subr.mxu0 0.0
        %3399 = vmatpush1.msra.mxu0 0.0
        %3400 = vmatprep.subr.mxu0 0.0
        %3401 = vmatpush1.msra.mxu0 0.0
        %3402 = vmatprep.subr.mxu0 0.0
        %3403 = vmatpush1.msra.mxu0 0.0
        %3404 = vmatprep.subr.mxu0 0.0
        %3405 = vmatpush1.msra.mxu0 0.0
        %3406 = vmatprep.subr.mxu0 0.0
        %3407 = vmatpush1.msra.mxu0 0.0
        %3408 = vmatprep.subr.mxu0 0.0
        %3409 = vmatpush1.msra.mxu0 0.0
        %3410 = vmatprep.subr.mxu0 0.0
        %3411 = vmatpush1.msra.mxu0 0.0
        %3412 = vmatprep.mubr.f32.mxu0 0.0
        %3413 = vmatmul.mubr.f32.gmra.mrb[0].mxu0 %v3346
        %v3414 = vpop.f32.mrb[0].mxu0
        %v3415 = vadd.f32 0.0, %v3414
        %v3416 = vpop.f32.mrb[0].mxu0
        %3417 = vdwg.mxu0
        %v3419 = vsel %vm960, %v3327, 0
        %3421 = vmatprep.subr.mxu0 0.0
        %3422 = vmatpush1.msra.mxu0 %v3328
        %3423 = vmatprep.subr.mxu0 0.0
        %3424 = vmatpush1.msra.mxu0 %v3329
        %3425 = vmatprep.subr.mxu0 0.0
        %3426 = vmatpush1.msra.mxu0 %v3330
        %3427 = vmatprep.subr.mxu0 0.0
        %3428 = vmatpush1.msra.mxu0 %v3331
        %3429 = vmatprep.subr.mxu0 0.0
        %3430 = vmatpush1.msra.mxu0 %v3332
        %3431 = vmatprep.subr.mxu0 0.0
        %3432 = vmatpush1.msra.mxu0 %v3333
        %3433 = vmatprep.subr.mxu0 0.0
        %3434 = vmatpush1.msra.mxu0 %v3334
        %3435 = vmatprep.subr.mxu0 0.0
        %3436 = vmatpush1.msra.mxu0 %v3335
        %3437 = vmatprep.subr.mxu0 0.0
        %3438 = vmatpush1.msra.mxu0 0.0
        %3439 = vmatprep.subr.mxu0 0.0
        %3440 = vmatpush1.msra.mxu0 0.0
        %3441 = vmatprep.subr.mxu0 0.0
        %3442 = vmatpush1.msra.mxu0 0.0
        %3443 = vmatprep.subr.mxu0 0.0
        %3444 = vmatpush1.msra.mxu0 0.0
        %3445 = vmatprep.subr.mxu0 0.0
        %3446 = vmatpush1.msra.mxu0 0.0
        %3447 = vmatprep.subr.mxu0 0.0
        %3448 = vmatpush1.msra.mxu0 0.0
        %3449 = vmatprep.subr.mxu0 0.0
        %3450 = vmatpush1.msra.mxu0 0.0
        %3451 = vmatprep.subr.mxu0 0.0
        %3452 = vmatpush1.msra.mxu0 0.0
        %3453 = vmatprep.subr.mxu0 0.0
        %3454 = vmatpush1.msra.mxu0 0.0
        %3455 = vmatprep.subr.mxu0 0.0
        %3456 = vmatpush1.msra.mxu0 0.0
        %3457 = vmatprep.subr.mxu0 0.0
        %3458 = vmatpush1.msra.mxu0 0.0
        %3459 = vmatprep.subr.mxu0 0.0
        %3460 = vmatpush1.msra.mxu0 0.0
        %3461 = vmatprep.subr.mxu0 0.0
        %3462 = vmatpush1.msra.mxu0 0.0
        %3463 = vmatprep.subr.mxu0 0.0
        %3464 = vmatpush1.msra.mxu0 0.0
        %3465 = vmatprep.subr.mxu0 0.0
        %3466 = vmatpush1.msra.mxu0 0.0
        %3467 = vmatprep.subr.mxu0 0.0
        %3468 = vmatpush1.msra.mxu0 0.0
        %3469 = vmatprep.subr.mxu0 0.0
        %3470 = vmatpush1.msra.mxu0 0.0
        %3471 = vmatprep.subr.mxu0 0.0
        %3472 = vmatpush1.msra.mxu0 0.0
        %3473 = vmatprep.subr.mxu0 0.0
        %3474 = vmatpush1.msra.mxu0 0.0
        %3475 = vmatprep.subr.mxu0 0.0
        %3476 = vmatpush1.msra.mxu0 0.0
        %3477 = vmatprep.subr.mxu0 0.0
        %3478 = vmatpush1.msra.mxu0 0.0
        %3479 = vmatprep.subr.mxu0 0.0
        %3480 = vmatpush1.msra.mxu0 0.0
        %3481 = vmatprep.subr.mxu0 0.0
        %3482 = vmatpush1.msra.mxu0 0.0
        %3483 = vmatprep.subr.mxu0 0.0
        %3484 = vmatpush1.msra.mxu0 0.0
        %3485 = vmatprep.mubr.f32.mxu0 0.0
        %3486 = vmatmul.mubr.f32.gmra.mrb[0].mxu0 %v3419
        %v3487 = vpop.f32.mrb[0].mxu0
        %v3488 = vadd.f32 %v3415, %v3487
        %v3489 = vpop.f32.mrb[0].mxu0
        %3490 = vdwg.mxu0
        %v3491 = vmax.f32 %v3324, 0.0
        %v3492 = vld [vmem:[%s18] sm:$0xff]
        %v3493 = vld [vmem:[%s18 + $0x8] sm:$0xff]
        %v3494 = vld [vmem:[%s18 + $0x10] sm:$0xff]
        %v3495 = vld [vmem:[%s18 + $0x18] sm:$0xff]
        %v3496 = vld [vmem:[%s18 + $0x20] sm:$0xff]
        %v3497 = vld [vmem:[%s18 + $0x28] sm:$0xff]
        %v3498 = vld [vmem:[%s18 + $0x30] sm:$0xff]
        %v3499 = vld [vmem:[%s18 + $0x38] sm:$0xff]
        %v3501 = vsel %vm960, %v3491, 0
        %3503 = vmatprep.subr.mxu0 0.0
        %3504 = vmatpush1.msra.mxu0 %v3492
        %3505 = vmatprep.subr.mxu0 0.0
        %3506 = vmatpush1.msra.mxu0 %v3493
        %3507 = vmatprep.subr.mxu0 0.0
        %3508 = vmatpush1.msra.mxu0 %v3494
        %3509 = vmatprep.subr.mxu0 0.0
        %3510 = vmatpush1.msra.mxu0 %v3495
        %3511 = vmatprep.subr.mxu0 0.0
        %3512 = vmatpush1.msra.mxu0 %v3496
        %3513 = vmatprep.subr.mxu0 0.0
        %3514 = vmatpush1.msra.mxu0 %v3497
        %3515 = vmatprep.subr.mxu0 0.0
        %3516 = vmatpush1.msra.mxu0 %v3498
        %3517 = vmatprep.subr.mxu0 0.0
        %3518 = vmatpush1.msra.mxu0 %v3499
        %3519 = vmatprep.subr.mxu0 0.0
        %3520 = vmatpush1.msra.mxu0 0.0
        %3521 = vmatprep.subr.mxu0 0.0
        %3522 = vmatpush1.msra.mxu0 0.0
        %3523 = vmatprep.subr.mxu0 0.0
        %3524 = vmatpush1.msra.mxu0 0.0
        %3525 = vmatprep.subr.mxu0 0.0
        %3526 = vmatpush1.msra.mxu0 0.0
        %3527 = vmatprep.subr.mxu0 0.0
        %3528 = vmatpush1.msra.mxu0 0.0
        %3529 = vmatprep.subr.mxu0 0.0
        %3530 = vmatpush1.msra.mxu0 0.0
        %3531 = vmatprep.subr.mxu0 0.0
        %3532 = vmatpush1.msra.mxu0 0.0
        %3533 = vmatprep.subr.mxu0 0.0
        %3534 = vmatpush1.msra.mxu0 0.0
        %3535 = vmatprep.subr.mxu0 0.0
        %3536 = vmatpush1.msra.mxu0 0.0
        %3537 = vmatprep.subr.mxu0 0.0
        %3538 = vmatpush1.msra.mxu0 0.0
        %3539 = vmatprep.subr.mxu0 0.0
        %3540 = vmatpush1.msra.mxu0 0.0
        %3541 = vmatprep.subr.mxu0 0.0
        %3542 = vmatpush1.msra.mxu0 0.0
        %3543 = vmatprep.subr.mxu0 0.0
        %3544 = vmatpush1.msra.mxu0 0.0
        %3545 = vmatprep.subr.mxu0 0.0
        %3546 = vmatpush1.msra.mxu0 0.0
        %3547 = vmatprep.subr.mxu0 0.0
        %3548 = vmatpush1.msra.mxu0 0.0
        %3549 = vmatprep.subr.mxu0 0.0
        %3550 = vmatpush1.msra.mxu0 0.0
        %3551 = vmatprep.subr.mxu0 0.0
        %3552 = vmatpush1.msra.mxu0 0.0
        %3553 = vmatprep.subr.mxu0 0.0
        %3554 = vmatpush1.msra.mxu0 0.0
        %3555 = vmatprep.subr.mxu0 0.0
        %3556 = vmatpush1.msra.mxu0 0.0
        %3557 = vmatprep.subr.mxu0 0.0
        %3558 = vmatpush1.msra.mxu0 0.0
        %3559 = vmatprep.subr.mxu0 0.0
        %3560 = vmatpush1.msra.mxu0 0.0
        %3561 = vmatprep.subr.mxu0 0.0
        %3562 = vmatpush1.msra.mxu0 0.0
        %3563 = vmatprep.subr.mxu0 0.0
        %3564 = vmatpush1.msra.mxu0 0.0
        %3565 = vmatprep.subr.mxu0 0.0
        %3566 = vmatpush1.msra.mxu0 0.0
        %3567 = vmatprep.mubr.f32.mxu0 0.0
        %3568 = vmatmul.mubr.f32.gmra.mrb[0].mxu0 %v3501
        %v3569 = vpop.f32.mrb[0].mxu0
        %v3570 = vadd.f32 0.0, %v3569
        %v3571 = vpop.f32.mrb[0].mxu0
        %3572 = vdwg.mxu0
        %v3573 = vadd.f32 %v3488, %v3570
        %v3574 = vld [vmem:[#allocation22] sm:$0x1]
        %v3576 = vlaneseq
        %v3577 = vshrl.u32 %v3576, 7
        %v3578 = vsub.s32 0, %v3577
        %v3579 = vrot.slane %v3574, %v3578
        %v3581 = vadd.f32 %v3573, %v3579
        %v3582 = vmax.f32 %v3581, 0.0
        %v3583 = vld [vmem:[#allocation24] sm:$0xff]
        %v3584 = vld [vmem:[#allocation24 + $0x8] sm:$0xff]
        %v3585 = vld [vmem:[#allocation24 + $0x10] sm:$0xff]
        %v3586 = vld [vmem:[#allocation24 + $0x18] sm:$0xff]
        %v3587 = vld [vmem:[#allocation24 + $0x20] sm:$0xff]
        %v3588 = vld [vmem:[#allocation24 + $0x28] sm:$0xff]
        %v3589 = vld [vmem:[#allocation24 + $0x30] sm:$0xff]
        %v3590 = vld [vmem:[#allocation24 + $0x38] sm:$0xff]
        %v3591 = vld [vmem:[#allocation24 + $0x40] sm:$0xff]
        %v3592 = vld [vmem:[#allocation24 + $0x48] sm:$0xff]
        %v3593 = vld [vmem:[#allocation24 + $0x50] sm:$0xff]
        %v3594 = vld [vmem:[#allocation24 + $0x58] sm:$0xff]
        %v3595 = vld [vmem:[#allocation24 + $0x60] sm:$0xff]
        %v3596 = vld [vmem:[#allocation24 + $0x68] sm:$0xff]
        %v3597 = vld [vmem:[#allocation24 + $0x70] sm:$0xff]
        %v3598 = vld [vmem:[#allocation24 + $0x78] sm:$0xff]
        %v3599 = vld [vmem:[%s21] sm:$0x1]
        %v3601 = vlaneseq
        %v3602 = vshrl.u32 %v3601, 7
        %v3603 = vsub.s32 0, %v3602
        %v3604 = vrot.slane %v3599, %v3603
        %3606 = vmatprep.subr.mxu0 0.0
        %3607 = vmatpush1.msra.mxu0 %v3583
        %3608 = vmatprep.subr.mxu0 0.0
        %3609 = vmatpush1.msra.mxu0 %v3584
        %3610 = vmatprep.subr.mxu0 0.0
        %3611 = vmatpush1.msra.mxu0 %v3585
        %3612 = vmatprep.subr.mxu0 0.0
        %3613 = vmatpush1.msra.mxu0 %v3586
        %3614 = vmatprep.subr.mxu0 0.0
        %3615 = vmatpush1.msra.mxu0 %v3587
        %3616 = vmatprep.subr.mxu0 0.0
        %3617 = vmatpush1.msra.mxu0 %v3588
        %3618 = vmatprep.subr.mxu0 0.0
        %3619 = vmatpush1.msra.mxu0 %v3589
        %3620 = vmatprep.subr.mxu0 0.0
        %3621 = vmatpush1.msra.mxu0 %v3590
        %3622 = vmatprep.subr.mxu0 0.0
        %3623 = vmatpush1.msra.mxu0 %v3591
        %3624 = vmatprep.subr.mxu0 0.0
        %3625 = vmatpush1.msra.mxu0 %v3592
        %3626 = vmatprep.subr.mxu0 0.0
        %3627 = vmatpush1.msra.mxu0 %v3593
        %3628 = vmatprep.subr.mxu0 0.0
        %3629 = vmatpush1.msra.mxu0 %v3594
        %3630 = vmatprep.subr.mxu0 0.0
        %3631 = vmatpush1.msra.mxu0 %v3595
        %3632 = vmatprep.subr.mxu0 0.0
        %3633 = vmatpush1.msra.mxu0 %v3596
        %3634 = vmatprep.subr.mxu0 0.0
        %3635 = vmatpush1.msra.mxu0 %v3597
        %3636 = vmatprep.subr.mxu0 0.0
        %3637 = vmatpush1.msra.mxu0 %v3598
        %3638 = vmatprep.subr.mxu0 0.0
        %3639 = vmatpush1.msra.mxu0 0.0
        %3640 = vmatprep.subr.mxu0 0.0
        %3641 = vmatpush1.msra.mxu0 0.0
        %3642 = vmatprep.subr.mxu0 0.0
        %3643 = vmatpush1.msra.mxu0 0.0
        %3644 = vmatprep.subr.mxu0 0.0
        %3645 = vmatpush1.msra.mxu0 0.0
        %3646 = vmatprep.subr.mxu0 0.0
        %3647 = vmatpush1.msra.mxu0 0.0
        %3648 = vmatprep.subr.mxu0 0.0
        %3649 = vmatpush1.msra.mxu0 0.0
        %3650 = vmatprep.subr.mxu0 0.0
        %3651 = vmatpush1.msra.mxu0 0.0
        %3652 = vmatprep.subr.mxu0 0.0
        %3653 = vmatpush1.msra.mxu0 0.0
        %3654 = vmatprep.subr.mxu0 0.0
        %3655 = vmatpush1.msra.mxu0 0.0
        %3656 = vmatprep.subr.mxu0 0.0
        %3657 = vmatpush1.msra.mxu0 0.0
        %3658 = vmatprep.subr.mxu0 0.0
        %3659 = vmatpush1.msra.mxu0 0.0
        %3660 = vmatprep.subr.mxu0 0.0
        %3661 = vmatpush1.msra.mxu0 0.0
        %3662 = vmatprep.subr.mxu0 0.0
        %3663 = vmatpush1.msra.mxu0 0.0
        %3664 = vmatprep.subr.mxu0 0.0
        %3665 = vmatpush1.msra.mxu0 0.0
        %3666 = vmatprep.subr.mxu0 0.0
        %3667 = vmatpush1.msra.mxu0 0.0
        %3668 = vmatprep.subr.mxu0 0.0
        %3669 = vmatpush1.msra.mxu0 0.0
        %3670 = vmatprep.mubr.f32.mxu0 0.0
        %3671 = vmatmul.mubr.f32.gmra.mrb[0].mxu0 %v3582
        %v3672 = vpop.f32.mrb[0].mxu0
        %v3673 = vadd.f32 %v3604, %v3672
        %v3674 = vpop.f32.mrb[0].mxu0
        %3675 = vdwg.mxu0
        %3676 = vst [vmem:[%s914] sm:$0xff] %v3673
        %s3677 = sand.u32 %s532, 1
        %s3678 = scalar_lea.sflag [#allocation6], %s3677
        %s3679 = sand.u32 %s532, 1
        %s3680 = smul.addr %s3679, 8
        %s3681 = scalar_lea.vmem [#allocation25], %s3680
        // Predicated region
        $region161: #{tpu_custom_call.1} parent=107 // pred_check
          %p3682 = pneg %p542
        $region162: #{tpu_custom_call.1} parent=107 // pred_check_branch
          %3684 = sbr.rel (%p3682) target = $region164
        $region163: #{tpu_custom_call.1} parent=107 // pred_region
          %s3686 = ssub.s32 128, 128
          %3687 = vsyncadd %s3678, %s3686
          %s3688 = smul.addr %s47, 128
          %s3689 = scalar_lea.hbm %s22, %s3688
          %s3691 = sshll.u32 %s3681, 4
          %s3692 = int_to_ptr.vmem [resolvable:$true] %s3691
          %3694 = dma.vmem_to_hbm [thread:$0]  %s3692, 128, %s3689, %s3678
        $region164: #{tpu_custom_call.1} parent=107 // pred_fallthru
          _
      $region108: #{tpu_custom_call.1} parent=5 // pred_fallthru
        _
      %p3695 = scmp.le.s32.totalorder 2, %s42
      // Predicated region
      $region165: #{tpu_custom_call.1} parent=5 // pred_check
        %p3696 = pneg %p3695
      $region166: #{tpu_custom_call.1} parent=5 // pred_check_branch
        %3698 = sbr.rel (%p3696) target = $region168
      $region167: #{tpu_custom_call.1} parent=5 // pred_region
        %s3699 = ssub.s32 %s42, 2
        // Predicated region
        $region169: #{tpu_custom_call.1} parent=167 // pred_check
          %p3700 = pneg %p548
        $region170: #{tpu_custom_call.1} parent=167 // pred_check_branch
          %3702 = sbr.rel (%p3700) target = $region172
        $region171: #{tpu_custom_call.1} parent=167 // pred_region
          %s3703 = sand.u32 %s533, 1
          %s3704 = scalar_lea.sflag [#allocation6], %s3703
          %s3705 = sand.u32 %s533, 1
          %s3706 = smul.addr %s3705, 8
          %s3707 = scalar_lea.vmem [#allocation25], %s3706
          %3708 = dma.done %s3704, 128
        $region172: #{tpu_custom_call.1} parent=167 // pred_fallthru
          _
      $region168: #{tpu_custom_call.1} parent=5 // pred_fallthru
        _
    $region6: #{tpu_custom_call.1} parent=1 // loop_footer
      %s46 = sadd.s32 1, %s42
    $region7: #{tpu_custom_call.1} parent=1 // loop_footer_branch
      %41 = sbr.rel target = $region3
    $region8: #{tpu_custom_call.1} parent=1 // loop_exit
      _
    %3709 = vsyncpa [#allocation5], 1
    %s3710 = scalar_lea.sflag [#allocation5], 1
    %3711 = vsyncpa %s3710, 1
    %3712 = vsyncpa [#allocation8], 1
    %s3713 = scalar_lea.sflag [#allocation8], 1
    %3714 = vsyncpa %s3713, 1
    %3715 = vsyncpa [#allocation11], 1
    %3716 = vsyncpa [#allocation14], 1
    %3717 = vsyncpa [#allocation17], 1
    %3718 = vsyncpa [#allocation20], 1
    %3719 = vsyncpa [#allocation23], 1
    %3720 = vsyncpa [#allocation6], 1
    %s3721 = scalar_lea.sflag [#allocation6], 1
    %3722 = vsyncpa %s3721, 1

</llo_original>
